<compile_context>
chip_gen: v5e
topology: v5e:2x2
jax: 0.10.0
libtpu: 0.0.40
codegen_flags: <defaults>
</compile_context>

<pallas_src>
import functools
import math

import jax
import jax.numpy as jnp
from jax import lax
from jax.experimental import pallas as pl
from jax.experimental.pallas import tpu as pltpu


# ---------------------------------------------------------------------------
# In-kernel helpers (operate on loaded VMEM values)
# ---------------------------------------------------------------------------
def _layernorm(x, alpha, beta, eps):
    # Matches PyTorch module: mean over last dim, unbiased std (ddof=1),
    # scalar alpha/beta (read from SMEM, broadcast on the VPU here).
    n = x.shape[-1]
    mean = jnp.mean(x, axis=-1, keepdims=True)
    diff = x - mean
    var = jnp.sum(diff * diff, axis=-1, keepdims=True) * (1.0 / (n - 1))
    return alpha * diff * lax.rsqrt(var + eps) + beta


def _dot(a, b, cdtype):
    # Matmul with operands in `cdtype` (f32 or bf16) and f32 MXU accumulation.
    return jnp.dot(a.astype(cdtype), b.astype(cdtype),
                   preferred_element_type=jnp.float32)


def _mha(xq, xkv, wq_ref, wk_ref, wv_ref, wo_ref, bo_ref, *,
         n_heads, bb, sq, sk, cdtype):
    """Multi-head attention on folded-batch slabs.

    xq: (bb*sq, D) pre-normed queries; xkv: (bb*sk, D) key/value source.
    Weights pre-split per head in the wrapper: wq/wk/wv: (H, D, d_k),
    wo: (H, d_k, D); bo: (1, D).
    """
    rows_q, d = xq.shape
    d_k = d // n_heads
    scale = 1.0 / math.sqrt(d_k)

    xq_c = xq.astype(cdtype)
    xkv_c = xkv.astype(cdtype)

    # Accumulator initialised with the output-projection bias (hoisted; saves a
    # full-width VPU add and a zero materialization).
    out = jnp.broadcast_to(bo_ref[...], (rows_q, d)).astype(jnp.float32)

    for h in range(n_heads):            # static unroll, H is small
        # Per-head projections straight off the MXU (leading-axis weight index,
        # no 32-lane activation slices -> no XLU relayouts).
        qh = _dot(xq_c, wq_ref[h], cdtype)      # (bb*sq, d_k)
        kh = _dot(xkv_c, wk_ref[h], cdtype)     # (bb*sk, d_k)
        vh = _dot(xkv_c, wv_ref[h], cdtype)     # (bb*sk, d_k)

        parts = []
        for b in range(bb):             # static unroll; sublane-aligned slices
            qb = qh[b * sq:(b + 1) * sq]
            kb = kh[b * sk:(b + 1) * sk]
            vb = vh[b * sk:(b + 1) * sk]
            # q @ k.T by contracting the d_k axes (no transpose materialised).
            s = lax.dot_general(qb.astype(cdtype), kb.astype(cdtype),
                                (((1,), (1,)), ((), ())),
                                preferred_element_type=jnp.float32) * scale
            # NOTE: reference's masked_fill() is non-in-place & discarded -> no mask.
            s = s - jnp.max(s, axis=-1, keepdims=True)
            p = jnp.exp(s)
            l = jnp.sum(p, axis=-1, keepdims=True)
            ob = _dot(p, vb, cdtype)                       # (sq, d_k), unnormalised
            # Normalise AFTER p@v: scales the small (sq, d_k) tensor with the
            # EUP approximate reciprocal instead of dividing the score matrix.
            parts.append(ob * pl.reciprocal(l, approx=True))

        oh = parts[0] if bb == 1 else jnp.concatenate(parts, axis=0)  # (bb*sq, d_k)
        # concat(heads) @ Wo  ==  sum_h head_h @ Wo[rows of head h]
        out = out + _dot(oh, wo_ref[h], cdtype)
    return out


# ---------------------------------------------------------------------------
# Fused decoder-block kernel (one batch block per grid step)
# ---------------------------------------------------------------------------
def _decoder_block_kernel(
        x_ref, enc_ref,
        sa_wq_ref, sa_wk_ref, sa_wv_ref, sa_wo_ref, sa_bo_ref,
        ca_wq_ref, ca_wk_ref, ca_wv_ref, ca_wo_ref, ca_bo_ref,
        ff_w1_ref, ff_b1_ref, ff_w2_ref, ff_b2_ref,
        ln_ref, out_ref, *, n_heads, eps, cdtype):
    bb, S, D = x_ref.shape
    _, S_enc, _ = enc_ref.shape

    # Fold the batch into rows: LN / projections / FFN run on one slab
    # (free reshape: leading dims merge, minor dim untouched).
    x = x_ref[...].astype(jnp.float32).reshape(bb * S, D)
    enc = enc_ref[...].astype(jnp.float32).reshape(bb * S_enc, D)

    # TODO(synk): dropout omitted (eval/inference semantics -> identity).

    # 1) pre-LN self-attention + residual
    h = _layernorm(x, ln_ref[0], ln_ref[1], eps)
    x = x + _mha(h, h, sa_wq_ref, sa_wk_ref, sa_wv_ref, sa_wo_ref, sa_bo_ref,
                 n_heads=n_heads, bb=bb, sq=S, sk=S, cdtype=cdtype)

    # 2) pre-LN cross-attention (K/V from encoder output) + residual
    h = _layernorm(x, ln_ref[2], ln_ref[3], eps)
    x = x + _mha(h, enc, ca_wq_ref, ca_wk_ref, ca_wv_ref, ca_wo_ref, ca_bo_ref,
                 n_heads=n_heads, bb=bb, sq=S, sk=S_enc, cdtype=cdtype)

    # 3) pre-LN feed-forward + residual
    h = _layernorm(x, ln_ref[4], ln_ref[5], eps)
    ff = jnp.maximum(_dot(h, ff_w1_ref[...], cdtype) + ff_b1_ref[...], 0.0)
    x = x + _dot(ff, ff_w2_ref[...], cdtype) + ff_b2_ref[...]

    out_ref[...] = x.reshape(bb, S, D).astype(out_ref.dtype)


# ---------------------------------------------------------------------------
# Wrapper
# ---------------------------------------------------------------------------
def decoder_block(x, encoder_out, mask1, mask2, params, *, n_heads, eps=1e-5,
                  compute_dtype=jnp.float32, batch_block=None):
    """Fused Pallas DecoderBlock forward.

    mask1/mask2 are accepted for API parity but — exactly like the PyTorch
    reference, where masked_fill() is non-in-place and its result is
    discarded — they do not affect the output.

    compute_dtype: dtype of matmul OPERANDS (accumulation / LN / softmax stay
    f32).  Use jnp.bfloat16 on v6e/v7x for half the weight DMA and faster MXU.
    batch_block: batch elements per grid step.  Default folds the whole batch
    into one step (best for single-TC v5e/v6e at small shapes); set e.g.
    batch_block = B // 2 to shard across v7x's two TensorCores.
    """
    del mask1, mask2
    B, S, D = x.shape
    Be, S_enc, De = encoder_out.shape
    assert Be == B and De == D
    assert D % n_heads == 0
    assert D > 1                      # unbiased variance divides by D-1
    H, d_k = n_heads, D // n_heads
    d_ff = params["ff_w1"].shape[1]

    bb = B if batch_block is None else batch_block
    assert B % bb == 0
    nb = B // bb

    cd = compute_dtype

    # Pre-split attention weights per head (wrapper-side layout plumbing):
    #   (D, D) with output columns by head  -> (H, D, d_k)
    #   (D, D) with input rows by head      -> (H, d_k, D)
    def heads_in(w):
        return jnp.transpose(w.reshape(D, H, d_k), (1, 0, 2)).astype(cd)

    def heads_out(w):
        return w.reshape(H, d_k, D).astype(cd)

    weights = [
        heads_in(params["sa_wq"]), heads_in(params["sa_wk"]),
        heads_in(params["sa_wv"]), heads_out(params["sa_wo"]),
        params["sa_bo"].astype(jnp.float32),
        heads_in(params["ca_wq"]), heads_in(params["ca_wk"]),
        heads_in(params["ca_wv"]), heads_out(params["ca_wo"]),
        params["ca_bo"].astype(jnp.float32),
        params["ff_w1"].astype(cd), params["ff_b1"].astype(jnp.float32),
        params["ff_w2"].astype(cd), params["ff_b2"].astype(jnp.float32),
    ]

    # Six LayerNorm scalars travel through SMEM (no (6, D) VMEM broadcast).
    ln = jnp.stack([jnp.asarray(params[k], jnp.float32) for k in
                    ("ln0_a", "ln0_b", "ln1_a", "ln1_b", "ln2_a", "ln2_b")])

    def const_spec(a):
        if a.ndim == 3:
            return pl.BlockSpec(a.shape, lambda i: (0, 0, 0))
        return pl.BlockSpec(a.shape, lambda i: (0, 0))

    kernel = functools.partial(_decoder_block_kernel,
                               n_heads=n_heads, eps=eps, cdtype=cd)

    # Advisory cost estimate so XLA can schedule around the fused custom call.
    flops = 2 * B * (4 * S * D * D                     # self-attn projections
                     + 2 * S * S * D                   # self-attn scores + pv
                     + (2 * S + 2 * S_enc) * D * D     # cross-attn projections
                     + 2 * S * S_enc * D               # cross-attn scores + pv
                     + 2 * S * D * d_ff)               # FFN
    transcendentals = B * H * S * (S + S_enc)
    bytes_accessed = 4 * (x.size + encoder_out.size + B * S * D) \
        + sum(int(w.size) * w.dtype.itemsize for w in weights) + 4 * int(ln.size)

    return pl.pallas_call(
        kernel,
        out_shape=jax.ShapeDtypeStruct((B, S, D), jnp.float32),
        grid_spec=pltpu.PrefetchScalarGridSpec(
            num_scalar_prefetch=0,
            grid=(nb,),
            in_specs=[
                pl.BlockSpec((bb, S, D), lambda i: (i, 0, 0)),        # x
                pl.BlockSpec((bb, S_enc, D), lambda i: (i, 0, 0)),    # enc out
            ] + [const_spec(w) for w in weights]
              + [pl.BlockSpec(memory_space=pltpu.MemorySpace.SMEM)],  # LN scalars
            out_specs=pl.BlockSpec((bb, S, D), lambda i: (i, 0, 0)),
        ),
        compiler_params=pltpu.CompilerParams(
            dimension_semantics=("parallel",),
            vmem_limit_bytes=32 * 1024 * 1024),
        cost_estimate=pl.CostEstimate(
            flops=int(flops), transcendentals=int(transcendentals),
            bytes_accessed=int(bytes_accessed)),
    )(x, encoder_out, *weights, ln)


# ---------------------------------------------------------------------------
# Pure-JAX reference (mirrors the PyTorch module, eval mode)
# ---------------------------------------------------------------------------
def decoder_block_ref(x, enc, params, *, n_heads, eps=1e-5):
    def ln(x, a, b):
        mean = x.mean(-1, keepdims=True)
        var = jnp.var(x, axis=-1, keepdims=True, ddof=1)   # unbiased std**2
        return a * (x - mean) / jnp.sqrt(var + eps) + b

    def mha(xq, xkv, wq, wk, wv, wo, bo):
        B, Sq, D = xq.shape
        dk = D // n_heads
        q = xq @ wq
        k = xkv @ wk
        v = xkv @ wv
        q = q.reshape(B, Sq, n_heads, dk).transpose(0, 2, 1, 3)
        k = k.reshape(B, -1, n_heads, dk).transpose(0, 2, 1, 3)
        v = v.reshape(B, -1, n_heads, dk).transpose(0, 2, 1, 3)
        s = (q @ jnp.swapaxes(k, -1, -2)) / math.sqrt(dk)
        # masked_fill in the PyTorch code is non-in-place & discarded -> no mask
        a = jax.nn.softmax(s, axis=-1)
        o = (a @ v).transpose(0, 2, 1, 3).reshape(B, Sq, D)
        return o @ wo + bo

    p = params
    h = ln(x, p["ln0_a"], p["ln0_b"])
    x = x + mha(h, h, p["sa_wq"], p["sa_wk"], p["sa_wv"], p["sa_wo"], p["sa_bo"])
    h = ln(x, p["ln1_a"], p["ln1_b"])
    x = x + mha(h, enc, p["ca_wq"], p["ca_wk"], p["ca_wv"], p["ca_wo"], p["ca_bo"])
    h = ln(x, p["ln2_a"], p["ln2_b"])
    ff = jnp.maximum(h @ p["ff_w1"] + p["ff_b1"], 0.0)
    x = x + ff @ p["ff_w2"] + p["ff_b2"]
    return x


if __name__ == "__main__":
    d_model, n_heads, d_ff = 128, 4, 256
    batch, seq, seq_enc = 2, 16, 16

    key = jax.random.PRNGKey(0)
    ks = jax.random.split(key, 24)

    def w(k, shape, scale=0.05):
        return scale * jax.random.normal(k, shape, dtype=jnp.float32)

    params = {
        # attention weights in (in, out) layout; W_o has a bias
        "sa_wq": w(ks[0], (d_model, d_model)),
        "sa_wk": w(ks[1], (d_model, d_model)),
        "sa_wv": w(ks[2], (d_model, d_model)),
        "sa_wo": w(ks[3], (d_model, d_model)),
        "sa_bo": w(ks[4], (1, d_model)),
        "ca_wq": w(ks[5], (d_model, d_model)),
        "ca_wk": w(ks[6], (d_model, d_model)),
        "ca_wv": w(ks[7], (d_model, d_model)),
        "ca_wo": w(ks[8], (d_model, d_model)),
        "ca_bo": w(ks[9], (1, d_model)),
        "ff_w1": w(ks[10], (d_model, d_ff)),
        "ff_b1": w(ks[11], (1, d_ff)),
        "ff_w2": w(ks[12], (d_ff, d_model)),
        "ff_b2": w(ks[13], (1, d_model)),
        # LayerNormalization scalar alpha/beta (one pair per residual branch)
        "ln0_a": 1.0 + 0.1 * jax.random.normal(ks[14], (), dtype=jnp.float32),
        "ln0_b": 0.1 * jax.random.normal(ks[15], (), dtype=jnp.float32),
        "ln1_a": 1.0 + 0.1 * jax.random.normal(ks[16], (), dtype=jnp.float32),
        "ln1_b": 0.1 * jax.random.normal(ks[17], (), dtype=jnp.float32),
        "ln2_a": 1.0 + 0.1 * jax.random.normal(ks[18], (), dtype=jnp.float32),
        "ln2_b": 0.1 * jax.random.normal(ks[19], (), dtype=jnp.float32),
    }

    x = jax.random.normal(ks[20], (batch, seq, d_model), dtype=jnp.float32)
    enc = jax.random.normal(ks[21], (batch, seq_enc, d_model), dtype=jnp.float32)
    # Masks accepted for API parity (no effect — see note in decoder_block).
    mask1 = jnp.tril(jnp.ones((seq, seq), jnp.int32))[None, None]
    mask2 = jnp.ones((1, 1, seq, seq_enc), jnp.int32)

    with jax.default_matmul_precision("highest"):
        ref = decoder_block_ref(x, enc, params, n_heads=n_heads)

    # f32 matmul operands (default) — tight check.
    out = decoder_block(x, enc, mask1, mask2, params, n_heads=n_heads)
    out = jax.block_until_ready(out)
    assert out.shape == (batch, seq, d_model)
    max_err = float(jnp.max(jnp.abs(out - ref)))
    assert jnp.allclose(out, ref, atol=2e-3, rtol=2e-3), \
        f"f32 mismatch vs reference, max |err|={max_err}"

    # bf16 matmul operands (v6e-oriented) with f32 accumulation — looser check.
    out_bf = decoder_block(x, enc, mask1, mask2, params, n_heads=n_heads,
                           compute_dtype=jnp.bfloat16)
    out_bf = jax.block_until_ready(out_bf)
    max_err_bf = float(jnp.max(jnp.abs(out_bf - ref)))
    assert jnp.allclose(out_bf, ref, atol=3e-2, rtol=3e-2), \
        f"bf16 mismatch vs reference, max |err|={max_err_bf}"

    print("KERNEL_OK")
</pallas_src>

<mosaic_0001>
module attributes {stable_mosaic.version = 11 : i64} {
  func.func @_decoder_block_kernel(%arg0: i32, %arg1: memref<2x16x128xf32, #tpu.memory_space<vmem>>, %arg2: memref<2x16x128xf32, #tpu.memory_space<vmem>>, %arg3: memref<4x128x32xf32, #tpu.memory_space<vmem>>, %arg4: memref<4x128x32xf32, #tpu.memory_space<vmem>>, %arg5: memref<4x128x32xf32, #tpu.memory_space<vmem>>, %arg6: memref<4x32x128xf32, #tpu.memory_space<vmem>>, %arg7: memref<1x128xf32, #tpu.memory_space<vmem>>, %arg8: memref<4x128x32xf32, #tpu.memory_space<vmem>>, %arg9: memref<4x128x32xf32, #tpu.memory_space<vmem>>, %arg10: memref<4x128x32xf32, #tpu.memory_space<vmem>>, %arg11: memref<4x32x128xf32, #tpu.memory_space<vmem>>, %arg12: memref<1x128xf32, #tpu.memory_space<vmem>>, %arg13: memref<128x256xf32, #tpu.memory_space<vmem>>, %arg14: memref<1x256xf32, #tpu.memory_space<vmem>>, %arg15: memref<256x128xf32, #tpu.memory_space<vmem>>, %arg16: memref<1x128xf32, #tpu.memory_space<vmem>>, %arg17: memref<6xf32, #tpu.memory_space<smem>>, %arg18: memref<2x16x128xf32, #tpu.memory_space<vmem>>) attributes {dimension_semantics = [#tpu.dimension_semantics<parallel>], iteration_bounds = array<i64: 1>, scalar_prefetch = 0 : i64, scratch_operands = 0 : i64, tpu.core_type = #tpu.core_type<tc>, window_params = [{transform_indices = @transform_0, window_bounds = array<i64: 2, 16, 128>}, {transform_indices = @transform_1, window_bounds = array<i64: 2, 16, 128>}, {pipeline_mode = #tpu.pipeline_mode<synchronous>, transform_indices = @transform_2, window_bounds = array<i64: 4, 128, 32>}, {pipeline_mode = #tpu.pipeline_mode<synchronous>, transform_indices = @transform_3, window_bounds = array<i64: 4, 128, 32>}, {pipeline_mode = #tpu.pipeline_mode<synchronous>, transform_indices = @transform_4, window_bounds = array<i64: 4, 128, 32>}, {pipeline_mode = #tpu.pipeline_mode<synchronous>, transform_indices = @transform_5, window_bounds = array<i64: 4, 32, 128>}, {pipeline_mode = #tpu.pipeline_mode<synchronous>, transform_indices = @transform_6, window_bounds = array<i64: 1, 128>}, {pipeline_mode = #tpu.pipeline_mode<synchronous>, transform_indices = @transform_7, window_bounds = array<i64: 4, 128, 32>}, {pipeline_mode = #tpu.pipeline_mode<synchronous>, transform_indices = @transform_8, window_bounds = array<i64: 4, 128, 32>}, {pipeline_mode = #tpu.pipeline_mode<synchronous>, transform_indices = @transform_9, window_bounds = array<i64: 4, 128, 32>}, {pipeline_mode = #tpu.pipeline_mode<synchronous>, transform_indices = @transform_10, window_bounds = array<i64: 4, 32, 128>}, {pipeline_mode = #tpu.pipeline_mode<synchronous>, transform_indices = @transform_11, window_bounds = array<i64: 1, 128>}, {pipeline_mode = #tpu.pipeline_mode<synchronous>, transform_indices = @transform_12, window_bounds = array<i64: 128, 256>}, {pipeline_mode = #tpu.pipeline_mode<synchronous>, transform_indices = @transform_13, window_bounds = array<i64: 1, 256>}, {pipeline_mode = #tpu.pipeline_mode<synchronous>, transform_indices = @transform_14, window_bounds = array<i64: 256, 128>}, {pipeline_mode = #tpu.pipeline_mode<synchronous>, transform_indices = @transform_15, window_bounds = array<i64: 1, 128>}, {transform_indices = @transform_16, window_bounds = array<i64: 6>}, {transform_indices = @transform_17, window_bounds = array<i64: 2, 16, 128>}]} {
    %c0 = arith.constant 0 : index
    %c0_0 = arith.constant 0 : index
    %c0_1 = arith.constant 0 : index
    %0 = vector.load %arg1[%c0, %c0_0, %c0_1] : memref<2x16x128xf32, #tpu.memory_space<vmem>>, vector<2x16x128xf32>
    %1 = vector.shape_cast %0 : vector<2x16x128xf32> to vector<32x128xf32>
    %c0_2 = arith.constant 0 : index
    %c0_3 = arith.constant 0 : index
    %c0_4 = arith.constant 0 : index
    %2 = vector.load %arg2[%c0_2, %c0_3, %c0_4] : memref<2x16x128xf32, #tpu.memory_space<vmem>>, vector<2x16x128xf32>
    %3 = vector.shape_cast %2 : vector<2x16x128xf32> to vector<32x128xf32>
    %c0_5 = arith.constant 0 : index
    %4 = memref.load %arg17[%c0_5] : memref<6xf32, #tpu.memory_space<smem>>
    %c1 = arith.constant 1 : index
    %5 = memref.load %arg17[%c1] : memref<6xf32, #tpu.memory_space<smem>>
    %cst = arith.constant dense<0.000000e+00> : vector<32xf32>
    %6 = vector.multi_reduction <add>, %1, %cst [1] : vector<32x128xf32> to vector<32xf32>
    %7 = vector.shape_cast %6 : vector<32xf32> to vector<32x1xf32>
    %cst_6 = arith.constant 1.280000e+02 : f32
    %8 = vector.broadcast %cst_6 : f32 to vector<32x1xf32>
    %9 = arith.divf %7, %8 : vector<32x1xf32>
    %10 = vector.broadcast %9 : vector<32x1xf32> to vector<32x128xf32>
    %11 = arith.subf %1, %10 : vector<32x128xf32>
    %12 = arith.mulf %11, %11 : vector<32x128xf32>
    %cst_7 = arith.constant dense<0.000000e+00> : vector<32xf32>
    %13 = vector.multi_reduction <add>, %12, %cst_7 [1] : vector<32x128xf32> to vector<32xf32>
    %14 = vector.shape_cast %13 : vector<32xf32> to vector<32x1xf32>
    %cst_8 = arith.constant 0.00787401571 : f32
    %15 = vector.broadcast %cst_8 : f32 to vector<32x1xf32>
    %16 = arith.mulf %14, %15 : vector<32x1xf32>
    %17 = vector.broadcast %4 : f32 to vector<32x128xf32>
    %18 = arith.mulf %17, %11 : vector<32x128xf32>
    %cst_9 = arith.constant 9.99999974E-6 : f32
    %19 = vector.broadcast %cst_9 : f32 to vector<32x1xf32>
    %20 = arith.addf %16, %19 : vector<32x1xf32>
    %21 = math.rsqrt %20 : vector<32x1xf32>
    %22 = vector.broadcast %21 : vector<32x1xf32> to vector<32x128xf32>
    %23 = arith.mulf %18, %22 : vector<32x128xf32>
    %24 = vector.broadcast %5 : f32 to vector<32x128xf32>
    %25 = arith.addf %23, %24 : vector<32x128xf32>
    %c0_10 = arith.constant 0 : index
    %c0_11 = arith.constant 0 : index
    %26 = vector.load %arg7[%c0_10, %c0_11] : memref<1x128xf32, #tpu.memory_space<vmem>>, vector<1x128xf32>
    %27 = vector.shape_cast %26 : vector<1x128xf32> to vector<1x128xf32>
    %28 = vector.broadcast %27 : vector<1x128xf32> to vector<32x128xf32>
    %c0_12 = arith.constant 0 : index
    %c0_13 = arith.constant 0 : index
    %c0_14 = arith.constant 0 : index
    %29 = vector.load %arg3[%c0_12, %c0_13, %c0_14] : memref<4x128x32xf32, #tpu.memory_space<vmem>>, vector<1x128x32xf32>
    %30 = vector.shape_cast %29 : vector<1x128x32xf32> to vector<128x32xf32>
    %cst_15 = arith.constant dense<0.000000e+00> : vector<32x32xf32>
    %31 = tpu.matmul %25, %30, %cst_15 {dimension_numbers = #tpu.dot_dimension_numbers<[1], [0], [0], [1], [0, 0, 1, 1], [], []>} : vector<32x128xf32>, vector<128x32xf32>, vector<32x32xf32> -> vector<32x32xf32>
    %c0_16 = arith.constant 0 : index
    %c0_17 = arith.constant 0 : index
    %c0_18 = arith.constant 0 : index
    %32 = vector.load %arg4[%c0_16, %c0_17, %c0_18] : memref<4x128x32xf32, #tpu.memory_space<vmem>>, vector<1x128x32xf32>
    %33 = vector.shape_cast %32 : vector<1x128x32xf32> to vector<128x32xf32>
    %cst_19 = arith.constant dense<0.000000e+00> : vector<32x32xf32>
    %34 = tpu.matmul %25, %33, %cst_19 {dimension_numbers = #tpu.dot_dimension_numbers<[1], [0], [0], [1], [0, 0, 1, 1], [], []>} : vector<32x128xf32>, vector<128x32xf32>, vector<32x32xf32> -> vector<32x32xf32>
    %c0_20 = arith.constant 0 : index
    %c0_21 = arith.constant 0 : index
    %c0_22 = arith.constant 0 : index
    %35 = vector.load %arg5[%c0_20, %c0_21, %c0_22] : memref<4x128x32xf32, #tpu.memory_space<vmem>>, vector<1x128x32xf32>
    %36 = vector.shape_cast %35 : vector<1x128x32xf32> to vector<128x32xf32>
    %cst_23 = arith.constant dense<0.000000e+00> : vector<32x32xf32>
    %37 = tpu.matmul %25, %36, %cst_23 {dimension_numbers = #tpu.dot_dimension_numbers<[1], [0], [0], [1], [0, 0, 1, 1], [], []>} : vector<32x128xf32>, vector<128x32xf32>, vector<32x32xf32> -> vector<32x32xf32>
    %38 = vector.extract_strided_slice %31 {offsets = [0, 0], sizes = [16, 32], strides = [1, 1]} : vector<32x32xf32> to vector<16x32xf32>
    %39 = vector.extract_strided_slice %34 {offsets = [0, 0], sizes = [16, 32], strides = [1, 1]} : vector<32x32xf32> to vector<16x32xf32>
    %40 = vector.extract_strided_slice %37 {offsets = [0, 0], sizes = [16, 32], strides = [1, 1]} : vector<32x32xf32> to vector<16x32xf32>
    %cst_24 = arith.constant dense<0.000000e+00> : vector<16x16xf32>
    %41 = tpu.matmul %38, %39, %cst_24 {dimension_numbers = #tpu.dot_dimension_numbers<[1], [1], [0], [0], [0, 0, 1, 0], [], []>} : vector<16x32xf32>, vector<16x32xf32>, vector<16x16xf32> -> vector<16x16xf32>
    %cst_25 = arith.constant 0.176776692 : f32
    %42 = vector.broadcast %cst_25 : f32 to vector<16x16xf32>
    %43 = arith.mulf %41, %42 : vector<16x16xf32>
    %cst_26 = arith.constant dense<0xFF800000> : vector<16xf32>
    %44 = vector.multi_reduction <maximumf>, %43, %cst_26 [1] : vector<16x16xf32> to vector<16xf32>
    %45 = vector.shape_cast %44 : vector<16xf32> to vector<16x1xf32>
    %46 = vector.broadcast %45 : vector<16x1xf32> to vector<16x16xf32>
    %47 = arith.subf %43, %46 : vector<16x16xf32>
    %48 = math.exp %47 : vector<16x16xf32>
    %cst_27 = arith.constant dense<0.000000e+00> : vector<16xf32>
    %49 = vector.multi_reduction <add>, %48, %cst_27 [1] : vector<16x16xf32> to vector<16xf32>
    %50 = vector.shape_cast %49 : vector<16xf32> to vector<16x1xf32>
    %cst_28 = arith.constant dense<0.000000e+00> : vector<16x32xf32>
    %51 = tpu.matmul %48, %40, %cst_28 {dimension_numbers = #tpu.dot_dimension_numbers<[1], [0], [0], [1], [0, 0, 1, 1], [], []>} : vector<16x16xf32>, vector<16x32xf32>, vector<16x32xf32> -> vector<16x32xf32>
    %52 = tpu.reciprocal %50 {approx = true} : vector<16x1xf32> -> vector<16x1xf32>
    %53 = vector.broadcast %52 : vector<16x1xf32> to vector<16x32xf32>
    %54 = arith.mulf %51, %53 : vector<16x32xf32>
    %55 = vector.extract_strided_slice %31 {offsets = [16, 0], sizes = [16, 32], strides = [1, 1]} : vector<32x32xf32> to vector<16x32xf32>
    %56 = vector.extract_strided_slice %34 {offsets = [16, 0], sizes = [16, 32], strides = [1, 1]} : vector<32x32xf32> to vector<16x32xf32>
    %57 = vector.extract_strided_slice %37 {offsets = [16, 0], sizes = [16, 32], strides = [1, 1]} : vector<32x32xf32> to vector<16x32xf32>
    %cst_29 = arith.constant dense<0.000000e+00> : vector<16x16xf32>
    %58 = tpu.matmul %55, %56, %cst_29 {dimension_numbers = #tpu.dot_dimension_numbers<[1], [1], [0], [0], [0, 0, 1, 0], [], []>} : vector<16x32xf32>, vector<16x32xf32>, vector<16x16xf32> -> vector<16x16xf32>
    %cst_30 = arith.constant 0.176776692 : f32
    %59 = vector.broadcast %cst_30 : f32 to vector<16x16xf32>
    %60 = arith.mulf %58, %59 : vector<16x16xf32>
    %cst_31 = arith.constant dense<0xFF800000> : vector<16xf32>
    %61 = vector.multi_reduction <maximumf>, %60, %cst_31 [1] : vector<16x16xf32> to vector<16xf32>
    %62 = vector.shape_cast %61 : vector<16xf32> to vector<16x1xf32>
    %63 = vector.broadcast %62 : vector<16x1xf32> to vector<16x16xf32>
    %64 = arith.subf %60, %63 : vector<16x16xf32>
    %65 = math.exp %64 : vector<16x16xf32>
    %cst_32 = arith.constant dense<0.000000e+00> : vector<16xf32>
    %66 = vector.multi_reduction <add>, %65, %cst_32 [1] : vector<16x16xf32> to vector<16xf32>
    %67 = vector.shape_cast %66 : vector<16xf32> to vector<16x1xf32>
    %cst_33 = arith.constant dense<0.000000e+00> : vector<16x32xf32>
    %68 = tpu.matmul %65, %57, %cst_33 {dimension_numbers = #tpu.dot_dimension_numbers<[1], [0], [0], [1], [0, 0, 1, 1], [], []>} : vector<16x16xf32>, vector<16x32xf32>, vector<16x32xf32> -> vector<16x32xf32>
    %69 = tpu.reciprocal %67 {approx = true} : vector<16x1xf32> -> vector<16x1xf32>
    %70 = vector.broadcast %69 : vector<16x1xf32> to vector<16x32xf32>
    %71 = arith.mulf %68, %70 : vector<16x32xf32>
    %72 = tpu.concatenate %54, %71 in 0 : vector<16x32xf32>, vector<16x32xf32> -> vector<32x32xf32>
    %c0_34 = arith.constant 0 : index
    %c0_35 = arith.constant 0 : index
    %c0_36 = arith.constant 0 : index
    %73 = vector.load %arg6[%c0_34, %c0_35, %c0_36] : memref<4x32x128xf32, #tpu.memory_space<vmem>>, vector<1x32x128xf32>
    %74 = vector.shape_cast %73 : vector<1x32x128xf32> to vector<32x128xf32>
    %cst_37 = arith.constant dense<0.000000e+00> : vector<32x128xf32>
    %75 = tpu.matmul %72, %74, %cst_37 {dimension_numbers = #tpu.dot_dimension_numbers<[1], [0], [0], [1], [0, 0, 1, 1], [], []>} : vector<32x32xf32>, vector<32x128xf32>, vector<32x128xf32> -> vector<32x128xf32>
    %76 = arith.addf %28, %75 : vector<32x128xf32>
    %c1_38 = arith.constant 1 : index
    %c0_39 = arith.constant 0 : index
    %c0_40 = arith.constant 0 : index
    %77 = vector.load %arg3[%c1_38, %c0_39, %c0_40] : memref<4x128x32xf32, #tpu.memory_space<vmem>>, vector<1x128x32xf32>
    %78 = vector.shape_cast %77 : vector<1x128x32xf32> to vector<128x32xf32>
    %cst_41 = arith.constant dense<0.000000e+00> : vector<32x32xf32>
    %79 = tpu.matmul %25, %78, %cst_41 {dimension_numbers = #tpu.dot_dimension_numbers<[1], [0], [0], [1], [0, 0, 1, 1], [], []>} : vector<32x128xf32>, vector<128x32xf32>, vector<32x32xf32> -> vector<32x32xf32>
    %c1_42 = arith.constant 1 : index
    %c0_43 = arith.constant 0 : index
    %c0_44 = arith.constant 0 : index
    %80 = vector.load %arg4[%c1_42, %c0_43, %c0_44] : memref<4x128x32xf32, #tpu.memory_space<vmem>>, vector<1x128x32xf32>
    %81 = vector.shape_cast %80 : vector<1x128x32xf32> to vector<128x32xf32>
    %cst_45 = arith.constant dense<0.000000e+00> : vector<32x32xf32>
    %82 = tpu.matmul %25, %81, %cst_45 {dimension_numbers = #tpu.dot_dimension_numbers<[1], [0], [0], [1], [0, 0, 1, 1], [], []>} : vector<32x128xf32>, vector<128x32xf32>, vector<32x32xf32> -> vector<32x32xf32>
    %c1_46 = arith.constant 1 : index
    %c0_47 = arith.constant 0 : index
    %c0_48 = arith.constant 0 : index
    %83 = vector.load %arg5[%c1_46, %c0_47, %c0_48] : memref<4x128x32xf32, #tpu.memory_space<vmem>>, vector<1x128x32xf32>
    %84 = vector.shape_cast %83 : vector<1x128x32xf32> to vector<128x32xf32>
    %cst_49 = arith.constant dense<0.000000e+00> : vector<32x32xf32>
    %85 = tpu.matmul %25, %84, %cst_49 {dimension_numbers = #tpu.dot_dimension_numbers<[1], [0], [0], [1], [0, 0, 1, 1], [], []>} : vector<32x128xf32>, vector<128x32xf32>, vector<32x32xf32> -> vector<32x32xf32>
    %86 = vector.extract_strided_slice %79 {offsets = [0, 0], sizes = [16, 32], strides = [1, 1]} : vector<32x32xf32> to vector<16x32xf32>
    %87 = vector.extract_strided_slice %82 {offsets = [0, 0], sizes = [16, 32], strides = [1, 1]} : vector<32x32xf32> to vector<16x32xf32>
    %88 = vector.extract_strided_slice %85 {offsets = [0, 0], sizes = [16, 32], strides = [1, 1]} : vector<32x32xf32> to vector<16x32xf32>
    %cst_50 = arith.constant dense<0.000000e+00> : vector<16x16xf32>
    %89 = tpu.matmul %86, %87, %cst_50 {dimension_numbers = #tpu.dot_dimension_numbers<[1], [1], [0], [0], [0, 0, 1, 0], [], []>} : vector<16x32xf32>, vector<16x32xf32>, vector<16x16xf32> -> vector<16x16xf32>
    %cst_51 = arith.constant 0.176776692 : f32
    %90 = vector.broadcast %cst_51 : f32 to vector<16x16xf32>
    %91 = arith.mulf %89, %90 : vector<16x16xf32>
    %cst_52 = arith.constant dense<0xFF800000> : vector<16xf32>
    %92 = vector.multi_reduction <maximumf>, %91, %cst_52 [1] : vector<16x16xf32> to vector<16xf32>
    %93 = vector.shape_cast %92 : vector<16xf32> to vector<16x1xf32>
    %94 = vector.broadcast %93 : vector<16x1xf32> to vector<16x16xf32>
    %95 = arith.subf %91, %94 : vector<16x16xf32>
    %96 = math.exp %95 : vector<16x16xf32>
    %cst_53 = arith.constant dense<0.000000e+00> : vector<16xf32>
    %97 = vector.multi_reduction <add>, %96, %cst_53 [1] : vector<16x16xf32> to vector<16xf32>
    %98 = vector.shape_cast %97 : vector<16xf32> to vector<16x1xf32>
    %cst_54 = arith.constant dense<0.000000e+00> : vector<16x32xf32>
    %99 = tpu.matmul %96, %88, %cst_54 {dimension_numbers = #tpu.dot_dimension_numbers<[1], [0], [0], [1], [0, 0, 1, 1], [], []>} : vector<16x16xf32>, vector<16x32xf32>, vector<16x32xf32> -> vector<16x32xf32>
    %100 = tpu.reciprocal %98 {approx = true} : vector<16x1xf32> -> vector<16x1xf32>
    %101 = vector.broadcast %100 : vector<16x1xf32> to vector<16x32xf32>
    %102 = arith.mulf %99, %101 : vector<16x32xf32>
    %103 = vector.extract_strided_slice %79 {offsets = [16, 0], sizes = [16, 32], strides = [1, 1]} : vector<32x32xf32> to vector<16x32xf32>
    %104 = vector.extract_strided_slice %82 {offsets = [16, 0], sizes = [16, 32], strides = [1, 1]} : vector<32x32xf32> to vector<16x32xf32>
    %105 = vector.extract_strided_slice %85 {offsets = [16, 0], sizes = [16, 32], strides = [1, 1]} : vector<32x32xf32> to vector<16x32xf32>
    %cst_55 = arith.constant dense<0.000000e+00> : vector<16x16xf32>
    %106 = tpu.matmul %103, %104, %cst_55 {dimension_numbers = #tpu.dot_dimension_numbers<[1], [1], [0], [0], [0, 0, 1, 0], [], []>} : vector<16x32xf32>, vector<16x32xf32>, vector<16x16xf32> -> vector<16x16xf32>
    %cst_56 = arith.constant 0.176776692 : f32
    %107 = vector.broadcast %cst_56 : f32 to vector<16x16xf32>
    %108 = arith.mulf %106, %107 : vector<16x16xf32>
    %cst_57 = arith.constant dense<0xFF800000> : vector<16xf32>
    %109 = vector.multi_reduction <maximumf>, %108, %cst_57 [1] : vector<16x16xf32> to vector<16xf32>
    %110 = vector.shape_cast %109 : vector<16xf32> to vector<16x1xf32>
    %111 = vector.broadcast %110 : vector<16x1xf32> to vector<16x16xf32>
    %112 = arith.subf %108, %111 : vector<16x16xf32>
    %113 = math.exp %112 : vector<16x16xf32>
    %cst_58 = arith.constant dense<0.000000e+00> : vector<16xf32>
    %114 = vector.multi_reduction <add>, %113, %cst_58 [1] : vector<16x16xf32> to vector<16xf32>
    %115 = vector.shape_cast %114 : vector<16xf32> to vector<16x1xf32>
    %cst_59 = arith.constant dense<0.000000e+00> : vector<16x32xf32>
    %116 = tpu.matmul %113, %105, %cst_59 {dimension_numbers = #tpu.dot_dimension_numbers<[1], [0], [0], [1], [0, 0, 1, 1], [], []>} : vector<16x16xf32>, vector<16x32xf32>, vector<16x32xf32> -> vector<16x32xf32>
    %117 = tpu.reciprocal %115 {approx = true} : vector<16x1xf32> -> vector<16x1xf32>
    %118 = vector.broadcast %117 : vector<16x1xf32> to vector<16x32xf32>
    %119 = arith.mulf %116, %118 : vector<16x32xf32>
    %120 = tpu.concatenate %102, %119 in 0 : vector<16x32xf32>, vector<16x32xf32> -> vector<32x32xf32>
    %c1_60 = arith.constant 1 : index
    %c0_61 = arith.constant 0 : index
    %c0_62 = arith.constant 0 : index
    %121 = vector.load %arg6[%c1_60, %c0_61, %c0_62] : memref<4x32x128xf32, #tpu.memory_space<vmem>>, vector<1x32x128xf32>
    %122 = vector.shape_cast %121 : vector<1x32x128xf32> to vector<32x128xf32>
    %cst_63 = arith.constant dense<0.000000e+00> : vector<32x128xf32>
    %123 = tpu.matmul %120, %122, %cst_63 {dimension_numbers = #tpu.dot_dimension_numbers<[1], [0], [0], [1], [0, 0, 1, 1], [], []>} : vector<32x32xf32>, vector<32x128xf32>, vector<32x128xf32> -> vector<32x128xf32>
    %124 = arith.addf %76, %123 : vector<32x128xf32>
    %c2 = arith.constant 2 : index
    %c0_64 = arith.constant 0 : index
    %c0_65 = arith.constant 0 : index
    %125 = vector.load %arg3[%c2, %c0_64, %c0_65] : memref<4x128x32xf32, #tpu.memory_space<vmem>>, vector<1x128x32xf32>
    %126 = vector.shape_cast %125 : vector<1x128x32xf32> to vector<128x32xf32>
    %cst_66 = arith.constant dense<0.000000e+00> : vector<32x32xf32>
    %127 = tpu.matmul %25, %126, %cst_66 {dimension_numbers = #tpu.dot_dimension_numbers<[1], [0], [0], [1], [0, 0, 1, 1], [], []>} : vector<32x128xf32>, vector<128x32xf32>, vector<32x32xf32> -> vector<32x32xf32>
    %c2_67 = arith.constant 2 : index
    %c0_68 = arith.constant 0 : index
    %c0_69 = arith.constant 0 : index
    %128 = vector.load %arg4[%c2_67, %c0_68, %c0_69] : memref<4x128x32xf32, #tpu.memory_space<vmem>>, vector<1x128x32xf32>
    %129 = vector.shape_cast %128 : vector<1x128x32xf32> to vector<128x32xf32>
    %cst_70 = arith.constant dense<0.000000e+00> : vector<32x32xf32>
    %130 = tpu.matmul %25, %129, %cst_70 {dimension_numbers = #tpu.dot_dimension_numbers<[1], [0], [0], [1], [0, 0, 1, 1], [], []>} : vector<32x128xf32>, vector<128x32xf32>, vector<32x32xf32> -> vector<32x32xf32>
    %c2_71 = arith.constant 2 : index
    %c0_72 = arith.constant 0 : index
    %c0_73 = arith.constant 0 : index
    %131 = vector.load %arg5[%c2_71, %c0_72, %c0_73] : memref<4x128x32xf32, #tpu.memory_space<vmem>>, vector<1x128x32xf32>
    %132 = vector.shape_cast %131 : vector<1x128x32xf32> to vector<128x32xf32>
    %cst_74 = arith.constant dense<0.000000e+00> : vector<32x32xf32>
    %133 = tpu.matmul %25, %132, %cst_74 {dimension_numbers = #tpu.dot_dimension_numbers<[1], [0], [0], [1], [0, 0, 1, 1], [], []>} : vector<32x128xf32>, vector<128x32xf32>, vector<32x32xf32> -> vector<32x32xf32>
    %134 = vector.extract_strided_slice %127 {offsets = [0, 0], sizes = [16, 32], strides = [1, 1]} : vector<32x32xf32> to vector<16x32xf32>
    %135 = vector.extract_strided_slice %130 {offsets = [0, 0], sizes = [16, 32], strides = [1, 1]} : vector<32x32xf32> to vector<16x32xf32>
    %136 = vector.extract_strided_slice %133 {offsets = [0, 0], sizes = [16, 32], strides = [1, 1]} : vector<32x32xf32> to vector<16x32xf32>
    %cst_75 = arith.constant dense<0.000000e+00> : vector<16x16xf32>
    %137 = tpu.matmul %134, %135, %cst_75 {dimension_numbers = #tpu.dot_dimension_numbers<[1], [1], [0], [0], [0, 0, 1, 0], [], []>} : vector<16x32xf32>, vector<16x32xf32>, vector<16x16xf32> -> vector<16x16xf32>
    %cst_76 = arith.constant 0.176776692 : f32
    %138 = vector.broadcast %cst_76 : f32 to vector<16x16xf32>
    %139 = arith.mulf %137, %138 : vector<16x16xf32>
    %cst_77 = arith.constant dense<0xFF800000> : vector<16xf32>
    %140 = vector.multi_reduction <maximumf>, %139, %cst_77 [1] : vector<16x16xf32> to vector<16xf32>
    %141 = vector.shape_cast %140 : vector<16xf32> to vector<16x1xf32>
    %142 = vector.broadcast %141 : vector<16x1xf32> to vector<16x16xf32>
    %143 = arith.subf %139, %142 : vector<16x16xf32>
    %144 = math.exp %143 : vector<16x16xf32>
    %cst_78 = arith.constant dense<0.000000e+00> : vector<16xf32>
    %145 = vector.multi_reduction <add>, %144, %cst_78 [1] : vector<16x16xf32> to vector<16xf32>
    %146 = vector.shape_cast %145 : vector<16xf32> to vector<16x1xf32>
    %cst_79 = arith.constant dense<0.000000e+00> : vector<16x32xf32>
    %147 = tpu.matmul %144, %136, %cst_79 {dimension_numbers = #tpu.dot_dimension_numbers<[1], [0], [0], [1], [0, 0, 1, 1], [], []>} : vector<16x16xf32>, vector<16x32xf32>, vector<16x32xf32> -> vector<16x32xf32>
    %148 = tpu.reciprocal %146 {approx = true} : vector<16x1xf32> -> vector<16x1xf32>
    %149 = vector.broadcast %148 : vector<16x1xf32> to vector<16x32xf32>
    %150 = arith.mulf %147, %149 : vector<16x32xf32>
    %151 = vector.extract_strided_slice %127 {offsets = [16, 0], sizes = [16, 32], strides = [1, 1]} : vector<32x32xf32> to vector<16x32xf32>
    %152 = vector.extract_strided_slice %130 {offsets = [16, 0], sizes = [16, 32], strides = [1, 1]} : vector<32x32xf32> to vector<16x32xf32>
    %153 = vector.extract_strided_slice %133 {offsets = [16, 0], sizes = [16, 32], strides = [1, 1]} : vector<32x32xf32> to vector<16x32xf32>
    %cst_80 = arith.constant dense<0.000000e+00> : vector<16x16xf32>
    %154 = tpu.matmul %151, %152, %cst_80 {dimension_numbers = #tpu.dot_dimension_numbers<[1], [1], [0], [0], [0, 0, 1, 0], [], []>} : vector<16x32xf32>, vector<16x32xf32>, vector<16x16xf32> -> vector<16x16xf32>
    %cst_81 = arith.constant 0.176776692 : f32
    %155 = vector.broadcast %cst_81 : f32 to vector<16x16xf32>
    %156 = arith.mulf %154, %155 : vector<16x16xf32>
    %cst_82 = arith.constant dense<0xFF800000> : vector<16xf32>
    %157 = vector.multi_reduction <maximumf>, %156, %cst_82 [1] : vector<16x16xf32> to vector<16xf32>
    %158 = vector.shape_cast %157 : vector<16xf32> to vector<16x1xf32>
    %159 = vector.broadcast %158 : vector<16x1xf32> to vector<16x16xf32>
    %160 = arith.subf %156, %159 : vector<16x16xf32>
    %161 = math.exp %160 : vector<16x16xf32>
    %cst_83 = arith.constant dense<0.000000e+00> : vector<16xf32>
    %162 = vector.multi_reduction <add>, %161, %cst_83 [1] : vector<16x16xf32> to vector<16xf32>
    %163 = vector.shape_cast %162 : vector<16xf32> to vector<16x1xf32>
    %cst_84 = arith.constant dense<0.000000e+00> : vector<16x32xf32>
    %164 = tpu.matmul %161, %153, %cst_84 {dimension_numbers = #tpu.dot_dimension_numbers<[1], [0], [0], [1], [0, 0, 1, 1], [], []>} : vector<16x16xf32>, vector<16x32xf32>, vector<16x32xf32> -> vector<16x32xf32>
    %165 = tpu.reciprocal %163 {approx = true} : vector<16x1xf32> -> vector<16x1xf32>
    %166 = vector.broadcast %165 : vector<16x1xf32> to vector<16x32xf32>
    %167 = arith.mulf %164, %166 : vector<16x32xf32>
    %168 = tpu.concatenate %150, %167 in 0 : vector<16x32xf32>, vector<16x32xf32> -> vector<32x32xf32>
    %c2_85 = arith.constant 2 : index
    %c0_86 = arith.constant 0 : index
    %c0_87 = arith.constant 0 : index
    %169 = vector.load %arg6[%c2_85, %c0_86, %c0_87] : memref<4x32x128xf32, #tpu.memory_space<vmem>>, vector<1x32x128xf32>
    %170 = vector.shape_cast %169 : vector<1x32x128xf32> to vector<32x128xf32>
    %cst_88 = arith.constant dense<0.000000e+00> : vector<32x128xf32>
    %171 = tpu.matmul %168, %170, %cst_88 {dimension_numbers = #tpu.dot_dimension_numbers<[1], [0], [0], [1], [0, 0, 1, 1], [], []>} : vector<32x32xf32>, vector<32x128xf32>, vector<32x128xf32> -> vector<32x128xf32>
    %172 = arith.addf %124, %171 : vector<32x128xf32>
    %c3 = arith.constant 3 : index
    %c0_89 = arith.constant 0 : index
    %c0_90 = arith.constant 0 : index
    %173 = vector.load %arg3[%c3, %c0_89, %c0_90] : memref<4x128x32xf32, #tpu.memory_space<vmem>>, vector<1x128x32xf32>
    %174 = vector.shape_cast %173 : vector<1x128x32xf32> to vector<128x32xf32>
    %cst_91 = arith.constant dense<0.000000e+00> : vector<32x32xf32>
    %175 = tpu.matmul %25, %174, %cst_91 {dimension_numbers = #tpu.dot_dimension_numbers<[1], [0], [0], [1], [0, 0, 1, 1], [], []>} : vector<32x128xf32>, vector<128x32xf32>, vector<32x32xf32> -> vector<32x32xf32>
    %c3_92 = arith.constant 3 : index
    %c0_93 = arith.constant 0 : index
    %c0_94 = arith.constant 0 : index
    %176 = vector.load %arg4[%c3_92, %c0_93, %c0_94] : memref<4x128x32xf32, #tpu.memory_space<vmem>>, vector<1x128x32xf32>
    %177 = vector.shape_cast %176 : vector<1x128x32xf32> to vector<128x32xf32>
    %cst_95 = arith.constant dense<0.000000e+00> : vector<32x32xf32>
    %178 = tpu.matmul %25, %177, %cst_95 {dimension_numbers = #tpu.dot_dimension_numbers<[1], [0], [0], [1], [0, 0, 1, 1], [], []>} : vector<32x128xf32>, vector<128x32xf32>, vector<32x32xf32> -> vector<32x32xf32>
    %c3_96 = arith.constant 3 : index
    %c0_97 = arith.constant 0 : index
    %c0_98 = arith.constant 0 : index
    %179 = vector.load %arg5[%c3_96, %c0_97, %c0_98] : memref<4x128x32xf32, #tpu.memory_space<vmem>>, vector<1x128x32xf32>
    %180 = vector.shape_cast %179 : vector<1x128x32xf32> to vector<128x32xf32>
    %cst_99 = arith.constant dense<0.000000e+00> : vector<32x32xf32>
    %181 = tpu.matmul %25, %180, %cst_99 {dimension_numbers = #tpu.dot_dimension_numbers<[1], [0], [0], [1], [0, 0, 1, 1], [], []>} : vector<32x128xf32>, vector<128x32xf32>, vector<32x32xf32> -> vector<32x32xf32>
    %182 = vector.extract_strided_slice %175 {offsets = [0, 0], sizes = [16, 32], strides = [1, 1]} : vector<32x32xf32> to vector<16x32xf32>
    %183 = vector.extract_strided_slice %178 {offsets = [0, 0], sizes = [16, 32], strides = [1, 1]} : vector<32x32xf32> to vector<16x32xf32>
    %184 = vector.extract_strided_slice %181 {offsets = [0, 0], sizes = [16, 32], strides = [1, 1]} : vector<32x32xf32> to vector<16x32xf32>
    %cst_100 = arith.constant dense<0.000000e+00> : vector<16x16xf32>
    %185 = tpu.matmul %182, %183, %cst_100 {dimension_numbers = #tpu.dot_dimension_numbers<[1], [1], [0], [0], [0, 0, 1, 0], [], []>} : vector<16x32xf32>, vector<16x32xf32>, vector<16x16xf32> -> vector<16x16xf32>
    %cst_101 = arith.constant 0.176776692 : f32
    %186 = vector.broadcast %cst_101 : f32 to vector<16x16xf32>
    %187 = arith.mulf %185, %186 : vector<16x16xf32>
    %cst_102 = arith.constant dense<0xFF800000> : vector<16xf32>
    %188 = vector.multi_reduction <maximumf>, %187, %cst_102 [1] : vector<16x16xf32> to vector<16xf32>
    %189 = vector.shape_cast %188 : vector<16xf32> to vector<16x1xf32>
    %190 = vector.broadcast %189 : vector<16x1xf32> to vector<16x16xf32>
    %191 = arith.subf %187, %190 : vector<16x16xf32>
    %192 = math.exp %191 : vector<16x16xf32>
    %cst_103 = arith.constant dense<0.000000e+00> : vector<16xf32>
    %193 = vector.multi_reduction <add>, %192, %cst_103 [1] : vector<16x16xf32> to vector<16xf32>
    %194 = vector.shape_cast %193 : vector<16xf32> to vector<16x1xf32>
    %cst_104 = arith.constant dense<0.000000e+00> : vector<16x32xf32>
    %195 = tpu.matmul %192, %184, %cst_104 {dimension_numbers = #tpu.dot_dimension_numbers<[1], [0], [0], [1], [0, 0, 1, 1], [], []>} : vector<16x16xf32>, vector<16x32xf32>, vector<16x32xf32> -> vector<16x32xf32>
    %196 = tpu.reciprocal %194 {approx = true} : vector<16x1xf32> -> vector<16x1xf32>
    %197 = vector.broadcast %196 : vector<16x1xf32> to vector<16x32xf32>
    %198 = arith.mulf %195, %197 : vector<16x32xf32>
    %199 = vector.extract_strided_slice %175 {offsets = [16, 0], sizes = [16, 32], strides = [1, 1]} : vector<32x32xf32> to vector<16x32xf32>
    %200 = vector.extract_strided_slice %178 {offsets = [16, 0], sizes = [16, 32], strides = [1, 1]} : vector<32x32xf32> to vector<16x32xf32>
    %201 = vector.extract_strided_slice %181 {offsets = [16, 0], sizes = [16, 32], strides = [1, 1]} : vector<32x32xf32> to vector<16x32xf32>
    %cst_105 = arith.constant dense<0.000000e+00> : vector<16x16xf32>
    %202 = tpu.matmul %199, %200, %cst_105 {dimension_numbers = #tpu.dot_dimension_numbers<[1], [1], [0], [0], [0, 0, 1, 0], [], []>} : vector<16x32xf32>, vector<16x32xf32>, vector<16x16xf32> -> vector<16x16xf32>
    %cst_106 = arith.constant 0.176776692 : f32
    %203 = vector.broadcast %cst_106 : f32 to vector<16x16xf32>
    %204 = arith.mulf %202, %203 : vector<16x16xf32>
    %cst_107 = arith.constant dense<0xFF800000> : vector<16xf32>
    %205 = vector.multi_reduction <maximumf>, %204, %cst_107 [1] : vector<16x16xf32> to vector<16xf32>
    %206 = vector.shape_cast %205 : vector<16xf32> to vector<16x1xf32>
    %207 = vector.broadcast %206 : vector<16x1xf32> to vector<16x16xf32>
    %208 = arith.subf %204, %207 : vector<16x16xf32>
    %209 = math.exp %208 : vector<16x16xf32>
    %cst_108 = arith.constant dense<0.000000e+00> : vector<16xf32>
    %210 = vector.multi_reduction <add>, %209, %cst_108 [1] : vector<16x16xf32> to vector<16xf32>
    %211 = vector.shape_cast %210 : vector<16xf32> to vector<16x1xf32>
    %cst_109 = arith.constant dense<0.000000e+00> : vector<16x32xf32>
    %212 = tpu.matmul %209, %201, %cst_109 {dimension_numbers = #tpu.dot_dimension_numbers<[1], [0], [0], [1], [0, 0, 1, 1], [], []>} : vector<16x16xf32>, vector<16x32xf32>, vector<16x32xf32> -> vector<16x32xf32>
    %213 = tpu.reciprocal %211 {approx = true} : vector<16x1xf32> -> vector<16x1xf32>
    %214 = vector.broadcast %213 : vector<16x1xf32> to vector<16x32xf32>
    %215 = arith.mulf %212, %214 : vector<16x32xf32>
    %216 = tpu.concatenate %198, %215 in 0 : vector<16x32xf32>, vector<16x32xf32> -> vector<32x32xf32>
    %c3_110 = arith.constant 3 : index
    %c0_111 = arith.constant 0 : index
    %c0_112 = arith.constant 0 : index
    %217 = vector.load %arg6[%c3_110, %c0_111, %c0_112] : memref<4x32x128xf32, #tpu.memory_space<vmem>>, vector<1x32x128xf32>
    %218 = vector.shape_cast %217 : vector<1x32x128xf32> to vector<32x128xf32>
    %cst_113 = arith.constant dense<0.000000e+00> : vector<32x128xf32>
    %219 = tpu.matmul %216, %218, %cst_113 {dimension_numbers = #tpu.dot_dimension_numbers<[1], [0], [0], [1], [0, 0, 1, 1], [], []>} : vector<32x32xf32>, vector<32x128xf32>, vector<32x128xf32> -> vector<32x128xf32>
    %220 = arith.addf %172, %219 : vector<32x128xf32>
    %221 = arith.addf %1, %220 : vector<32x128xf32>
    %c2_114 = arith.constant 2 : index
    %222 = memref.load %arg17[%c2_114] : memref<6xf32, #tpu.memory_space<smem>>
    %c3_115 = arith.constant 3 : index
    %223 = memref.load %arg17[%c3_115] : memref<6xf32, #tpu.memory_space<smem>>
    %cst_116 = arith.constant dense<0.000000e+00> : vector<32xf32>
    %224 = vector.multi_reduction <add>, %221, %cst_116 [1] : vector<32x128xf32> to vector<32xf32>
    %225 = vector.shape_cast %224 : vector<32xf32> to vector<32x1xf32>
    %cst_117 = arith.constant 1.280000e+02 : f32
    %226 = vector.broadcast %cst_117 : f32 to vector<32x1xf32>
    %227 = arith.divf %225, %226 : vector<32x1xf32>
    %228 = vector.broadcast %227 : vector<32x1xf32> to vector<32x128xf32>
    %229 = arith.subf %221, %228 : vector<32x128xf32>
    %230 = arith.mulf %229, %229 : vector<32x128xf32>
    %cst_118 = arith.constant dense<0.000000e+00> : vector<32xf32>
    %231 = vector.multi_reduction <add>, %230, %cst_118 [1] : vector<32x128xf32> to vector<32xf32>
    %232 = vector.shape_cast %231 : vector<32xf32> to vector<32x1xf32>
    %cst_119 = arith.constant 0.00787401571 : f32
    %233 = vector.broadcast %cst_119 : f32 to vector<32x1xf32>
    %234 = arith.mulf %232, %233 : vector<32x1xf32>
    %235 = vector.broadcast %222 : f32 to vector<32x128xf32>
    %236 = arith.mulf %235, %229 : vector<32x128xf32>
    %cst_120 = arith.constant 9.99999974E-6 : f32
    %237 = vector.broadcast %cst_120 : f32 to vector<32x1xf32>
    %238 = arith.addf %234, %237 : vector<32x1xf32>
    %239 = math.rsqrt %238 : vector<32x1xf32>
    %240 = vector.broadcast %239 : vector<32x1xf32> to vector<32x128xf32>
    %241 = arith.mulf %236, %240 : vector<32x128xf32>
    %242 = vector.broadcast %223 : f32 to vector<32x128xf32>
    %243 = arith.addf %241, %242 : vector<32x128xf32>
    %c0_121 = arith.constant 0 : index
    %c0_122 = arith.constant 0 : index
    %244 = vector.load %arg12[%c0_121, %c0_122] : memref<1x128xf32, #tpu.memory_space<vmem>>, vector<1x128xf32>
    %245 = vector.shape_cast %244 : vector<1x128xf32> to vector<1x128xf32>
    %246 = vector.broadcast %245 : vector<1x128xf32> to vector<32x128xf32>
    %c0_123 = arith.constant 0 : index
    %c0_124 = arith.constant 0 : index
    %c0_125 = arith.constant 0 : index
    %247 = vector.load %arg8[%c0_123, %c0_124, %c0_125] : memref<4x128x32xf32, #tpu.memory_space<vmem>>, vector<1x128x32xf32>
    %248 = vector.shape_cast %247 : vector<1x128x32xf32> to vector<128x32xf32>
    %cst_126 = arith.constant dense<0.000000e+00> : vector<32x32xf32>
    %249 = tpu.matmul %243, %248, %cst_126 {dimension_numbers = #tpu.dot_dimension_numbers<[1], [0], [0], [1], [0, 0, 1, 1], [], []>} : vector<32x128xf32>, vector<128x32xf32>, vector<32x32xf32> -> vector<32x32xf32>
    %c0_127 = arith.constant 0 : index
    %c0_128 = arith.constant 0 : index
    %c0_129 = arith.constant 0 : index
    %250 = vector.load %arg9[%c0_127, %c0_128, %c0_129] : memref<4x128x32xf32, #tpu.memory_space<vmem>>, vector<1x128x32xf32>
    %251 = vector.shape_cast %250 : vector<1x128x32xf32> to vector<128x32xf32>
    %cst_130 = arith.constant dense<0.000000e+00> : vector<32x32xf32>
    %252 = tpu.matmul %3, %251, %cst_130 {dimension_numbers = #tpu.dot_dimension_numbers<[1], [0], [0], [1], [0, 0, 1, 1], [], []>} : vector<32x128xf32>, vector<128x32xf32>, vector<32x32xf32> -> vector<32x32xf32>
    %c0_131 = arith.constant 0 : index
    %c0_132 = arith.constant 0 : index
    %c0_133 = arith.constant 0 : index
    %253 = vector.load %arg10[%c0_131, %c0_132, %c0_133] : memref<4x128x32xf32, #tpu.memory_space<vmem>>, vector<1x128x32xf32>
    %254 = vector.shape_cast %253 : vector<1x128x32xf32> to vector<128x32xf32>
    %cst_134 = arith.constant dense<0.000000e+00> : vector<32x32xf32>
    %255 = tpu.matmul %3, %254, %cst_134 {dimension_numbers = #tpu.dot_dimension_numbers<[1], [0], [0], [1], [0, 0, 1, 1], [], []>} : vector<32x128xf32>, vector<128x32xf32>, vector<32x32xf32> -> vector<32x32xf32>
    %256 = vector.extract_strided_slice %249 {offsets = [0, 0], sizes = [16, 32], strides = [1, 1]} : vector<32x32xf32> to vector<16x32xf32>
    %257 = vector.extract_strided_slice %252 {offsets = [0, 0], sizes = [16, 32], strides = [1, 1]} : vector<32x32xf32> to vector<16x32xf32>
    %258 = vector.extract_strided_slice %255 {offsets = [0, 0], sizes = [16, 32], strides = [1, 1]} : vector<32x32xf32> to vector<16x32xf32>
    %cst_135 = arith.constant dense<0.000000e+00> : vector<16x16xf32>
    %259 = tpu.matmul %256, %257, %cst_135 {dimension_numbers = #tpu.dot_dimension_numbers<[1], [1], [0], [0], [0, 0, 1, 0], [], []>} : vector<16x32xf32>, vector<16x32xf32>, vector<16x16xf32> -> vector<16x16xf32>
    %cst_136 = arith.constant 0.176776692 : f32
    %260 = vector.broadcast %cst_136 : f32 to vector<16x16xf32>
    %261 = arith.mulf %259, %260 : vector<16x16xf32>
    %cst_137 = arith.constant dense<0xFF800000> : vector<16xf32>
    %262 = vector.multi_reduction <maximumf>, %261, %cst_137 [1] : vector<16x16xf32> to vector<16xf32>
    %263 = vector.shape_cast %262 : vector<16xf32> to vector<16x1xf32>
    %264 = vector.broadcast %263 : vector<16x1xf32> to vector<16x16xf32>
    %265 = arith.subf %261, %264 : vector<16x16xf32>
    %266 = math.exp %265 : vector<16x16xf32>
    %cst_138 = arith.constant dense<0.000000e+00> : vector<16xf32>
    %267 = vector.multi_reduction <add>, %266, %cst_138 [1] : vector<16x16xf32> to vector<16xf32>
    %268 = vector.shape_cast %267 : vector<16xf32> to vector<16x1xf32>
    %cst_139 = arith.constant dense<0.000000e+00> : vector<16x32xf32>
    %269 = tpu.matmul %266, %258, %cst_139 {dimension_numbers = #tpu.dot_dimension_numbers<[1], [0], [0], [1], [0, 0, 1, 1], [], []>} : vector<16x16xf32>, vector<16x32xf32>, vector<16x32xf32> -> vector<16x32xf32>
    %270 = tpu.reciprocal %268 {approx = true} : vector<16x1xf32> -> vector<16x1xf32>
    %271 = vector.broadcast %270 : vector<16x1xf32> to vector<16x32xf32>
    %272 = arith.mulf %269, %271 : vector<16x32xf32>
    %273 = vector.extract_strided_slice %249 {offsets = [16, 0], sizes = [16, 32], strides = [1, 1]} : vector<32x32xf32> to vector<16x32xf32>
    %274 = vector.extract_strided_slice %252 {offsets = [16, 0], sizes = [16, 32], strides = [1, 1]} : vector<32x32xf32> to vector<16x32xf32>
    %275 = vector.extract_strided_slice %255 {offsets = [16, 0], sizes = [16, 32], strides = [1, 1]} : vector<32x32xf32> to vector<16x32xf32>
    %cst_140 = arith.constant dense<0.000000e+00> : vector<16x16xf32>
    %276 = tpu.matmul %273, %274, %cst_140 {dimension_numbers = #tpu.dot_dimension_numbers<[1], [1], [0], [0], [0, 0, 1, 0], [], []>} : vector<16x32xf32>, vector<16x32xf32>, vector<16x16xf32> -> vector<16x16xf32>
    %cst_141 = arith.constant 0.176776692 : f32
    %277 = vector.broadcast %cst_141 : f32 to vector<16x16xf32>
    %278 = arith.mulf %276, %277 : vector<16x16xf32>
    %cst_142 = arith.constant dense<0xFF800000> : vector<16xf32>
    %279 = vector.multi_reduction <maximumf>, %278, %cst_142 [1] : vector<16x16xf32> to vector<16xf32>
    %280 = vector.shape_cast %279 : vector<16xf32> to vector<16x1xf32>
    %281 = vector.broadcast %280 : vector<16x1xf32> to vector<16x16xf32>
    %282 = arith.subf %278, %281 : vector<16x16xf32>
    %283 = math.exp %282 : vector<16x16xf32>
    %cst_143 = arith.constant dense<0.000000e+00> : vector<16xf32>
    %284 = vector.multi_reduction <add>, %283, %cst_143 [1] : vector<16x16xf32> to vector<16xf32>
    %285 = vector.shape_cast %284 : vector<16xf32> to vector<16x1xf32>
    %cst_144 = arith.constant dense<0.000000e+00> : vector<16x32xf32>
    %286 = tpu.matmul %283, %275, %cst_144 {dimension_numbers = #tpu.dot_dimension_numbers<[1], [0], [0], [1], [0, 0, 1, 1], [], []>} : vector<16x16xf32>, vector<16x32xf32>, vector<16x32xf32> -> vector<16x32xf32>
    %287 = tpu.reciprocal %285 {approx = true} : vector<16x1xf32> -> vector<16x1xf32>
    %288 = vector.broadcast %287 : vector<16x1xf32> to vector<16x32xf32>
    %289 = arith.mulf %286, %288 : vector<16x32xf32>
    %290 = tpu.concatenate %272, %289 in 0 : vector<16x32xf32>, vector<16x32xf32> -> vector<32x32xf32>
    %c0_145 = arith.constant 0 : index
    %c0_146 = arith.constant 0 : index
    %c0_147 = arith.constant 0 : index
    %291 = vector.load %arg11[%c0_145, %c0_146, %c0_147] : memref<4x32x128xf32, #tpu.memory_space<vmem>>, vector<1x32x128xf32>
    %292 = vector.shape_cast %291 : vector<1x32x128xf32> to vector<32x128xf32>
    %cst_148 = arith.constant dense<0.000000e+00> : vector<32x128xf32>
    %293 = tpu.matmul %290, %292, %cst_148 {dimension_numbers = #tpu.dot_dimension_numbers<[1], [0], [0], [1], [0, 0, 1, 1], [], []>} : vector<32x32xf32>, vector<32x128xf32>, vector<32x128xf32> -> vector<32x128xf32>
    %294 = arith.addf %246, %293 : vector<32x128xf32>
    %c1_149 = arith.constant 1 : index
    %c0_150 = arith.constant 0 : index
    %c0_151 = arith.constant 0 : index
    %295 = vector.load %arg8[%c1_149, %c0_150, %c0_151] : memref<4x128x32xf32, #tpu.memory_space<vmem>>, vector<1x128x32xf32>
    %296 = vector.shape_cast %295 : vector<1x128x32xf32> to vector<128x32xf32>
    %cst_152 = arith.constant dense<0.000000e+00> : vector<32x32xf32>
    %297 = tpu.matmul %243, %296, %cst_152 {dimension_numbers = #tpu.dot_dimension_numbers<[1], [0], [0], [1], [0, 0, 1, 1], [], []>} : vector<32x128xf32>, vector<128x32xf32>, vector<32x32xf32> -> vector<32x32xf32>
    %c1_153 = arith.constant 1 : index
    %c0_154 = arith.constant 0 : index
    %c0_155 = arith.constant 0 : index
    %298 = vector.load %arg9[%c1_153, %c0_154, %c0_155] : memref<4x128x32xf32, #tpu.memory_space<vmem>>, vector<1x128x32xf32>
    %299 = vector.shape_cast %298 : vector<1x128x32xf32> to vector<128x32xf32>
    %cst_156 = arith.constant dense<0.000000e+00> : vector<32x32xf32>
    %300 = tpu.matmul %3, %299, %cst_156 {dimension_numbers = #tpu.dot_dimension_numbers<[1], [0], [0], [1], [0, 0, 1, 1], [], []>} : vector<32x128xf32>, vector<128x32xf32>, vector<32x32xf32> -> vector<32x32xf32>
    %c1_157 = arith.constant 1 : index
    %c0_158 = arith.constant 0 : index
    %c0_159 = arith.constant 0 : index
    %301 = vector.load %arg10[%c1_157, %c0_158, %c0_159] : memref<4x128x32xf32, #tpu.memory_space<vmem>>, vector<1x128x32xf32>
    %302 = vector.shape_cast %301 : vector<1x128x32xf32> to vector<128x32xf32>
    %cst_160 = arith.constant dense<0.000000e+00> : vector<32x32xf32>
    %303 = tpu.matmul %3, %302, %cst_160 {dimension_numbers = #tpu.dot_dimension_numbers<[1], [0], [0], [1], [0, 0, 1, 1], [], []>} : vector<32x128xf32>, vector<128x32xf32>, vector<32x32xf32> -> vector<32x32xf32>
    %304 = vector.extract_strided_slice %297 {offsets = [0, 0], sizes = [16, 32], strides = [1, 1]} : vector<32x32xf32> to vector<16x32xf32>
    %305 = vector.extract_strided_slice %300 {offsets = [0, 0], sizes = [16, 32], strides = [1, 1]} : vector<32x32xf32> to vector<16x32xf32>
    %306 = vector.extract_strided_slice %303 {offsets = [0, 0], sizes = [16, 32], strides = [1, 1]} : vector<32x32xf32> to vector<16x32xf32>
    %cst_161 = arith.constant dense<0.000000e+00> : vector<16x16xf32>
    %307 = tpu.matmul %304, %305, %cst_161 {dimension_numbers = #tpu.dot_dimension_numbers<[1], [1], [0], [0], [0, 0, 1, 0], [], []>} : vector<16x32xf32>, vector<16x32xf32>, vector<16x16xf32> -> vector<16x16xf32>
    %cst_162 = arith.constant 0.176776692 : f32
    %308 = vector.broadcast %cst_162 : f32 to vector<16x16xf32>
    %309 = arith.mulf %307, %308 : vector<16x16xf32>
    %cst_163 = arith.constant dense<0xFF800000> : vector<16xf32>
    %310 = vector.multi_reduction <maximumf>, %309, %cst_163 [1] : vector<16x16xf32> to vector<16xf32>
    %311 = vector.shape_cast %310 : vector<16xf32> to vector<16x1xf32>
    %312 = vector.broadcast %311 : vector<16x1xf32> to vector<16x16xf32>
    %313 = arith.subf %309, %312 : vector<16x16xf32>
    %314 = math.exp %313 : vector<16x16xf32>
    %cst_164 = arith.constant dense<0.000000e+00> : vector<16xf32>
    %315 = vector.multi_reduction <add>, %314, %cst_164 [1] : vector<16x16xf32> to vector<16xf32>
    %316 = vector.shape_cast %315 : vector<16xf32> to vector<16x1xf32>
    %cst_165 = arith.constant dense<0.000000e+00> : vector<16x32xf32>
    %317 = tpu.matmul %314, %306, %cst_165 {dimension_numbers = #tpu.dot_dimension_numbers<[1], [0], [0], [1], [0, 0, 1, 1], [], []>} : vector<16x16xf32>, vector<16x32xf32>, vector<16x32xf32> -> vector<16x32xf32>
    %318 = tpu.reciprocal %316 {approx = true} : vector<16x1xf32> -> vector<16x1xf32>
    %319 = vector.broadcast %318 : vector<16x1xf32> to vector<16x32xf32>
    %320 = arith.mulf %317, %319 : vector<16x32xf32>
    %321 = vector.extract_strided_slice %297 {offsets = [16, 0], sizes = [16, 32], strides = [1, 1]} : vector<32x32xf32> to vector<16x32xf32>
    %322 = vector.extract_strided_slice %300 {offsets = [16, 0], sizes = [16, 32], strides = [1, 1]} : vector<32x32xf32> to vector<16x32xf32>
    %323 = vector.extract_strided_slice %303 {offsets = [16, 0], sizes = [16, 32], strides = [1, 1]} : vector<32x32xf32> to vector<16x32xf32>
    %cst_166 = arith.constant dense<0.000000e+00> : vector<16x16xf32>
    %324 = tpu.matmul %321, %322, %cst_166 {dimension_numbers = #tpu.dot_dimension_numbers<[1], [1], [0], [0], [0, 0, 1, 0], [], []>} : vector<16x32xf32>, vector<16x32xf32>, vector<16x16xf32> -> vector<16x16xf32>
    %cst_167 = arith.constant 0.176776692 : f32
    %325 = vector.broadcast %cst_167 : f32 to vector<16x16xf32>
    %326 = arith.mulf %324, %325 : vector<16x16xf32>
    %cst_168 = arith.constant dense<0xFF800000> : vector<16xf32>
    %327 = vector.multi_reduction <maximumf>, %326, %cst_168 [1] : vector<16x16xf32> to vector<16xf32>
    %328 = vector.shape_cast %327 : vector<16xf32> to vector<16x1xf32>
    %329 = vector.broadcast %328 : vector<16x1xf32> to vector<16x16xf32>
    %330 = arith.subf %326, %329 : vector<16x16xf32>
    %331 = math.exp %330 : vector<16x16xf32>
    %cst_169 = arith.constant dense<0.000000e+00> : vector<16xf32>
    %332 = vector.multi_reduction <add>, %331, %cst_169 [1] : vector<16x16xf32> to vector<16xf32>
    %333 = vector.shape_cast %332 : vector<16xf32> to vector<16x1xf32>
    %cst_170 = arith.constant dense<0.000000e+00> : vector<16x32xf32>
    %334 = tpu.matmul %331, %323, %cst_170 {dimension_numbers = #tpu.dot_dimension_numbers<[1], [0], [0], [1], [0, 0, 1, 1], [], []>} : vector<16x16xf32>, vector<16x32xf32>, vector<16x32xf32> -> vector<16x32xf32>
    %335 = tpu.reciprocal %333 {approx = true} : vector<16x1xf32> -> vector<16x1xf32>
    %336 = vector.broadcast %335 : vector<16x1xf32> to vector<16x32xf32>
    %337 = arith.mulf %334, %336 : vector<16x32xf32>
    %338 = tpu.concatenate %320, %337 in 0 : vector<16x32xf32>, vector<16x32xf32> -> vector<32x32xf32>
    %c1_171 = arith.constant 1 : index
    %c0_172 = arith.constant 0 : index
    %c0_173 = arith.constant 0 : index
    %339 = vector.load %arg11[%c1_171, %c0_172, %c0_173] : memref<4x32x128xf32, #tpu.memory_space<vmem>>, vector<1x32x128xf32>
    %340 = vector.shape_cast %339 : vector<1x32x128xf32> to vector<32x128xf32>
    %cst_174 = arith.constant dense<0.000000e+00> : vector<32x128xf32>
    %341 = tpu.matmul %338, %340, %cst_174 {dimension_numbers = #tpu.dot_dimension_numbers<[1], [0], [0], [1], [0, 0, 1, 1], [], []>} : vector<32x32xf32>, vector<32x128xf32>, vector<32x128xf32> -> vector<32x128xf32>
    %342 = arith.addf %294, %341 : vector<32x128xf32>
    %c2_175 = arith.constant 2 : index
    %c0_176 = arith.constant 0 : index
    %c0_177 = arith.constant 0 : index
    %343 = vector.load %arg8[%c2_175, %c0_176, %c0_177] : memref<4x128x32xf32, #tpu.memory_space<vmem>>, vector<1x128x32xf32>
    %344 = vector.shape_cast %343 : vector<1x128x32xf32> to vector<128x32xf32>
    %cst_178 = arith.constant dense<0.000000e+00> : vector<32x32xf32>
    %345 = tpu.matmul %243, %344, %cst_178 {dimension_numbers = #tpu.dot_dimension_numbers<[1], [0], [0], [1], [0, 0, 1, 1], [], []>} : vector<32x128xf32>, vector<128x32xf32>, vector<32x32xf32> -> vector<32x32xf32>
    %c2_179 = arith.constant 2 : index
    %c0_180 = arith.constant 0 : index
    %c0_181 = arith.constant 0 : index
    %346 = vector.load %arg9[%c2_179, %c0_180, %c0_181] : memref<4x128x32xf32, #tpu.memory_space<vmem>>, vector<1x128x32xf32>
    %347 = vector.shape_cast %346 : vector<1x128x32xf32> to vector<128x32xf32>
    %cst_182 = arith.constant dense<0.000000e+00> : vector<32x32xf32>
    %348 = tpu.matmul %3, %347, %cst_182 {dimension_numbers = #tpu.dot_dimension_numbers<[1], [0], [0], [1], [0, 0, 1, 1], [], []>} : vector<32x128xf32>, vector<128x32xf32>, vector<32x32xf32> -> vector<32x32xf32>
    %c2_183 = arith.constant 2 : index
    %c0_184 = arith.constant 0 : index
    %c0_185 = arith.constant 0 : index
    %349 = vector.load %arg10[%c2_183, %c0_184, %c0_185] : memref<4x128x32xf32, #tpu.memory_space<vmem>>, vector<1x128x32xf32>
    %350 = vector.shape_cast %349 : vector<1x128x32xf32> to vector<128x32xf32>
    %cst_186 = arith.constant dense<0.000000e+00> : vector<32x32xf32>
    %351 = tpu.matmul %3, %350, %cst_186 {dimension_numbers = #tpu.dot_dimension_numbers<[1], [0], [0], [1], [0, 0, 1, 1], [], []>} : vector<32x128xf32>, vector<128x32xf32>, vector<32x32xf32> -> vector<32x32xf32>
    %352 = vector.extract_strided_slice %345 {offsets = [0, 0], sizes = [16, 32], strides = [1, 1]} : vector<32x32xf32> to vector<16x32xf32>
    %353 = vector.extract_strided_slice %348 {offsets = [0, 0], sizes = [16, 32], strides = [1, 1]} : vector<32x32xf32> to vector<16x32xf32>
    %354 = vector.extract_strided_slice %351 {offsets = [0, 0], sizes = [16, 32], strides = [1, 1]} : vector<32x32xf32> to vector<16x32xf32>
    %cst_187 = arith.constant dense<0.000000e+00> : vector<16x16xf32>
    %355 = tpu.matmul %352, %353, %cst_187 {dimension_numbers = #tpu.dot_dimension_numbers<[1], [1], [0], [0], [0, 0, 1, 0], [], []>} : vector<16x32xf32>, vector<16x32xf32>, vector<16x16xf32> -> vector<16x16xf32>
    %cst_188 = arith.constant 0.176776692 : f32
    %356 = vector.broadcast %cst_188 : f32 to vector<16x16xf32>
    %357 = arith.mulf %355, %356 : vector<16x16xf32>
    %cst_189 = arith.constant dense<0xFF800000> : vector<16xf32>
    %358 = vector.multi_reduction <maximumf>, %357, %cst_189 [1] : vector<16x16xf32> to vector<16xf32>
    %359 = vector.shape_cast %358 : vector<16xf32> to vector<16x1xf32>
    %360 = vector.broadcast %359 : vector<16x1xf32> to vector<16x16xf32>
    %361 = arith.subf %357, %360 : vector<16x16xf32>
    %362 = math.exp %361 : vector<16x16xf32>
    %cst_190 = arith.constant dense<0.000000e+00> : vector<16xf32>
    %363 = vector.multi_reduction <add>, %362, %cst_190 [1] : vector<16x16xf32> to vector<16xf32>
    %364 = vector.shape_cast %363 : vector<16xf32> to vector<16x1xf32>
    %cst_191 = arith.constant dense<0.000000e+00> : vector<16x32xf32>
    %365 = tpu.matmul %362, %354, %cst_191 {dimension_numbers = #tpu.dot_dimension_numbers<[1], [0], [0], [1], [0, 0, 1, 1], [], []>} : vector<16x16xf32>, vector<16x32xf32>, vector<16x32xf32> -> vector<16x32xf32>
    %366 = tpu.reciprocal %364 {approx = true} : vector<16x1xf32> -> vector<16x1xf32>
    %367 = vector.broadcast %366 : vector<16x1xf32> to vector<16x32xf32>
    %368 = arith.mulf %365, %367 : vector<16x32xf32>
    %369 = vector.extract_strided_slice %345 {offsets = [16, 0], sizes = [16, 32], strides = [1, 1]} : vector<32x32xf32> to vector<16x32xf32>
    %370 = vector.extract_strided_slice %348 {offsets = [16, 0], sizes = [16, 32], strides = [1, 1]} : vector<32x32xf32> to vector<16x32xf32>
    %371 = vector.extract_strided_slice %351 {offsets = [16, 0], sizes = [16, 32], strides = [1, 1]} : vector<32x32xf32> to vector<16x32xf32>
    %cst_192 = arith.constant dense<0.000000e+00> : vector<16x16xf32>
    %372 = tpu.matmul %369, %370, %cst_192 {dimension_numbers = #tpu.dot_dimension_numbers<[1], [1], [0], [0], [0, 0, 1, 0], [], []>} : vector<16x32xf32>, vector<16x32xf32>, vector<16x16xf32> -> vector<16x16xf32>
    %cst_193 = arith.constant 0.176776692 : f32
    %373 = vector.broadcast %cst_193 : f32 to vector<16x16xf32>
    %374 = arith.mulf %372, %373 : vector<16x16xf32>
    %cst_194 = arith.constant dense<0xFF800000> : vector<16xf32>
    %375 = vector.multi_reduction <maximumf>, %374, %cst_194 [1] : vector<16x16xf32> to vector<16xf32>
    %376 = vector.shape_cast %375 : vector<16xf32> to vector<16x1xf32>
    %377 = vector.broadcast %376 : vector<16x1xf32> to vector<16x16xf32>
    %378 = arith.subf %374, %377 : vector<16x16xf32>
    %379 = math.exp %378 : vector<16x16xf32>
    %cst_195 = arith.constant dense<0.000000e+00> : vector<16xf32>
    %380 = vector.multi_reduction <add>, %379, %cst_195 [1] : vector<16x16xf32> to vector<16xf32>
    %381 = vector.shape_cast %380 : vector<16xf32> to vector<16x1xf32>
    %cst_196 = arith.constant dense<0.000000e+00> : vector<16x32xf32>
    %382 = tpu.matmul %379, %371, %cst_196 {dimension_numbers = #tpu.dot_dimension_numbers<[1], [0], [0], [1], [0, 0, 1, 1], [], []>} : vector<16x16xf32>, vector<16x32xf32>, vector<16x32xf32> -> vector<16x32xf32>
    %383 = tpu.reciprocal %381 {approx = true} : vector<16x1xf32> -> vector<16x1xf32>
    %384 = vector.broadcast %383 : vector<16x1xf32> to vector<16x32xf32>
    %385 = arith.mulf %382, %384 : vector<16x32xf32>
    %386 = tpu.concatenate %368, %385 in 0 : vector<16x32xf32>, vector<16x32xf32> -> vector<32x32xf32>
    %c2_197 = arith.constant 2 : index
    %c0_198 = arith.constant 0 : index
    %c0_199 = arith.constant 0 : index
    %387 = vector.load %arg11[%c2_197, %c0_198, %c0_199] : memref<4x32x128xf32, #tpu.memory_space<vmem>>, vector<1x32x128xf32>
    %388 = vector.shape_cast %387 : vector<1x32x128xf32> to vector<32x128xf32>
    %cst_200 = arith.constant dense<0.000000e+00> : vector<32x128xf32>
    %389 = tpu.matmul %386, %388, %cst_200 {dimension_numbers = #tpu.dot_dimension_numbers<[1], [0], [0], [1], [0, 0, 1, 1], [], []>} : vector<32x32xf32>, vector<32x128xf32>, vector<32x128xf32> -> vector<32x128xf32>
    %390 = arith.addf %342, %389 : vector<32x128xf32>
    %c3_201 = arith.constant 3 : index
    %c0_202 = arith.constant 0 : index
    %c0_203 = arith.constant 0 : index
    %391 = vector.load %arg8[%c3_201, %c0_202, %c0_203] : memref<4x128x32xf32, #tpu.memory_space<vmem>>, vector<1x128x32xf32>
    %392 = vector.shape_cast %391 : vector<1x128x32xf32> to vector<128x32xf32>
    %cst_204 = arith.constant dense<0.000000e+00> : vector<32x32xf32>
    %393 = tpu.matmul %243, %392, %cst_204 {dimension_numbers = #tpu.dot_dimension_numbers<[1], [0], [0], [1], [0, 0, 1, 1], [], []>} : vector<32x128xf32>, vector<128x32xf32>, vector<32x32xf32> -> vector<32x32xf32>
    %c3_205 = arith.constant 3 : index
    %c0_206 = arith.constant 0 : index
    %c0_207 = arith.constant 0 : index
    %394 = vector.load %arg9[%c3_205, %c0_206, %c0_207] : memref<4x128x32xf32, #tpu.memory_space<vmem>>, vector<1x128x32xf32>
    %395 = vector.shape_cast %394 : vector<1x128x32xf32> to vector<128x32xf32>
    %cst_208 = arith.constant dense<0.000000e+00> : vector<32x32xf32>
    %396 = tpu.matmul %3, %395, %cst_208 {dimension_numbers = #tpu.dot_dimension_numbers<[1], [0], [0], [1], [0, 0, 1, 1], [], []>} : vector<32x128xf32>, vector<128x32xf32>, vector<32x32xf32> -> vector<32x32xf32>
    %c3_209 = arith.constant 3 : index
    %c0_210 = arith.constant 0 : index
    %c0_211 = arith.constant 0 : index
    %397 = vector.load %arg10[%c3_209, %c0_210, %c0_211] : memref<4x128x32xf32, #tpu.memory_space<vmem>>, vector<1x128x32xf32>
    %398 = vector.shape_cast %397 : vector<1x128x32xf32> to vector<128x32xf32>
    %cst_212 = arith.constant dense<0.000000e+00> : vector<32x32xf32>
    %399 = tpu.matmul %3, %398, %cst_212 {dimension_numbers = #tpu.dot_dimension_numbers<[1], [0], [0], [1], [0, 0, 1, 1], [], []>} : vector<32x128xf32>, vector<128x32xf32>, vector<32x32xf32> -> vector<32x32xf32>
    %400 = vector.extract_strided_slice %393 {offsets = [0, 0], sizes = [16, 32], strides = [1, 1]} : vector<32x32xf32> to vector<16x32xf32>
    %401 = vector.extract_strided_slice %396 {offsets = [0, 0], sizes = [16, 32], strides = [1, 1]} : vector<32x32xf32> to vector<16x32xf32>
    %402 = vector.extract_strided_slice %399 {offsets = [0, 0], sizes = [16, 32], strides = [1, 1]} : vector<32x32xf32> to vector<16x32xf32>
    %cst_213 = arith.constant dense<0.000000e+00> : vector<16x16xf32>
    %403 = tpu.matmul %400, %401, %cst_213 {dimension_numbers = #tpu.dot_dimension_numbers<[1], [1], [0], [0], [0, 0, 1, 0], [], []>} : vector<16x32xf32>, vector<16x32xf32>, vector<16x16xf32> -> vector<16x16xf32>
    %cst_214 = arith.constant 0.176776692 : f32
    %404 = vector.broadcast %cst_214 : f32 to vector<16x16xf32>
    %405 = arith.mulf %403, %404 : vector<16x16xf32>
    %cst_215 = arith.constant dense<0xFF800000> : vector<16xf32>
    %406 = vector.multi_reduction <maximumf>, %405, %cst_215 [1] : vector<16x16xf32> to vector<16xf32>
    %407 = vector.shape_cast %406 : vector<16xf32> to vector<16x1xf32>
    %408 = vector.broadcast %407 : vector<16x1xf32> to vector<16x16xf32>
    %409 = arith.subf %405, %408 : vector<16x16xf32>
    %410 = math.exp %409 : vector<16x16xf32>
    %cst_216 = arith.constant dense<0.000000e+00> : vector<16xf32>
    %411 = vector.multi_reduction <add>, %410, %cst_216 [1] : vector<16x16xf32> to vector<16xf32>
    %412 = vector.shape_cast %411 : vector<16xf32> to vector<16x1xf32>
    %cst_217 = arith.constant dense<0.000000e+00> : vector<16x32xf32>
    %413 = tpu.matmul %410, %402, %cst_217 {dimension_numbers = #tpu.dot_dimension_numbers<[1], [0], [0], [1], [0, 0, 1, 1], [], []>} : vector<16x16xf32>, vector<16x32xf32>, vector<16x32xf32> -> vector<16x32xf32>
    %414 = tpu.reciprocal %412 {approx = true} : vector<16x1xf32> -> vector<16x1xf32>
    %415 = vector.broadcast %414 : vector<16x1xf32> to vector<16x32xf32>
    %416 = arith.mulf %413, %415 : vector<16x32xf32>
    %417 = vector.extract_strided_slice %393 {offsets = [16, 0], sizes = [16, 32], strides = [1, 1]} : vector<32x32xf32> to vector<16x32xf32>
    %418 = vector.extract_strided_slice %396 {offsets = [16, 0], sizes = [16, 32], strides = [1, 1]} : vector<32x32xf32> to vector<16x32xf32>
    %419 = vector.extract_strided_slice %399 {offsets = [16, 0], sizes = [16, 32], strides = [1, 1]} : vector<32x32xf32> to vector<16x32xf32>
    %cst_218 = arith.constant dense<0.000000e+00> : vector<16x16xf32>
    %420 = tpu.matmul %417, %418, %cst_218 {dimension_numbers = #tpu.dot_dimension_numbers<[1], [1], [0], [0], [0, 0, 1, 0], [], []>} : vector<16x32xf32>, vector<16x32xf32>, vector<16x16xf32> -> vector<16x16xf32>
    %cst_219 = arith.constant 0.176776692 : f32
    %421 = vector.broadcast %cst_219 : f32 to vector<16x16xf32>
    %422 = arith.mulf %420, %421 : vector<16x16xf32>
    %cst_220 = arith.constant dense<0xFF800000> : vector<16xf32>
    %423 = vector.multi_reduction <maximumf>, %422, %cst_220 [1] : vector<16x16xf32> to vector<16xf32>
    %424 = vector.shape_cast %423 : vector<16xf32> to vector<16x1xf32>
    %425 = vector.broadcast %424 : vector<16x1xf32> to vector<16x16xf32>
    %426 = arith.subf %422, %425 : vector<16x16xf32>
    %427 = math.exp %426 : vector<16x16xf32>
    %cst_221 = arith.constant dense<0.000000e+00> : vector<16xf32>
    %428 = vector.multi_reduction <add>, %427, %cst_221 [1] : vector<16x16xf32> to vector<16xf32>
    %429 = vector.shape_cast %428 : vector<16xf32> to vector<16x1xf32>
    %cst_222 = arith.constant dense<0.000000e+00> : vector<16x32xf32>
    %430 = tpu.matmul %427, %419, %cst_222 {dimension_numbers = #tpu.dot_dimension_numbers<[1], [0], [0], [1], [0, 0, 1, 1], [], []>} : vector<16x16xf32>, vector<16x32xf32>, vector<16x32xf32> -> vector<16x32xf32>
    %431 = tpu.reciprocal %429 {approx = true} : vector<16x1xf32> -> vector<16x1xf32>
    %432 = vector.broadcast %431 : vector<16x1xf32> to vector<16x32xf32>
    %433 = arith.mulf %430, %432 : vector<16x32xf32>
    %434 = tpu.concatenate %416, %433 in 0 : vector<16x32xf32>, vector<16x32xf32> -> vector<32x32xf32>
    %c3_223 = arith.constant 3 : index
    %c0_224 = arith.constant 0 : index
    %c0_225 = arith.constant 0 : index
    %435 = vector.load %arg11[%c3_223, %c0_224, %c0_225] : memref<4x32x128xf32, #tpu.memory_space<vmem>>, vector<1x32x128xf32>
    %436 = vector.shape_cast %435 : vector<1x32x128xf32> to vector<32x128xf32>
    %cst_226 = arith.constant dense<0.000000e+00> : vector<32x128xf32>
    %437 = tpu.matmul %434, %436, %cst_226 {dimension_numbers = #tpu.dot_dimension_numbers<[1], [0], [0], [1], [0, 0, 1, 1], [], []>} : vector<32x32xf32>, vector<32x128xf32>, vector<32x128xf32> -> vector<32x128xf32>
    %438 = arith.addf %390, %437 : vector<32x128xf32>
    %439 = arith.addf %221, %438 : vector<32x128xf32>
    %c4 = arith.constant 4 : index
    %440 = memref.load %arg17[%c4] : memref<6xf32, #tpu.memory_space<smem>>
    %c5 = arith.constant 5 : index
    %441 = memref.load %arg17[%c5] : memref<6xf32, #tpu.memory_space<smem>>
    %cst_227 = arith.constant dense<0.000000e+00> : vector<32xf32>
    %442 = vector.multi_reduction <add>, %439, %cst_227 [1] : vector<32x128xf32> to vector<32xf32>
    %443 = vector.shape_cast %442 : vector<32xf32> to vector<32x1xf32>
    %cst_228 = arith.constant 1.280000e+02 : f32
    %444 = vector.broadcast %cst_228 : f32 to vector<32x1xf32>
    %445 = arith.divf %443, %444 : vector<32x1xf32>
    %446 = vector.broadcast %445 : vector<32x1xf32> to vector<32x128xf32>
    %447 = arith.subf %439, %446 : vector<32x128xf32>
    %448 = arith.mulf %447, %447 : vector<32x128xf32>
    %cst_229 = arith.constant dense<0.000000e+00> : vector<32xf32>
    %449 = vector.multi_reduction <add>, %448, %cst_229 [1] : vector<32x128xf32> to vector<32xf32>
    %450 = vector.shape_cast %449 : vector<32xf32> to vector<32x1xf32>
    %cst_230 = arith.constant 0.00787401571 : f32
    %451 = vector.broadcast %cst_230 : f32 to vector<32x1xf32>
    %452 = arith.mulf %450, %451 : vector<32x1xf32>
    %453 = vector.broadcast %440 : f32 to vector<32x128xf32>
    %454 = arith.mulf %453, %447 : vector<32x128xf32>
    %cst_231 = arith.constant 9.99999974E-6 : f32
    %455 = vector.broadcast %cst_231 : f32 to vector<32x1xf32>
    %456 = arith.addf %452, %455 : vector<32x1xf32>
    %457 = math.rsqrt %456 : vector<32x1xf32>
    %458 = vector.broadcast %457 : vector<32x1xf32> to vector<32x128xf32>
    %459 = arith.mulf %454, %458 : vector<32x128xf32>
    %460 = vector.broadcast %441 : f32 to vector<32x128xf32>
    %461 = arith.addf %459, %460 : vector<32x128xf32>
    %c0_232 = arith.constant 0 : index
    %c0_233 = arith.constant 0 : index
    %462 = vector.load %arg13[%c0_232, %c0_233] : memref<128x256xf32, #tpu.memory_space<vmem>>, vector<128x256xf32>
    %cst_234 = arith.constant dense<0.000000e+00> : vector<32x256xf32>
    %463 = tpu.matmul %461, %462, %cst_234 {dimension_numbers = #tpu.dot_dimension_numbers<[1], [0], [0], [1], [0, 0, 1, 1], [], []>} : vector<32x128xf32>, vector<128x256xf32>, vector<32x256xf32> -> vector<32x256xf32>
    %c0_235 = arith.constant 0 : index
    %c0_236 = arith.constant 0 : index
    %464 = vector.load %arg14[%c0_235, %c0_236] : memref<1x256xf32, #tpu.memory_space<vmem>>, vector<1x256xf32>
    %465 = vector.broadcast %464 : vector<1x256xf32> to vector<32x256xf32>
    %466 = arith.addf %463, %465 : vector<32x256xf32>
    %cst_237 = arith.constant 0.000000e+00 : f32
    %467 = vector.broadcast %cst_237 : f32 to vector<32x256xf32>
    %468 = arith.maximumf %466, %467 : vector<32x256xf32>
    %c0_238 = arith.constant 0 : index
    %c0_239 = arith.constant 0 : index
    %469 = vector.load %arg15[%c0_238, %c0_239] : memref<256x128xf32, #tpu.memory_space<vmem>>, vector<256x128xf32>
    %cst_240 = arith.constant dense<0.000000e+00> : vector<32x128xf32>
    %470 = tpu.matmul %468, %469, %cst_240 {dimension_numbers = #tpu.dot_dimension_numbers<[1], [0], [0], [1], [0, 0, 1, 1], [], []>} : vector<32x256xf32>, vector<256x128xf32>, vector<32x128xf32> -> vector<32x128xf32>
    %471 = arith.addf %439, %470 : vector<32x128xf32>
    %c0_241 = arith.constant 0 : index
    %c0_242 = arith.constant 0 : index
    %472 = vector.load %arg16[%c0_241, %c0_242] : memref<1x128xf32, #tpu.memory_space<vmem>>, vector<1x128xf32>
    %473 = vector.broadcast %472 : vector<1x128xf32> to vector<32x128xf32>
    %474 = arith.addf %471, %473 : vector<32x128xf32>
    %475 = vector.shape_cast %474 : vector<32x128xf32> to vector<2x16x128xf32>
    %c0_243 = arith.constant 0 : index
    %c0_244 = arith.constant 0 : index
    %c0_245 = arith.constant 0 : index
    %476 = vector.load %arg18[%c0_243, %c0_244, %c0_245] : memref<2x16x128xf32, #tpu.memory_space<vmem>>, vector<2x16x128xf32>
    tpu.vector_store %arg18[%c0_243, %c0_244, %c0_245], %475 {strides = array<i32>} : memref<2x16x128xf32, #tpu.memory_space<vmem>>, vector<2x16x128xf32>,
    return
  }
  func.func @transform_0(%arg0: i32) -> (i32, i32, i32) {
    %c0_i32 = arith.constant 0 : i32
    %c0_i32_0 = arith.constant 0 : i32
    %c0_i32_1 = arith.constant 0 : i32
    return %arg0, %c0_i32, %c0_i32_0 : i32, i32, i32
  }
  func.func @transform_1(%arg0: i32) -> (i32, i32, i32) {
    %c0_i32 = arith.constant 0 : i32
    %c0_i32_0 = arith.constant 0 : i32
    %c0_i32_1 = arith.constant 0 : i32
    return %arg0, %c0_i32, %c0_i32_0 : i32, i32, i32
  }
  func.func @transform_2(%arg0: i32) -> (i32, i32, i32) {
    %c0_i32 = arith.constant 0 : i32
    %c0_i32_0 = arith.constant 0 : i32
    %c0_i32_1 = arith.constant 0 : i32
    %c0_i32_2 = arith.constant 0 : i32
    return %c0_i32, %c0_i32_0, %c0_i32_1 : i32, i32, i32
  }
  func.func @transform_3(%arg0: i32) -> (i32, i32, i32) {
    %c0_i32 = arith.constant 0 : i32
    %c0_i32_0 = arith.constant 0 : i32
    %c0_i32_1 = arith.constant 0 : i32
    %c0_i32_2 = arith.constant 0 : i32
    return %c0_i32, %c0_i32_0, %c0_i32_1 : i32, i32, i32
  }
  func.func @transform_4(%arg0: i32) -> (i32, i32, i32) {
    %c0_i32 = arith.constant 0 : i32
    %c0_i32_0 = arith.constant 0 : i32
    %c0_i32_1 = arith.constant 0 : i32
    %c0_i32_2 = arith.constant 0 : i32
    return %c0_i32, %c0_i32_0, %c0_i32_1 : i32, i32, i32
  }
  func.func @transform_5(%arg0: i32) -> (i32, i32, i32) {
    %c0_i32 = arith.constant 0 : i32
    %c0_i32_0 = arith.constant 0 : i32
    %c0_i32_1 = arith.constant 0 : i32
    %c0_i32_2 = arith.constant 0 : i32
    return %c0_i32, %c0_i32_0, %c0_i32_1 : i32, i32, i32
  }
  func.func @transform_6(%arg0: i32) -> (i32, i32) {
    %c0_i32 = arith.constant 0 : i32
    %c0_i32_0 = arith.constant 0 : i32
    %c0_i32_1 = arith.constant 0 : i32
    return %c0_i32, %c0_i32_0 : i32, i32
  }
  func.func @transform_7(%arg0: i32) -> (i32, i32, i32) {
    %c0_i32 = arith.constant 0 : i32
    %c0_i32_0 = arith.constant 0 : i32
    %c0_i32_1 = arith.constant 0 : i32
    %c0_i32_2 = arith.constant 0 : i32
    return %c0_i32, %c0_i32_0, %c0_i32_1 : i32, i32, i32
  }
  func.func @transform_8(%arg0: i32) -> (i32, i32, i32) {
    %c0_i32 = arith.constant 0 : i32
    %c0_i32_0 = arith.constant 0 : i32
    %c0_i32_1 = arith.constant 0 : i32
    %c0_i32_2 = arith.constant 0 : i32
    return %c0_i32, %c0_i32_0, %c0_i32_1 : i32, i32, i32
  }
  func.func @transform_9(%arg0: i32) -> (i32, i32, i32) {
    %c0_i32 = arith.constant 0 : i32
    %c0_i32_0 = arith.constant 0 : i32
    %c0_i32_1 = arith.constant 0 : i32
    %c0_i32_2 = arith.constant 0 : i32
    return %c0_i32, %c0_i32_0, %c0_i32_1 : i32, i32, i32
  }
  func.func @transform_10(%arg0: i32) -> (i32, i32, i32) {
    %c0_i32 = arith.constant 0 : i32
    %c0_i32_0 = arith.constant 0 : i32
    %c0_i32_1 = arith.constant 0 : i32
    %c0_i32_2 = arith.constant 0 : i32
    return %c0_i32, %c0_i32_0, %c0_i32_1 : i32, i32, i32
  }
  func.func @transform_11(%arg0: i32) -> (i32, i32) {
    %c0_i32 = arith.constant 0 : i32
    %c0_i32_0 = arith.constant 0 : i32
    %c0_i32_1 = arith.constant 0 : i32
    return %c0_i32, %c0_i32_0 : i32, i32
  }
  func.func @transform_12(%arg0: i32) -> (i32, i32) {
    %c0_i32 = arith.constant 0 : i32
    %c0_i32_0 = arith.constant 0 : i32
    %c0_i32_1 = arith.constant 0 : i32
    return %c0_i32, %c0_i32_0 : i32, i32
  }
  func.func @transform_13(%arg0: i32) -> (i32, i32) {
    %c0_i32 = arith.constant 0 : i32
    %c0_i32_0 = arith.constant 0 : i32
    %c0_i32_1 = arith.constant 0 : i32
    return %c0_i32, %c0_i32_0 : i32, i32
  }
  func.func @transform_14(%arg0: i32) -> (i32, i32) {
    %c0_i32 = arith.constant 0 : i32
    %c0_i32_0 = arith.constant 0 : i32
    %c0_i32_1 = arith.constant 0 : i32
    return %c0_i32, %c0_i32_0 : i32, i32
  }
  func.func @transform_15(%arg0: i32) -> (i32, i32) {
    %c0_i32 = arith.constant 0 : i32
    %c0_i32_0 = arith.constant 0 : i32
    %c0_i32_1 = arith.constant 0 : i32
    return %c0_i32, %c0_i32_0 : i32, i32
  }
  func.func @transform_16(%arg0: i32) -> i32 {
    %c0_i32 = arith.constant 0 : i32
    %c0_i32_0 = arith.constant 0 : i32
    return %c0_i32 : i32
  }
  func.func @transform_17(%arg0: i32) -> (i32, i32, i32) {
    %c0_i32 = arith.constant 0 : i32
    %c0_i32_0 = arith.constant 0 : i32
    %c0_i32_1 = arith.constant 0 : i32
    return %arg0, %c0_i32, %c0_i32_0 : i32, i32, i32
  }
}

</mosaic_0001>

<llo_original>
// kernel: tpu_custom_call.1
$region0: #{tpu_custom_call.1}
  #allocation0 [shape = 'u32[]', space=smem, size = 0x4, offset = 0x4, fixed_abs, tag = 'smem constant byte address 0x4 - core index']
  #allocation1 [shape = 'u32[72,128]{1,0:T(1,128)}', space=vmem, size = 0x9000, scoped, tag = 'internal scratch']
  %s0 = inlined_call_operand.vmem [shape: f32[2,16,128], index: 0, kind: input, shape index: {}]
  %s1 = inlined_call_operand.vmem [shape: f32[2,16,128], index: 1, kind: input, shape index: {}]
  %s2 = inlined_call_operand.vmem [shape: f32[4,128,32], index: 2, kind: input, shape index: {}]
  %s3 = inlined_call_operand.vmem [shape: f32[4,128,32], index: 3, kind: input, shape index: {}]
  %s4 = inlined_call_operand.vmem [shape: f32[4,128,32], index: 4, kind: input, shape index: {}]
  %s5 = inlined_call_operand.vmem [shape: f32[4,32,128], index: 5, kind: input, shape index: {}]
  %s6 = inlined_call_operand.vmem [shape: f32[1,128], index: 6, kind: input, shape index: {}]
  %s7 = inlined_call_operand.vmem [shape: f32[4,128,32], index: 7, kind: input, shape index: {}]
  %s8 = inlined_call_operand.vmem [shape: f32[4,128,32], index: 8, kind: input, shape index: {}]
  %s9 = inlined_call_operand.vmem [shape: f32[4,128,32], index: 9, kind: input, shape index: {}]
  %s10 = inlined_call_operand.vmem [shape: f32[4,32,128], index: 10, kind: input, shape index: {}]
  %s11 = inlined_call_operand.vmem [shape: f32[1,128], index: 11, kind: input, shape index: {}]
  %s12 = inlined_call_operand.vmem [shape: f32[128,256], index: 12, kind: input, shape index: {}]
  %s13 = inlined_call_operand.vmem [shape: f32[1,256], index: 13, kind: input, shape index: {}]
  %s14 = inlined_call_operand.vmem [shape: f32[256,128], index: 14, kind: input, shape index: {}]
  %s15 = inlined_call_operand.vmem [shape: f32[1,128], index: 15, kind: input, shape index: {}]
  %s16 = inlined_call_operand.vmem [shape: f32[6], index: 16, kind: input, shape index: {}]
  %s17 = inlined_call_operand.hbm [shape: f32[2,16,128], index: 17, kind: output, shape index: {}]
  %s18 = sld [smem:[#allocation0]]
  $region82: #{tpu_custom_call.1} parent=0
    _
  %s20 = ssub.s32 1, %s18
  %s21 = scalar_select 0, %s20, %s18
  $region1: #{tpu_custom_call.1} parent=0
    #allocation2 [shape = 'u8[512]{0}', space=smem, size = 0x200, scoped, tag = 'input window, operand 16, single buffered']
    #allocation3 [shape = 's32[1]{0}', space=sflag, size = 0x4, scoped, tag = 'scoped memory for tpu_custom_call.1']
    #allocation4 [shape = 's32[1]{0}', space=sflag, size = 0x4, scoped, tag = 'scoped memory for tpu_custom_call.1']
    #allocation5 [shape = 'u8[16384]{0}', space=vmem, size = 0x4000, scoped, tag = 'output window, operand 0, single buffered']
    %22 = vsyncpa [#allocation4], 0
    %23 = vsyncpa [#allocation3], 0
    // Predicated region
    $region2: #{tpu_custom_call.1} parent=1 // pred_check
      _
    $region3: #{tpu_custom_call.1} parent=1 // pred_check_branch
      %25 = sbr.rel (0) target = $region5
    $region4: #{tpu_custom_call.1} parent=1 // pred_region
      _
    $region5: #{tpu_custom_call.1} parent=1 // pred_fallthru
      _
    // Predicated region
    $region6: #{tpu_custom_call.1} parent=1 // pred_check
      _
    $region7: #{tpu_custom_call.1} parent=1 // pred_check_branch
      %27 = sbr.rel (0) target = $region9
    $region8: #{tpu_custom_call.1} parent=1 // pred_region
      _
    $region9: #{tpu_custom_call.1} parent=1 // pred_fallthru
      _
    // Predicated region
    $region10: #{tpu_custom_call.1} parent=1 // pred_check
      _
    $region11: #{tpu_custom_call.1} parent=1 // pred_check_branch
      %29 = sbr.rel (0) target = $region13
    $region12: #{tpu_custom_call.1} parent=1 // pred_region
      _
    $region13: #{tpu_custom_call.1} parent=1 // pred_fallthru
      _
    // Predicated region
    $region14: #{tpu_custom_call.1} parent=1 // pred_check
      _
    $region15: #{tpu_custom_call.1} parent=1 // pred_check_branch
      %31 = sbr.rel (0) target = $region17
    $region16: #{tpu_custom_call.1} parent=1 // pred_region
      _
    $region17: #{tpu_custom_call.1} parent=1 // pred_fallthru
      _
    // Predicated region
    $region18: #{tpu_custom_call.1} parent=1 // pred_check
      _
    $region19: #{tpu_custom_call.1} parent=1 // pred_check_branch
      %33 = sbr.rel (0) target = $region21
    $region20: #{tpu_custom_call.1} parent=1 // pred_region
      _
    $region21: #{tpu_custom_call.1} parent=1 // pred_fallthru
      _
    // Predicated region
    $region22: #{tpu_custom_call.1} parent=1 // pred_check
      _
    $region23: #{tpu_custom_call.1} parent=1 // pred_check_branch
      %35 = sbr.rel (0) target = $region25
    $region24: #{tpu_custom_call.1} parent=1 // pred_region
      _
    $region25: #{tpu_custom_call.1} parent=1 // pred_fallthru
      _
    // Predicated region
    $region26: #{tpu_custom_call.1} parent=1 // pred_check
      _
    $region27: #{tpu_custom_call.1} parent=1 // pred_check_branch
      %37 = sbr.rel (0) target = $region29
    $region28: #{tpu_custom_call.1} parent=1 // pred_region
      _
    $region29: #{tpu_custom_call.1} parent=1 // pred_fallthru
      _
    // Predicated region
    $region30: #{tpu_custom_call.1} parent=1 // pred_check
      _
    $region31: #{tpu_custom_call.1} parent=1 // pred_check_branch
      %39 = sbr.rel (0) target = $region33
    $region32: #{tpu_custom_call.1} parent=1 // pred_region
      _
    $region33: #{tpu_custom_call.1} parent=1 // pred_fallthru
      _
    // Predicated region
    $region34: #{tpu_custom_call.1} parent=1 // pred_check
      _
    $region35: #{tpu_custom_call.1} parent=1 // pred_check_branch
      %41 = sbr.rel (0) target = $region37
    $region36: #{tpu_custom_call.1} parent=1 // pred_region
      _
    $region37: #{tpu_custom_call.1} parent=1 // pred_fallthru
      _
    // Predicated region
    $region38: #{tpu_custom_call.1} parent=1 // pred_check
      _
    $region39: #{tpu_custom_call.1} parent=1 // pred_check_branch
      %43 = sbr.rel (0) target = $region41
    $region40: #{tpu_custom_call.1} parent=1 // pred_region
      _
    $region41: #{tpu_custom_call.1} parent=1 // pred_fallthru
      _
    // Predicated region
    $region42: #{tpu_custom_call.1} parent=1 // pred_check
      _
    $region43: #{tpu_custom_call.1} parent=1 // pred_check_branch
      %45 = sbr.rel (0) target = $region45
    $region44: #{tpu_custom_call.1} parent=1 // pred_region
      _
    $region45: #{tpu_custom_call.1} parent=1 // pred_fallthru
      _
    // Predicated region
    $region46: #{tpu_custom_call.1} parent=1 // pred_check
      _
    $region47: #{tpu_custom_call.1} parent=1 // pred_check_branch
      %47 = sbr.rel (0) target = $region49
    $region48: #{tpu_custom_call.1} parent=1 // pred_region
      _
    $region49: #{tpu_custom_call.1} parent=1 // pred_fallthru
      _
    // Predicated region
    $region50: #{tpu_custom_call.1} parent=1 // pred_check
      _
    $region51: #{tpu_custom_call.1} parent=1 // pred_check_branch
      %49 = sbr.rel (0) target = $region53
    $region52: #{tpu_custom_call.1} parent=1 // pred_region
      _
    $region53: #{tpu_custom_call.1} parent=1 // pred_fallthru
      _
    // Predicated region
    $region54: #{tpu_custom_call.1} parent=1 // pred_check
      _
    $region55: #{tpu_custom_call.1} parent=1 // pred_check_branch
      %51 = sbr.rel (0) target = $region57
    $region56: #{tpu_custom_call.1} parent=1 // pred_region
      _
    $region57: #{tpu_custom_call.1} parent=1 // pred_fallthru
      _
    // Predicated region
    $region58: #{tpu_custom_call.1} parent=1 // pred_check
      _
    $region59: #{tpu_custom_call.1} parent=1 // pred_check_branch
      %53 = sbr.rel (0) target = $region61
    $region60: #{tpu_custom_call.1} parent=1 // pred_region
      _
    $region61: #{tpu_custom_call.1} parent=1 // pred_fallthru
      _
    // Predicated region
    $region62: #{tpu_custom_call.1} parent=1 // pred_check
      _
    $region63: #{tpu_custom_call.1} parent=1 // pred_check_branch
      %55 = sbr.rel (0) target = $region65
    $region64: #{tpu_custom_call.1} parent=1 // pred_region
      _
    $region65: #{tpu_custom_call.1} parent=1 // pred_fallthru
      _
    // Predicated region
    $region66: #{tpu_custom_call.1} parent=1 // pred_check
      _
    $region67: #{tpu_custom_call.1} parent=1 // pred_check_branch
      %57 = sbr.rel (0) target = $region69
    $region68: #{tpu_custom_call.1} parent=1 // pred_region
      %59 = vsyncadd [#allocation4], 0
      %s61 = sshll.u32 %s16, 4
      %s62 = int_to_ptr.vmem [resolvable:$true] %s61
      %64 = dma.vmem_to_smem %s62, 16, [#allocation2], [#allocation4]
    $region69: #{tpu_custom_call.1} parent=1 // pred_fallthru
      _
    // Predicated region
    $region70: #{tpu_custom_call.1} parent=1 // pred_check
      _
    $region71: #{tpu_custom_call.1} parent=1 // pred_check_branch
      %66 = sbr.rel (0) target = $region73
    $region72: #{tpu_custom_call.1} parent=1 // pred_region
      %68 = dma.done [#allocation4], 16
    $region73: #{tpu_custom_call.1} parent=1 // pred_fallthru
      _
    %69 = sfence
    %v70 = vld [vmem:[%s0] sm:$0xff]
    %v71 = vld [vmem:[%s0 + $0x8] sm:$0xff]
    %v72 = vld [vmem:[%s0 + $0x10] sm:$0xff]
    %v73 = vld [vmem:[%s0 + $0x18] sm:$0xff]
    %v74 = vld [vmem:[%s1] sm:$0xff]
    %v75 = vld [vmem:[%s1 + $0x8] sm:$0xff]
    %v76 = vld [vmem:[%s1 + $0x10] sm:$0xff]
    %v77 = vld [vmem:[%s1 + $0x18] sm:$0xff]
    %s78 = sld [smem:[#allocation2]]
    %s79 = sld [smem:[#allocation2 + $0x1]]
    %80 = vadd.xlane.f32.xlu0 %v70
    %v81 = vpop.xlane.xlu0 %80
    %82 = vadd.xlane.f32.xlu0 %v71
    %v83 = vpop.xlane.xlu0 %82
    %84 = vadd.xlane.f32.xlu0 %v72
    %v85 = vpop.xlane.xlu0 %84
    %86 = vadd.xlane.f32.xlu0 %v73
    %v87 = vpop.xlane.xlu0 %86
    %v88 = vrcp.pop 128.0
    %v89 = vmul.f32 128.0, %v88
    %v90 = vsub.f32 1.0, %v89
    %v91 = vmul.f32 %v88, %v90
    %v92 = vadd.f32 %v88, %v91
    %vm93 = vweird.f32 %v88
    %v94 = vsel %vm93, %v88, %v92
    %v95 = vmul.f32 %v81, %v94
    %v96 = vmul.f32 %v83, %v94
    %v97 = vmul.f32 %v85, %v94
    %v98 = vmul.f32 %v87, %v94
    %v99 = vsub.f32 %v70, %v95
    %v100 = vsub.f32 %v71, %v96
    %v101 = vsub.f32 %v72, %v97
    %v102 = vsub.f32 %v73, %v98
    %v103 = vmul.f32 %v99, %v99
    %v104 = vmul.f32 %v100, %v100
    %v105 = vmul.f32 %v101, %v101
    %v106 = vmul.f32 %v102, %v102
    %107 = vadd.xlane.f32.xlu0 %v103
    %v108 = vpop.xlane.xlu0 %107
    %109 = vadd.xlane.f32.xlu0 %v104
    %v110 = vpop.xlane.xlu0 %109
    %111 = vadd.xlane.f32.xlu0 %v105
    %v112 = vpop.xlane.xlu0 %111
    %113 = vadd.xlane.f32.xlu0 %v106
    %v114 = vpop.xlane.xlu0 %113
    %v115 = vmul.f32 %v108, 0.007874016
    %v116 = vmul.f32 %v110, 0.007874016
    %v117 = vmul.f32 %v112, 0.007874016
    %v118 = vmul.f32 %v114, 0.007874016
    %v119 = vstv %s78
    %v120 = vmul.f32 %v119, %v99
    %v121 = vmul.f32 %v119, %v100
    %v122 = vmul.f32 %v119, %v101
    %v123 = vmul.f32 %v119, %v102
    %v124 = vadd.f32 %v115, 1e-05
    %v125 = vadd.f32 %v116, 1e-05
    %v126 = vadd.f32 %v117, 1e-05
    %v127 = vadd.f32 %v118, 1e-05
    %v128 = vrsqrt.pop %v124
    %v129 = vmul.f32 %v128, %v124
    %v130 = vmul.f32 %v129, %v128
    %v131 = vmul.f32 0.5, %v130
    %v132 = vsub.f32 1.5, %v131
    %v133 = vmul.f32 %v128, %v132
    %vm134 = vweird.f32 %v124
    %vm135 = vweird.f32 %v128
    %vm136 = vmor %vm134, %vm135
    %v137 = vsel %vm136, %v128, %v133
    %v138 = vrsqrt.pop %v125
    %v139 = vmul.f32 %v138, %v125
    %v140 = vmul.f32 %v139, %v138
    %v141 = vmul.f32 0.5, %v140
    %v142 = vsub.f32 1.5, %v141
    %v143 = vmul.f32 %v138, %v142
    %vm144 = vweird.f32 %v125
    %vm145 = vweird.f32 %v138
    %vm146 = vmor %vm144, %vm145
    %v147 = vsel %vm146, %v138, %v143
    %v148 = vrsqrt.pop %v126
    %v149 = vmul.f32 %v148, %v126
    %v150 = vmul.f32 %v149, %v148
    %v151 = vmul.f32 0.5, %v150
    %v152 = vsub.f32 1.5, %v151
    %v153 = vmul.f32 %v148, %v152
    %vm154 = vweird.f32 %v126
    %vm155 = vweird.f32 %v148
    %vm156 = vmor %vm154, %vm155
    %v157 = vsel %vm156, %v148, %v153
    %v158 = vrsqrt.pop %v127
    %v159 = vmul.f32 %v158, %v127
    %v160 = vmul.f32 %v159, %v158
    %v161 = vmul.f32 0.5, %v160
    %v162 = vsub.f32 1.5, %v161
    %v163 = vmul.f32 %v158, %v162
    %vm164 = vweird.f32 %v127
    %vm165 = vweird.f32 %v158
    %vm166 = vmor %vm164, %vm165
    %v167 = vsel %vm166, %v158, %v163
    %v168 = vmul.f32 %v120, %v137
    %v169 = vmul.f32 %v121, %v147
    %v170 = vmul.f32 %v122, %v157
    %v171 = vmul.f32 %v123, %v167
    %v172 = vstv %s79
    %v173 = vadd.f32 %v168, %v172
    %v174 = vadd.f32 %v169, %v172
    %v175 = vadd.f32 %v170, %v172
    %v176 = vadd.f32 %v171, %v172
    %v177 = vld [vmem:[%s6] sm:$0x1]
    %v179 = vperm.slane %v177, 0
    %v181 = vld [vmem:[%s2] sm:$0xff]
    %v182 = vld [vmem:[%s2 + $0x8] sm:$0xff]
    %v183 = vld [vmem:[%s2 + $0x10] sm:$0xff]
    %v184 = vld [vmem:[%s2 + $0x18] sm:$0xff]
    %v185 = vld [vmem:[%s2 + $0x20] sm:$0xff]
    %v186 = vld [vmem:[%s2 + $0x28] sm:$0xff]
    %v187 = vld [vmem:[%s2 + $0x30] sm:$0xff]
    %v188 = vld [vmem:[%s2 + $0x38] sm:$0xff]
    %v189 = vld [vmem:[%s2 + $0x40] sm:$0xff]
    %v190 = vld [vmem:[%s2 + $0x48] sm:$0xff]
    %v191 = vld [vmem:[%s2 + $0x50] sm:$0xff]
    %v192 = vld [vmem:[%s2 + $0x58] sm:$0xff]
    %v193 = vld [vmem:[%s2 + $0x60] sm:$0xff]
    %v194 = vld [vmem:[%s2 + $0x68] sm:$0xff]
    %v195 = vld [vmem:[%s2 + $0x70] sm:$0xff]
    %v196 = vld [vmem:[%s2 + $0x78] sm:$0xff]
    %197 = vmatpush.msra.mxu0 %v196
    %198 = vmatpush.msra.mxu0 %v195
    %199 = vmatpush.msra.mxu0 %v194
    %200 = vmatpush.msra.mxu0 %v193
    %201 = vmatpush.msra.mxu0 %v192
    %202 = vmatpush.msra.mxu0 %v191
    %203 = vmatpush.msra.mxu0 %v190
    %204 = vmatpush.msra.mxu0 %v189
    %205 = vmatpush.msra.mxu0 %v188
    %206 = vmatpush.msra.mxu0 %v187
    %207 = vmatpush.msra.mxu0 %v186
    %208 = vmatpush.msra.mxu0 %v185
    %209 = vmatpush.msra.mxu0 %v184
    %210 = vmatpush.msra.mxu0 %v183
    %211 = vmatpush.msra.mxu0 %v182
    %212 = vmatpush.msra.mxu0 %v181
    %213 = vmatmul.f32.gmra.mxu0 %v173
    %v214 = vpop.f32.mrf.mxu0
    %v215 = vadd.f32 0.0, %v214
    %216 = vmatmul.f32.gmra.mxu0 %v174
    %v217 = vpop.f32.mrf.mxu0
    %v218 = vadd.f32 0.0, %v217
    %219 = vmatmul.f32.gmra.mxu0 %v175
    %v220 = vpop.f32.mrf.mxu0
    %v221 = vadd.f32 0.0, %v220
    %222 = vmatmul.f32.gmra.mxu0 %v176
    %v223 = vpop.f32.mrf.mxu0
    %v224 = vadd.f32 0.0, %v223
    %225 = vdwg.mxu0
    %v226 = vld [vmem:[%s3] sm:$0xff]
    %v227 = vld [vmem:[%s3 + $0x8] sm:$0xff]
    %v228 = vld [vmem:[%s3 + $0x10] sm:$0xff]
    %v229 = vld [vmem:[%s3 + $0x18] sm:$0xff]
    %v230 = vld [vmem:[%s3 + $0x20] sm:$0xff]
    %v231 = vld [vmem:[%s3 + $0x28] sm:$0xff]
    %v232 = vld [vmem:[%s3 + $0x30] sm:$0xff]
    %v233 = vld [vmem:[%s3 + $0x38] sm:$0xff]
    %v234 = vld [vmem:[%s3 + $0x40] sm:$0xff]
    %v235 = vld [vmem:[%s3 + $0x48] sm:$0xff]
    %v236 = vld [vmem:[%s3 + $0x50] sm:$0xff]
    %v237 = vld [vmem:[%s3 + $0x58] sm:$0xff]
    %v238 = vld [vmem:[%s3 + $0x60] sm:$0xff]
    %v239 = vld [vmem:[%s3 + $0x68] sm:$0xff]
    %v240 = vld [vmem:[%s3 + $0x70] sm:$0xff]
    %v241 = vld [vmem:[%s3 + $0x78] sm:$0xff]
    %242 = vmatpush.msra.mxu0 %v241
    %243 = vmatpush.msra.mxu0 %v240
    %244 = vmatpush.msra.mxu0 %v239
    %245 = vmatpush.msra.mxu0 %v238
    %246 = vmatpush.msra.mxu0 %v237
    %247 = vmatpush.msra.mxu0 %v236
    %248 = vmatpush.msra.mxu0 %v235
    %249 = vmatpush.msra.mxu0 %v234
    %250 = vmatpush.msra.mxu0 %v233
    %251 = vmatpush.msra.mxu0 %v232
    %252 = vmatpush.msra.mxu0 %v231
    %253 = vmatpush.msra.mxu0 %v230
    %254 = vmatpush.msra.mxu0 %v229
    %255 = vmatpush.msra.mxu0 %v228
    %256 = vmatpush.msra.mxu0 %v227
    %257 = vmatpush.msra.mxu0 %v226
    %258 = vmatmul.f32.gmra.mxu0 %v173
    %v259 = vpop.f32.mrf.mxu0
    %v260 = vadd.f32 0.0, %v259
    %261 = vmatmul.f32.gmra.mxu0 %v174
    %v262 = vpop.f32.mrf.mxu0
    %v263 = vadd.f32 0.0, %v262
    %264 = vmatmul.f32.gmra.mxu0 %v175
    %v265 = vpop.f32.mrf.mxu0
    %v266 = vadd.f32 0.0, %v265
    %267 = vmatmul.f32.gmra.mxu0 %v176
    %v268 = vpop.f32.mrf.mxu0
    %v269 = vadd.f32 0.0, %v268
    %270 = vdwg.mxu0
    %v271 = vld [vmem:[%s4] sm:$0xff]
    %v272 = vld [vmem:[%s4 + $0x8] sm:$0xff]
    %v273 = vld [vmem:[%s4 + $0x10] sm:$0xff]
    %v274 = vld [vmem:[%s4 + $0x18] sm:$0xff]
    %v275 = vld [vmem:[%s4 + $0x20] sm:$0xff]
    %v276 = vld [vmem:[%s4 + $0x28] sm:$0xff]
    %v277 = vld [vmem:[%s4 + $0x30] sm:$0xff]
    %v278 = vld [vmem:[%s4 + $0x38] sm:$0xff]
    %v279 = vld [vmem:[%s4 + $0x40] sm:$0xff]
    %v280 = vld [vmem:[%s4 + $0x48] sm:$0xff]
    %v281 = vld [vmem:[%s4 + $0x50] sm:$0xff]
    %v282 = vld [vmem:[%s4 + $0x58] sm:$0xff]
    %v283 = vld [vmem:[%s4 + $0x60] sm:$0xff]
    %v284 = vld [vmem:[%s4 + $0x68] sm:$0xff]
    %v285 = vld [vmem:[%s4 + $0x70] sm:$0xff]
    %v286 = vld [vmem:[%s4 + $0x78] sm:$0xff]
    %287 = vmatpush.msra.mxu0 %v286
    %288 = vmatpush.msra.mxu0 %v285
    %289 = vmatpush.msra.mxu0 %v284
    %290 = vmatpush.msra.mxu0 %v283
    %291 = vmatpush.msra.mxu0 %v282
    %292 = vmatpush.msra.mxu0 %v281
    %293 = vmatpush.msra.mxu0 %v280
    %294 = vmatpush.msra.mxu0 %v279
    %295 = vmatpush.msra.mxu0 %v278
    %296 = vmatpush.msra.mxu0 %v277
    %297 = vmatpush.msra.mxu0 %v276
    %298 = vmatpush.msra.mxu0 %v275
    %299 = vmatpush.msra.mxu0 %v274
    %300 = vmatpush.msra.mxu0 %v273
    %301 = vmatpush.msra.mxu0 %v272
    %302 = vmatpush.msra.mxu0 %v271
    %303 = vmatmul.f32.gmra.mxu0 %v173
    %v304 = vpop.f32.mrf.mxu0
    %v305 = vadd.f32 0.0, %v304
    %306 = vmatmul.f32.gmra.mxu0 %v174
    %v307 = vpop.f32.mrf.mxu0
    %v308 = vadd.f32 0.0, %v307
    %309 = vmatmul.f32.gmra.mxu0 %v175
    %v310 = vpop.f32.mrf.mxu0
    %v311 = vadd.f32 0.0, %v310
    %312 = vmatmul.f32.gmra.mxu0 %v176
    %v313 = vpop.f32.mrf.mxu0
    %v314 = vadd.f32 0.0, %v313
    %315 = vdwg.mxu0
    %vm316 = vcmask 261120
    %v318 = vsel %vm316, %v215, 0
    %v321 = vsel %vm316, %v218, 0
    %v324 = vsel %vm316, %v260, 0
    %v327 = vsel %vm316, %v263, 0
    %329 = vmatpush.xpose.msra.mxu0 0.0
    %330 = vmatpush.xpose.msra.mxu0 0.0
    %331 = vmatpush.xpose.msra.mxu0 0.0
    %332 = vmatpush.xpose.msra.mxu0 0.0
    %333 = vmatpush.xpose.msra.mxu0 0.0
    %334 = vmatpush.xpose.msra.mxu0 0.0
    %335 = vmatpush.xpose.msra.mxu0 0.0
    %336 = vmatpush.xpose.msra.mxu0 0.0
    %337 = vmatpush.xpose.msra.mxu0 0.0
    %338 = vmatpush.xpose.msra.mxu0 0.0
    %339 = vmatpush.xpose.msra.mxu0 0.0
    %340 = vmatpush.xpose.msra.mxu0 0.0
    %341 = vmatpush.xpose.msra.mxu0 0.0
    %342 = vmatpush.xpose.msra.mxu0 0.0
    %343 = vmatpush.xpose.msra.mxu0 %v327
    %344 = vmatpush.xpose.msra.mxu0 %v324
    %345 = vmatmul.f32.gmra.mxu0 %v318
    %v346 = vpop.f32.mrf.mxu0
    %v347 = vadd.f32 0.0, %v346
    %348 = vmatmul.f32.gmra.mxu0 %v321
    %v349 = vpop.f32.mrf.mxu0
    %v350 = vadd.f32 0.0, %v349
    %351 = vdwg.mxu0
    %v352 = vmul.f32 %v347, 0.17677669
    %v353 = vmul.f32 %v350, 0.17677669
    %vm354 = vcmask 130048
    %v355 = vsel %vm354, %v352, -inf
    %356 = vmax.xlane.f32.xlu0 %v355
    %v357 = vpop.xlane.xlu0 %356
    %v358 = vsel %vm354, %v353, -inf
    %359 = vmax.xlane.f32.xlu0 %v358
    %v360 = vpop.xlane.xlu0 %359
    %v361 = vsub.f32 %v352, %v357
    %v362 = vsub.f32 %v353, %v360
    %v363 = vmul.f32 %v361, 1.442695
    %v364 = vpow.pop %v363
    %v365 = vmul.f32 %v362, 1.442695
    %v366 = vpow.pop %v365
    %v367 = vsel %vm354, %v364, 0.0
    %368 = vadd.xlane.f32.xlu0 %v367
    %v369 = vpop.xlane.xlu0 %368
    %v370 = vsel %vm354, %v366, 0.0
    %371 = vadd.xlane.f32.xlu0 %v370
    %v372 = vpop.xlane.xlu0 %371
    %v374 = vsel %vm354, %v364, 0
    %v377 = vsel %vm354, %v366, 0
    %379 = vmatpush.msra.mxu0 0.0
    %380 = vmatpush.msra.mxu0 0.0
    %381 = vmatpush.msra.mxu0 0.0
    %382 = vmatpush.msra.mxu0 0.0
    %383 = vmatpush.msra.mxu0 0.0
    %384 = vmatpush.msra.mxu0 0.0
    %385 = vmatpush.msra.mxu0 0.0
    %386 = vmatpush.msra.mxu0 0.0
    %387 = vmatpush.msra.mxu0 0.0
    %388 = vmatpush.msra.mxu0 0.0
    %389 = vmatpush.msra.mxu0 0.0
    %390 = vmatpush.msra.mxu0 0.0
    %391 = vmatpush.msra.mxu0 0.0
    %392 = vmatpush.msra.mxu0 0.0
    %393 = vmatpush.msra.mxu0 %v308
    %394 = vmatpush.msra.mxu0 %v305
    %395 = vmatmul.f32.gmra.mxu0 %v374
    %v396 = vpop.f32.mrf.mxu0
    %v397 = vadd.f32 0.0, %v396
    %398 = vmatmul.f32.gmra.mxu0 %v377
    %v399 = vpop.f32.mrf.mxu0
    %v400 = vadd.f32 0.0, %v399
    %401 = vdwg.mxu0
    %v402 = vrcp.pop %v369
    %v403 = vrcp.pop %v372
    %v404 = vmul.f32 %v397, %v402
    %v405 = vmul.f32 %v400, %v403
    %v407 = vsel %vm316, %v221, 0
    %v410 = vsel %vm316, %v224, 0
    %v413 = vsel %vm316, %v266, 0
    %v416 = vsel %vm316, %v269, 0
    %418 = vmatpush.xpose.msra.mxu0 0.0
    %419 = vmatpush.xpose.msra.mxu0 0.0
    %420 = vmatpush.xpose.msra.mxu0 0.0
    %421 = vmatpush.xpose.msra.mxu0 0.0
    %422 = vmatpush.xpose.msra.mxu0 0.0
    %423 = vmatpush.xpose.msra.mxu0 0.0
    %424 = vmatpush.xpose.msra.mxu0 0.0
    %425 = vmatpush.xpose.msra.mxu0 0.0
    %426 = vmatpush.xpose.msra.mxu0 0.0
    %427 = vmatpush.xpose.msra.mxu0 0.0
    %428 = vmatpush.xpose.msra.mxu0 0.0
    %429 = vmatpush.xpose.msra.mxu0 0.0
    %430 = vmatpush.xpose.msra.mxu0 0.0
    %431 = vmatpush.xpose.msra.mxu0 0.0
    %432 = vmatpush.xpose.msra.mxu0 %v416
    %433 = vmatpush.xpose.msra.mxu0 %v413
    %434 = vmatmul.f32.gmra.mxu0 %v407
    %v435 = vpop.f32.mrf.mxu0
    %v436 = vadd.f32 0.0, %v435
    %437 = vmatmul.f32.gmra.mxu0 %v410
    %v438 = vpop.f32.mrf.mxu0
    %v439 = vadd.f32 0.0, %v438
    %440 = vdwg.mxu0
    %v441 = vmul.f32 %v436, 0.17677669
    %v442 = vmul.f32 %v439, 0.17677669
    %v443 = vsel %vm354, %v441, -inf
    %444 = vmax.xlane.f32.xlu0 %v443
    %v445 = vpop.xlane.xlu0 %444
    %v446 = vsel %vm354, %v442, -inf
    %447 = vmax.xlane.f32.xlu0 %v446
    %v448 = vpop.xlane.xlu0 %447
    %v449 = vsub.f32 %v441, %v445
    %v450 = vsub.f32 %v442, %v448
    %v451 = vmul.f32 %v449, 1.442695
    %v452 = vpow.pop %v451
    %v453 = vmul.f32 %v450, 1.442695
    %v454 = vpow.pop %v453
    %v455 = vsel %vm354, %v452, 0.0
    %456 = vadd.xlane.f32.xlu0 %v455
    %v457 = vpop.xlane.xlu0 %456
    %v458 = vsel %vm354, %v454, 0.0
    %459 = vadd.xlane.f32.xlu0 %v458
    %v460 = vpop.xlane.xlu0 %459
    %v462 = vsel %vm354, %v452, 0
    %v465 = vsel %vm354, %v454, 0
    %467 = vmatpush.msra.mxu0 0.0
    %468 = vmatpush.msra.mxu0 0.0
    %469 = vmatpush.msra.mxu0 0.0
    %470 = vmatpush.msra.mxu0 0.0
    %471 = vmatpush.msra.mxu0 0.0
    %472 = vmatpush.msra.mxu0 0.0
    %473 = vmatpush.msra.mxu0 0.0
    %474 = vmatpush.msra.mxu0 0.0
    %475 = vmatpush.msra.mxu0 0.0
    %476 = vmatpush.msra.mxu0 0.0
    %477 = vmatpush.msra.mxu0 0.0
    %478 = vmatpush.msra.mxu0 0.0
    %479 = vmatpush.msra.mxu0 0.0
    %480 = vmatpush.msra.mxu0 0.0
    %481 = vmatpush.msra.mxu0 %v314
    %482 = vmatpush.msra.mxu0 %v311
    %483 = vmatmul.f32.gmra.mxu0 %v462
    %v484 = vpop.f32.mrf.mxu0
    %v485 = vadd.f32 0.0, %v484
    %486 = vmatmul.f32.gmra.mxu0 %v465
    %v487 = vpop.f32.mrf.mxu0
    %v488 = vadd.f32 0.0, %v487
    %489 = vdwg.mxu0
    %v490 = vrcp.pop %v457
    %v491 = vrcp.pop %v460
    %v492 = vmul.f32 %v485, %v490
    %v493 = vmul.f32 %v488, %v491
    %v494 = vld [vmem:[%s5] sm:$0xff]
    %v495 = vld [vmem:[%s5 + $0x8] sm:$0xff]
    %v496 = vld [vmem:[%s5 + $0x10] sm:$0xff]
    %v497 = vld [vmem:[%s5 + $0x18] sm:$0xff]
    %v499 = vsel %vm316, %v404, 0
    %v502 = vsel %vm316, %v405, 0
    %v505 = vsel %vm316, %v492, 0
    %v508 = vsel %vm316, %v493, 0
    %510 = vmatpush.msra.mxu0 0.0
    %511 = vmatpush.msra.mxu0 0.0
    %512 = vmatpush.msra.mxu0 0.0
    %513 = vmatpush.msra.mxu0 0.0
    %514 = vmatpush.msra.mxu0 0.0
    %515 = vmatpush.msra.mxu0 0.0
    %516 = vmatpush.msra.mxu0 0.0
    %517 = vmatpush.msra.mxu0 0.0
    %518 = vmatpush.msra.mxu0 0.0
    %519 = vmatpush.msra.mxu0 0.0
    %520 = vmatpush.msra.mxu0 0.0
    %521 = vmatpush.msra.mxu0 0.0
    %522 = vmatpush.msra.mxu0 %v497
    %523 = vmatpush.msra.mxu0 %v496
    %524 = vmatpush.msra.mxu0 %v495
    %525 = vmatpush.msra.mxu0 %v494
    %526 = vmatmul.f32.gmra.mxu0 %v499
    %v527 = vpop.f32.mrf.mxu0
    %v528 = vadd.f32 0.0, %v527
    %529 = vmatmul.f32.gmra.mxu0 %v502
    %v530 = vpop.f32.mrf.mxu0
    %v531 = vadd.f32 0.0, %v530
    %532 = vmatmul.f32.gmra.mxu0 %v505
    %v533 = vpop.f32.mrf.mxu0
    %v534 = vadd.f32 0.0, %v533
    %535 = vmatmul.f32.gmra.mxu0 %v508
    %v536 = vpop.f32.mrf.mxu0
    %v537 = vadd.f32 0.0, %v536
    %538 = vdwg.mxu0
    %v539 = vadd.f32 %v179, %v528
    %v540 = vadd.f32 %v179, %v531
    %v541 = vadd.f32 %v179, %v534
    %v542 = vadd.f32 %v179, %v537
    %s543 = scalar_lea.vmem %s2, 128
    %v544 = vld [vmem:[%s543] sm:$0xff]
    %v545 = vld [vmem:[%s543 + $0x8] sm:$0xff]
    %v546 = vld [vmem:[%s543 + $0x10] sm:$0xff]
    %v547 = vld [vmem:[%s543 + $0x18] sm:$0xff]
    %v548 = vld [vmem:[%s543 + $0x20] sm:$0xff]
    %v549 = vld [vmem:[%s543 + $0x28] sm:$0xff]
    %v550 = vld [vmem:[%s543 + $0x30] sm:$0xff]
    %v551 = vld [vmem:[%s543 + $0x38] sm:$0xff]
    %v552 = vld [vmem:[%s543 + $0x40] sm:$0xff]
    %v553 = vld [vmem:[%s543 + $0x48] sm:$0xff]
    %v554 = vld [vmem:[%s543 + $0x50] sm:$0xff]
    %v555 = vld [vmem:[%s543 + $0x58] sm:$0xff]
    %v556 = vld [vmem:[%s543 + $0x60] sm:$0xff]
    %v557 = vld [vmem:[%s543 + $0x68] sm:$0xff]
    %v558 = vld [vmem:[%s543 + $0x70] sm:$0xff]
    %v559 = vld [vmem:[%s543 + $0x78] sm:$0xff]
    %560 = vmatpush.msra.mxu0 %v559
    %561 = vmatpush.msra.mxu0 %v558
    %562 = vmatpush.msra.mxu0 %v557
    %563 = vmatpush.msra.mxu0 %v556
    %564 = vmatpush.msra.mxu0 %v555
    %565 = vmatpush.msra.mxu0 %v554
    %566 = vmatpush.msra.mxu0 %v553
    %567 = vmatpush.msra.mxu0 %v552
    %568 = vmatpush.msra.mxu0 %v551
    %569 = vmatpush.msra.mxu0 %v550
    %570 = vmatpush.msra.mxu0 %v549
    %571 = vmatpush.msra.mxu0 %v548
    %572 = vmatpush.msra.mxu0 %v547
    %573 = vmatpush.msra.mxu0 %v546
    %574 = vmatpush.msra.mxu0 %v545
    %575 = vmatpush.msra.mxu0 %v544
    %576 = vmatmul.f32.gmra.mxu0 %v173
    %v577 = vpop.f32.mrf.mxu0
    %v578 = vadd.f32 0.0, %v577
    %579 = vmatmul.f32.gmra.mxu0 %v174
    %v580 = vpop.f32.mrf.mxu0
    %v581 = vadd.f32 0.0, %v580
    %582 = vmatmul.f32.gmra.mxu0 %v175
    %v583 = vpop.f32.mrf.mxu0
    %v584 = vadd.f32 0.0, %v583
    %585 = vmatmul.f32.gmra.mxu0 %v176
    %v586 = vpop.f32.mrf.mxu0
    %v587 = vadd.f32 0.0, %v586
    %588 = vdwg.mxu0
    %s589 = scalar_lea.vmem %s3, 128
    %v590 = vld [vmem:[%s589] sm:$0xff]
    %v591 = vld [vmem:[%s589 + $0x8] sm:$0xff]
    %v592 = vld [vmem:[%s589 + $0x10] sm:$0xff]
    %v593 = vld [vmem:[%s589 + $0x18] sm:$0xff]
    %v594 = vld [vmem:[%s589 + $0x20] sm:$0xff]
    %v595 = vld [vmem:[%s589 + $0x28] sm:$0xff]
    %v596 = vld [vmem:[%s589 + $0x30] sm:$0xff]
    %v597 = vld [vmem:[%s589 + $0x38] sm:$0xff]
    %v598 = vld [vmem:[%s589 + $0x40] sm:$0xff]
    %v599 = vld [vmem:[%s589 + $0x48] sm:$0xff]
    %v600 = vld [vmem:[%s589 + $0x50] sm:$0xff]
    %v601 = vld [vmem:[%s589 + $0x58] sm:$0xff]
    %v602 = vld [vmem:[%s589 + $0x60] sm:$0xff]
    %v603 = vld [vmem:[%s589 + $0x68] sm:$0xff]
    %v604 = vld [vmem:[%s589 + $0x70] sm:$0xff]
    %v605 = vld [vmem:[%s589 + $0x78] sm:$0xff]
    %606 = vmatpush.msra.mxu0 %v605
    %607 = vmatpush.msra.mxu0 %v604
    %608 = vmatpush.msra.mxu0 %v603
    %609 = vmatpush.msra.mxu0 %v602
    %610 = vmatpush.msra.mxu0 %v601
    %611 = vmatpush.msra.mxu0 %v600
    %612 = vmatpush.msra.mxu0 %v599
    %613 = vmatpush.msra.mxu0 %v598
    %614 = vmatpush.msra.mxu0 %v597
    %615 = vmatpush.msra.mxu0 %v596
    %616 = vmatpush.msra.mxu0 %v595
    %617 = vmatpush.msra.mxu0 %v594
    %618 = vmatpush.msra.mxu0 %v593
    %619 = vmatpush.msra.mxu0 %v592
    %620 = vmatpush.msra.mxu0 %v591
    %621 = vmatpush.msra.mxu0 %v590
    %622 = vmatmul.f32.gmra.mxu0 %v173
    %v623 = vpop.f32.mrf.mxu0
    %v624 = vadd.f32 0.0, %v623
    %625 = vmatmul.f32.gmra.mxu0 %v174
    %v626 = vpop.f32.mrf.mxu0
    %v627 = vadd.f32 0.0, %v626
    %628 = vmatmul.f32.gmra.mxu0 %v175
    %v629 = vpop.f32.mrf.mxu0
    %v630 = vadd.f32 0.0, %v629
    %631 = vmatmul.f32.gmra.mxu0 %v176
    %v632 = vpop.f32.mrf.mxu0
    %v633 = vadd.f32 0.0, %v632
    %634 = vdwg.mxu0
    %s635 = scalar_lea.vmem %s4, 128
    %v636 = vld [vmem:[%s635] sm:$0xff]
    %v637 = vld [vmem:[%s635 + $0x8] sm:$0xff]
    %v638 = vld [vmem:[%s635 + $0x10] sm:$0xff]
    %v639 = vld [vmem:[%s635 + $0x18] sm:$0xff]
    %v640 = vld [vmem:[%s635 + $0x20] sm:$0xff]
    %v641 = vld [vmem:[%s635 + $0x28] sm:$0xff]
    %v642 = vld [vmem:[%s635 + $0x30] sm:$0xff]
    %v643 = vld [vmem:[%s635 + $0x38] sm:$0xff]
    %v644 = vld [vmem:[%s635 + $0x40] sm:$0xff]
    %v645 = vld [vmem:[%s635 + $0x48] sm:$0xff]
    %v646 = vld [vmem:[%s635 + $0x50] sm:$0xff]
    %v647 = vld [vmem:[%s635 + $0x58] sm:$0xff]
    %v648 = vld [vmem:[%s635 + $0x60] sm:$0xff]
    %v649 = vld [vmem:[%s635 + $0x68] sm:$0xff]
    %v650 = vld [vmem:[%s635 + $0x70] sm:$0xff]
    %v651 = vld [vmem:[%s635 + $0x78] sm:$0xff]
    %652 = vmatpush.msra.mxu0 %v651
    %653 = vmatpush.msra.mxu0 %v650
    %654 = vmatpush.msra.mxu0 %v649
    %655 = vmatpush.msra.mxu0 %v648
    %656 = vmatpush.msra.mxu0 %v647
    %657 = vmatpush.msra.mxu0 %v646
    %658 = vmatpush.msra.mxu0 %v645
    %659 = vmatpush.msra.mxu0 %v644
    %660 = vmatpush.msra.mxu0 %v643
    %661 = vmatpush.msra.mxu0 %v642
    %662 = vmatpush.msra.mxu0 %v641
    %663 = vmatpush.msra.mxu0 %v640
    %664 = vmatpush.msra.mxu0 %v639
    %665 = vmatpush.msra.mxu0 %v638
    %666 = vmatpush.msra.mxu0 %v637
    %667 = vmatpush.msra.mxu0 %v636
    %668 = vmatmul.f32.gmra.mxu0 %v173
    %v669 = vpop.f32.mrf.mxu0
    %v670 = vadd.f32 0.0, %v669
    %671 = vmatmul.f32.gmra.mxu0 %v174
    %v672 = vpop.f32.mrf.mxu0
    %v673 = vadd.f32 0.0, %v672
    %674 = vmatmul.f32.gmra.mxu0 %v175
    %v675 = vpop.f32.mrf.mxu0
    %v676 = vadd.f32 0.0, %v675
    %677 = vmatmul.f32.gmra.mxu0 %v176
    %v678 = vpop.f32.mrf.mxu0
    %v679 = vadd.f32 0.0, %v678
    %680 = vdwg.mxu0
    %v682 = vsel %vm316, %v578, 0
    %v685 = vsel %vm316, %v581, 0
    %v688 = vsel %vm316, %v624, 0
    %v691 = vsel %vm316, %v627, 0
    %693 = vmatpush.xpose.msra.mxu0 0.0
    %694 = vmatpush.xpose.msra.mxu0 0.0
    %695 = vmatpush.xpose.msra.mxu0 0.0
    %696 = vmatpush.xpose.msra.mxu0 0.0
    %697 = vmatpush.xpose.msra.mxu0 0.0
    %698 = vmatpush.xpose.msra.mxu0 0.0
    %699 = vmatpush.xpose.msra.mxu0 0.0
    %700 = vmatpush.xpose.msra.mxu0 0.0
    %701 = vmatpush.xpose.msra.mxu0 0.0
    %702 = vmatpush.xpose.msra.mxu0 0.0
    %703 = vmatpush.xpose.msra.mxu0 0.0
    %704 = vmatpush.xpose.msra.mxu0 0.0
    %705 = vmatpush.xpose.msra.mxu0 0.0
    %706 = vmatpush.xpose.msra.mxu0 0.0
    %707 = vmatpush.xpose.msra.mxu0 %v691
    %708 = vmatpush.xpose.msra.mxu0 %v688
    %709 = vmatmul.f32.gmra.mxu0 %v682
    %v710 = vpop.f32.mrf.mxu0
    %v711 = vadd.f32 0.0, %v710
    %712 = vmatmul.f32.gmra.mxu0 %v685
    %v713 = vpop.f32.mrf.mxu0
    %v714 = vadd.f32 0.0, %v713
    %715 = vdwg.mxu0
    %v716 = vmul.f32 %v711, 0.17677669
    %v717 = vmul.f32 %v714, 0.17677669
    %v718 = vsel %vm354, %v716, -inf
    %719 = vmax.xlane.f32.xlu0 %v718
    %v720 = vpop.xlane.xlu0 %719
    %v721 = vsel %vm354, %v717, -inf
    %722 = vmax.xlane.f32.xlu0 %v721
    %v723 = vpop.xlane.xlu0 %722
    %v724 = vsub.f32 %v716, %v720
    %v725 = vsub.f32 %v717, %v723
    %v726 = vmul.f32 %v724, 1.442695
    %v727 = vpow.pop %v726
    %v728 = vmul.f32 %v725, 1.442695
    %v729 = vpow.pop %v728
    %v730 = vsel %vm354, %v727, 0.0
    %731 = vadd.xlane.f32.xlu0 %v730
    %v732 = vpop.xlane.xlu0 %731
    %v733 = vsel %vm354, %v729, 0.0
    %734 = vadd.xlane.f32.xlu0 %v733
    %v735 = vpop.xlane.xlu0 %734
    %v737 = vsel %vm354, %v727, 0
    %v740 = vsel %vm354, %v729, 0
    %742 = vmatpush.msra.mxu0 0.0
    %743 = vmatpush.msra.mxu0 0.0
    %744 = vmatpush.msra.mxu0 0.0
    %745 = vmatpush.msra.mxu0 0.0
    %746 = vmatpush.msra.mxu0 0.0
    %747 = vmatpush.msra.mxu0 0.0
    %748 = vmatpush.msra.mxu0 0.0
    %749 = vmatpush.msra.mxu0 0.0
    %750 = vmatpush.msra.mxu0 0.0
    %751 = vmatpush.msra.mxu0 0.0
    %752 = vmatpush.msra.mxu0 0.0
    %753 = vmatpush.msra.mxu0 0.0
    %754 = vmatpush.msra.mxu0 0.0
    %755 = vmatpush.msra.mxu0 0.0
    %756 = vmatpush.msra.mxu0 %v673
    %757 = vmatpush.msra.mxu0 %v670
    %758 = vmatmul.f32.gmra.mxu0 %v737
    %v759 = vpop.f32.mrf.mxu0
    %v760 = vadd.f32 0.0, %v759
    %761 = vmatmul.f32.gmra.mxu0 %v740
    %v762 = vpop.f32.mrf.mxu0
    %v763 = vadd.f32 0.0, %v762
    %764 = vdwg.mxu0
    %v765 = vrcp.pop %v732
    %v766 = vrcp.pop %v735
    %v767 = vmul.f32 %v760, %v765
    %v768 = vmul.f32 %v763, %v766
    %v770 = vsel %vm316, %v584, 0
    %v773 = vsel %vm316, %v587, 0
    %v776 = vsel %vm316, %v630, 0
    %v779 = vsel %vm316, %v633, 0
    %781 = vmatpush.xpose.msra.mxu0 0.0
    %782 = vmatpush.xpose.msra.mxu0 0.0
    %783 = vmatpush.xpose.msra.mxu0 0.0
    %784 = vmatpush.xpose.msra.mxu0 0.0
    %785 = vmatpush.xpose.msra.mxu0 0.0
    %786 = vmatpush.xpose.msra.mxu0 0.0
    %787 = vmatpush.xpose.msra.mxu0 0.0
    %788 = vmatpush.xpose.msra.mxu0 0.0
    %789 = vmatpush.xpose.msra.mxu0 0.0
    %790 = vmatpush.xpose.msra.mxu0 0.0
    %791 = vmatpush.xpose.msra.mxu0 0.0
    %792 = vmatpush.xpose.msra.mxu0 0.0
    %793 = vmatpush.xpose.msra.mxu0 0.0
    %794 = vmatpush.xpose.msra.mxu0 0.0
    %795 = vmatpush.xpose.msra.mxu0 %v779
    %796 = vmatpush.xpose.msra.mxu0 %v776
    %797 = vmatmul.f32.gmra.mxu0 %v770
    %v798 = vpop.f32.mrf.mxu0
    %v799 = vadd.f32 0.0, %v798
    %800 = vmatmul.f32.gmra.mxu0 %v773
    %v801 = vpop.f32.mrf.mxu0
    %v802 = vadd.f32 0.0, %v801
    %803 = vdwg.mxu0
    %v804 = vmul.f32 %v799, 0.17677669
    %v805 = vmul.f32 %v802, 0.17677669
    %v806 = vsel %vm354, %v804, -inf
    %807 = vmax.xlane.f32.xlu0 %v806
    %v808 = vpop.xlane.xlu0 %807
    %v809 = vsel %vm354, %v805, -inf
    %810 = vmax.xlane.f32.xlu0 %v809
    %v811 = vpop.xlane.xlu0 %810
    %v812 = vsub.f32 %v804, %v808
    %v813 = vsub.f32 %v805, %v811
    %v814 = vmul.f32 %v812, 1.442695
    %v815 = vpow.pop %v814
    %v816 = vmul.f32 %v813, 1.442695
    %v817 = vpow.pop %v816
    %v818 = vsel %vm354, %v815, 0.0
    %819 = vadd.xlane.f32.xlu0 %v818
    %v820 = vpop.xlane.xlu0 %819
    %v821 = vsel %vm354, %v817, 0.0
    %822 = vadd.xlane.f32.xlu0 %v821
    %v823 = vpop.xlane.xlu0 %822
    %v825 = vsel %vm354, %v815, 0
    %v828 = vsel %vm354, %v817, 0
    %830 = vmatpush.msra.mxu0 0.0
    %831 = vmatpush.msra.mxu0 0.0
    %832 = vmatpush.msra.mxu0 0.0
    %833 = vmatpush.msra.mxu0 0.0
    %834 = vmatpush.msra.mxu0 0.0
    %835 = vmatpush.msra.mxu0 0.0
    %836 = vmatpush.msra.mxu0 0.0
    %837 = vmatpush.msra.mxu0 0.0
    %838 = vmatpush.msra.mxu0 0.0
    %839 = vmatpush.msra.mxu0 0.0
    %840 = vmatpush.msra.mxu0 0.0
    %841 = vmatpush.msra.mxu0 0.0
    %842 = vmatpush.msra.mxu0 0.0
    %843 = vmatpush.msra.mxu0 0.0
    %844 = vmatpush.msra.mxu0 %v679
    %845 = vmatpush.msra.mxu0 %v676
    %846 = vmatmul.f32.gmra.mxu0 %v825
    %v847 = vpop.f32.mrf.mxu0
    %v848 = vadd.f32 0.0, %v847
    %849 = vmatmul.f32.gmra.mxu0 %v828
    %v850 = vpop.f32.mrf.mxu0
    %v851 = vadd.f32 0.0, %v850
    %852 = vdwg.mxu0
    %v853 = vrcp.pop %v820
    %v854 = vrcp.pop %v823
    %v855 = vmul.f32 %v848, %v853
    %v856 = vmul.f32 %v851, %v854
    %s857 = scalar_lea.vmem %s5, 32
    %v858 = vld [vmem:[%s857] sm:$0xff]
    %v859 = vld [vmem:[%s857 + $0x8] sm:$0xff]
    %v860 = vld [vmem:[%s857 + $0x10] sm:$0xff]
    %v861 = vld [vmem:[%s857 + $0x18] sm:$0xff]
    %v863 = vsel %vm316, %v767, 0
    %v866 = vsel %vm316, %v768, 0
    %v869 = vsel %vm316, %v855, 0
    %v872 = vsel %vm316, %v856, 0
    %874 = vmatpush.msra.mxu0 0.0
    %875 = vmatpush.msra.mxu0 0.0
    %876 = vmatpush.msra.mxu0 0.0
    %877 = vmatpush.msra.mxu0 0.0
    %878 = vmatpush.msra.mxu0 0.0
    %879 = vmatpush.msra.mxu0 0.0
    %880 = vmatpush.msra.mxu0 0.0
    %881 = vmatpush.msra.mxu0 0.0
    %882 = vmatpush.msra.mxu0 0.0
    %883 = vmatpush.msra.mxu0 0.0
    %884 = vmatpush.msra.mxu0 0.0
    %885 = vmatpush.msra.mxu0 0.0
    %886 = vmatpush.msra.mxu0 %v861
    %887 = vmatpush.msra.mxu0 %v860
    %888 = vmatpush.msra.mxu0 %v859
    %889 = vmatpush.msra.mxu0 %v858
    %890 = vmatmul.f32.gmra.mxu0 %v863
    %v891 = vpop.f32.mrf.mxu0
    %v892 = vadd.f32 0.0, %v891
    %893 = vmatmul.f32.gmra.mxu0 %v866
    %v894 = vpop.f32.mrf.mxu0
    %v895 = vadd.f32 0.0, %v894
    %896 = vmatmul.f32.gmra.mxu0 %v869
    %v897 = vpop.f32.mrf.mxu0
    %v898 = vadd.f32 0.0, %v897
    %899 = vmatmul.f32.gmra.mxu0 %v872
    %v900 = vpop.f32.mrf.mxu0
    %v901 = vadd.f32 0.0, %v900
    %902 = vdwg.mxu0
    %v903 = vadd.f32 %v539, %v892
    %v904 = vadd.f32 %v540, %v895
    %v905 = vadd.f32 %v541, %v898
    %v906 = vadd.f32 %v542, %v901
    %s907 = scalar_lea.vmem %s2, 256
    %v908 = vld [vmem:[%s907] sm:$0xff]
    %v909 = vld [vmem:[%s907 + $0x8] sm:$0xff]
    %v910 = vld [vmem:[%s907 + $0x10] sm:$0xff]
    %v911 = vld [vmem:[%s907 + $0x18] sm:$0xff]
    %v912 = vld [vmem:[%s907 + $0x20] sm:$0xff]
    %v913 = vld [vmem:[%s907 + $0x28] sm:$0xff]
    %v914 = vld [vmem:[%s907 + $0x30] sm:$0xff]
    %v915 = vld [vmem:[%s907 + $0x38] sm:$0xff]
    %v916 = vld [vmem:[%s907 + $0x40] sm:$0xff]
    %v917 = vld [vmem:[%s907 + $0x48] sm:$0xff]
    %v918 = vld [vmem:[%s907 + $0x50] sm:$0xff]
    %v919 = vld [vmem:[%s907 + $0x58] sm:$0xff]
    %v920 = vld [vmem:[%s907 + $0x60] sm:$0xff]
    %v921 = vld [vmem:[%s907 + $0x68] sm:$0xff]
    %v922 = vld [vmem:[%s907 + $0x70] sm:$0xff]
    %v923 = vld [vmem:[%s907 + $0x78] sm:$0xff]
    %924 = vmatpush.msra.mxu0 %v923
    %925 = vmatpush.msra.mxu0 %v922
    %926 = vmatpush.msra.mxu0 %v921
    %927 = vmatpush.msra.mxu0 %v920
    %928 = vmatpush.msra.mxu0 %v919
    %929 = vmatpush.msra.mxu0 %v918
    %930 = vmatpush.msra.mxu0 %v917
    %931 = vmatpush.msra.mxu0 %v916
    %932 = vmatpush.msra.mxu0 %v915
    %933 = vmatpush.msra.mxu0 %v914
    %934 = vmatpush.msra.mxu0 %v913
    %935 = vmatpush.msra.mxu0 %v912
    %936 = vmatpush.msra.mxu0 %v911
    %937 = vmatpush.msra.mxu0 %v910
    %938 = vmatpush.msra.mxu0 %v909
    %939 = vmatpush.msra.mxu0 %v908
    %940 = vmatmul.f32.gmra.mxu0 %v173
    %v941 = vpop.f32.mrf.mxu0
    %v942 = vadd.f32 0.0, %v941
    %943 = vmatmul.f32.gmra.mxu0 %v174
    %v944 = vpop.f32.mrf.mxu0
    %v945 = vadd.f32 0.0, %v944
    %946 = vmatmul.f32.gmra.mxu0 %v175
    %v947 = vpop.f32.mrf.mxu0
    %v948 = vadd.f32 0.0, %v947
    %949 = vmatmul.f32.gmra.mxu0 %v176
    %v950 = vpop.f32.mrf.mxu0
    %v951 = vadd.f32 0.0, %v950
    %952 = vdwg.mxu0
    %s953 = scalar_lea.vmem %s3, 256
    %v954 = vld [vmem:[%s953] sm:$0xff]
    %v955 = vld [vmem:[%s953 + $0x8] sm:$0xff]
    %v956 = vld [vmem:[%s953 + $0x10] sm:$0xff]
    %v957 = vld [vmem:[%s953 + $0x18] sm:$0xff]
    %v958 = vld [vmem:[%s953 + $0x20] sm:$0xff]
    %v959 = vld [vmem:[%s953 + $0x28] sm:$0xff]
    %v960 = vld [vmem:[%s953 + $0x30] sm:$0xff]
    %v961 = vld [vmem:[%s953 + $0x38] sm:$0xff]
    %v962 = vld [vmem:[%s953 + $0x40] sm:$0xff]
    %v963 = vld [vmem:[%s953 + $0x48] sm:$0xff]
    %v964 = vld [vmem:[%s953 + $0x50] sm:$0xff]
    %v965 = vld [vmem:[%s953 + $0x58] sm:$0xff]
    %v966 = vld [vmem:[%s953 + $0x60] sm:$0xff]
    %v967 = vld [vmem:[%s953 + $0x68] sm:$0xff]
    %v968 = vld [vmem:[%s953 + $0x70] sm:$0xff]
    %v969 = vld [vmem:[%s953 + $0x78] sm:$0xff]
    %970 = vmatpush.msra.mxu0 %v969
    %971 = vmatpush.msra.mxu0 %v968
    %972 = vmatpush.msra.mxu0 %v967
    %973 = vmatpush.msra.mxu0 %v966
    %974 = vmatpush.msra.mxu0 %v965
    %975 = vmatpush.msra.mxu0 %v964
    %976 = vmatpush.msra.mxu0 %v963
    %977 = vmatpush.msra.mxu0 %v962
    %978 = vmatpush.msra.mxu0 %v961
    %979 = vmatpush.msra.mxu0 %v960
    %980 = vmatpush.msra.mxu0 %v959
    %981 = vmatpush.msra.mxu0 %v958
    %982 = vmatpush.msra.mxu0 %v957
    %983 = vmatpush.msra.mxu0 %v956
    %984 = vmatpush.msra.mxu0 %v955
    %985 = vmatpush.msra.mxu0 %v954
    %986 = vmatmul.f32.gmra.mxu0 %v173
    %v987 = vpop.f32.mrf.mxu0
    %v988 = vadd.f32 0.0, %v987
    %989 = vmatmul.f32.gmra.mxu0 %v174
    %v990 = vpop.f32.mrf.mxu0
    %v991 = vadd.f32 0.0, %v990
    %992 = vmatmul.f32.gmra.mxu0 %v175
    %v993 = vpop.f32.mrf.mxu0
    %v994 = vadd.f32 0.0, %v993
    %995 = vmatmul.f32.gmra.mxu0 %v176
    %v996 = vpop.f32.mrf.mxu0
    %v997 = vadd.f32 0.0, %v996
    %998 = vdwg.mxu0
    %s999 = scalar_lea.vmem %s4, 256
    %v1000 = vld [vmem:[%s999] sm:$0xff]
    %v1001 = vld [vmem:[%s999 + $0x8] sm:$0xff]
    %v1002 = vld [vmem:[%s999 + $0x10] sm:$0xff]
    %v1003 = vld [vmem:[%s999 + $0x18] sm:$0xff]
    %v1004 = vld [vmem:[%s999 + $0x20] sm:$0xff]
    %v1005 = vld [vmem:[%s999 + $0x28] sm:$0xff]
    %v1006 = vld [vmem:[%s999 + $0x30] sm:$0xff]
    %v1007 = vld [vmem:[%s999 + $0x38] sm:$0xff]
    %v1008 = vld [vmem:[%s999 + $0x40] sm:$0xff]
    %v1009 = vld [vmem:[%s999 + $0x48] sm:$0xff]
    %v1010 = vld [vmem:[%s999 + $0x50] sm:$0xff]
    %v1011 = vld [vmem:[%s999 + $0x58] sm:$0xff]
    %v1012 = vld [vmem:[%s999 + $0x60] sm:$0xff]
    %v1013 = vld [vmem:[%s999 + $0x68] sm:$0xff]
    %v1014 = vld [vmem:[%s999 + $0x70] sm:$0xff]
    %v1015 = vld [vmem:[%s999 + $0x78] sm:$0xff]
    %1016 = vmatpush.msra.mxu0 %v1015
    %1017 = vmatpush.msra.mxu0 %v1014
    %1018 = vmatpush.msra.mxu0 %v1013
    %1019 = vmatpush.msra.mxu0 %v1012
    %1020 = vmatpush.msra.mxu0 %v1011
    %1021 = vmatpush.msra.mxu0 %v1010
    %1022 = vmatpush.msra.mxu0 %v1009
    %1023 = vmatpush.msra.mxu0 %v1008
    %1024 = vmatpush.msra.mxu0 %v1007
    %1025 = vmatpush.msra.mxu0 %v1006
    %1026 = vmatpush.msra.mxu0 %v1005
    %1027 = vmatpush.msra.mxu0 %v1004
    %1028 = vmatpush.msra.mxu0 %v1003
    %1029 = vmatpush.msra.mxu0 %v1002
    %1030 = vmatpush.msra.mxu0 %v1001
    %1031 = vmatpush.msra.mxu0 %v1000
    %1032 = vmatmul.f32.gmra.mxu0 %v173
    %v1033 = vpop.f32.mrf.mxu0
    %v1034 = vadd.f32 0.0, %v1033
    %1035 = vmatmul.f32.gmra.mxu0 %v174
    %v1036 = vpop.f32.mrf.mxu0
    %v1037 = vadd.f32 0.0, %v1036
    %1038 = vmatmul.f32.gmra.mxu0 %v175
    %v1039 = vpop.f32.mrf.mxu0
    %v1040 = vadd.f32 0.0, %v1039
    %1041 = vmatmul.f32.gmra.mxu0 %v176
    %v1042 = vpop.f32.mrf.mxu0
    %v1043 = vadd.f32 0.0, %v1042
    %1044 = vdwg.mxu0
    %v1046 = vsel %vm316, %v942, 0
    %v1049 = vsel %vm316, %v945, 0
    %v1052 = vsel %vm316, %v988, 0
    %v1055 = vsel %vm316, %v991, 0
    %1057 = vmatpush.xpose.msra.mxu0 0.0
    %1058 = vmatpush.xpose.msra.mxu0 0.0
    %1059 = vmatpush.xpose.msra.mxu0 0.0
    %1060 = vmatpush.xpose.msra.mxu0 0.0
    %1061 = vmatpush.xpose.msra.mxu0 0.0
    %1062 = vmatpush.xpose.msra.mxu0 0.0
    %1063 = vmatpush.xpose.msra.mxu0 0.0
    %1064 = vmatpush.xpose.msra.mxu0 0.0
    %1065 = vmatpush.xpose.msra.mxu0 0.0
    %1066 = vmatpush.xpose.msra.mxu0 0.0
    %1067 = vmatpush.xpose.msra.mxu0 0.0
    %1068 = vmatpush.xpose.msra.mxu0 0.0
    %1069 = vmatpush.xpose.msra.mxu0 0.0
    %1070 = vmatpush.xpose.msra.mxu0 0.0
    %1071 = vmatpush.xpose.msra.mxu0 %v1055
    %1072 = vmatpush.xpose.msra.mxu0 %v1052
    %1073 = vmatmul.f32.gmra.mxu0 %v1046
    %v1074 = vpop.f32.mrf.mxu0
    %v1075 = vadd.f32 0.0, %v1074
    %1076 = vmatmul.f32.gmra.mxu0 %v1049
    %v1077 = vpop.f32.mrf.mxu0
    %v1078 = vadd.f32 0.0, %v1077
    %1079 = vdwg.mxu0
    %v1080 = vmul.f32 %v1075, 0.17677669
    %v1081 = vmul.f32 %v1078, 0.17677669
    %v1082 = vsel %vm354, %v1080, -inf
    %1083 = vmax.xlane.f32.xlu0 %v1082
    %v1084 = vpop.xlane.xlu0 %1083
    %v1085 = vsel %vm354, %v1081, -inf
    %1086 = vmax.xlane.f32.xlu0 %v1085
    %v1087 = vpop.xlane.xlu0 %1086
    %v1088 = vsub.f32 %v1080, %v1084
    %v1089 = vsub.f32 %v1081, %v1087
    %v1090 = vmul.f32 %v1088, 1.442695
    %v1091 = vpow.pop %v1090
    %v1092 = vmul.f32 %v1089, 1.442695
    %v1093 = vpow.pop %v1092
    %v1094 = vsel %vm354, %v1091, 0.0
    %1095 = vadd.xlane.f32.xlu0 %v1094
    %v1096 = vpop.xlane.xlu0 %1095
    %v1097 = vsel %vm354, %v1093, 0.0
    %1098 = vadd.xlane.f32.xlu0 %v1097
    %v1099 = vpop.xlane.xlu0 %1098
    %v1101 = vsel %vm354, %v1091, 0
    %v1104 = vsel %vm354, %v1093, 0
    %1106 = vmatpush.msra.mxu0 0.0
    %1107 = vmatpush.msra.mxu0 0.0
    %1108 = vmatpush.msra.mxu0 0.0
    %1109 = vmatpush.msra.mxu0 0.0
    %1110 = vmatpush.msra.mxu0 0.0
    %1111 = vmatpush.msra.mxu0 0.0
    %1112 = vmatpush.msra.mxu0 0.0
    %1113 = vmatpush.msra.mxu0 0.0
    %1114 = vmatpush.msra.mxu0 0.0
    %1115 = vmatpush.msra.mxu0 0.0
    %1116 = vmatpush.msra.mxu0 0.0
    %1117 = vmatpush.msra.mxu0 0.0
    %1118 = vmatpush.msra.mxu0 0.0
    %1119 = vmatpush.msra.mxu0 0.0
    %1120 = vmatpush.msra.mxu0 %v1037
    %1121 = vmatpush.msra.mxu0 %v1034
    %1122 = vmatmul.f32.gmra.mxu0 %v1101
    %v1123 = vpop.f32.mrf.mxu0
    %v1124 = vadd.f32 0.0, %v1123
    %1125 = vmatmul.f32.gmra.mxu0 %v1104
    %v1126 = vpop.f32.mrf.mxu0
    %v1127 = vadd.f32 0.0, %v1126
    %1128 = vdwg.mxu0
    %v1129 = vrcp.pop %v1096
    %v1130 = vrcp.pop %v1099
    %v1131 = vmul.f32 %v1124, %v1129
    %v1132 = vmul.f32 %v1127, %v1130
    %v1134 = vsel %vm316, %v948, 0
    %v1137 = vsel %vm316, %v951, 0
    %v1140 = vsel %vm316, %v994, 0
    %v1143 = vsel %vm316, %v997, 0
    %1145 = vmatpush.xpose.msra.mxu0 0.0
    %1146 = vmatpush.xpose.msra.mxu0 0.0
    %1147 = vmatpush.xpose.msra.mxu0 0.0
    %1148 = vmatpush.xpose.msra.mxu0 0.0
    %1149 = vmatpush.xpose.msra.mxu0 0.0
    %1150 = vmatpush.xpose.msra.mxu0 0.0
    %1151 = vmatpush.xpose.msra.mxu0 0.0
    %1152 = vmatpush.xpose.msra.mxu0 0.0
    %1153 = vmatpush.xpose.msra.mxu0 0.0
    %1154 = vmatpush.xpose.msra.mxu0 0.0
    %1155 = vmatpush.xpose.msra.mxu0 0.0
    %1156 = vmatpush.xpose.msra.mxu0 0.0
    %1157 = vmatpush.xpose.msra.mxu0 0.0
    %1158 = vmatpush.xpose.msra.mxu0 0.0
    %1159 = vmatpush.xpose.msra.mxu0 %v1143
    %1160 = vmatpush.xpose.msra.mxu0 %v1140
    %1161 = vmatmul.f32.gmra.mxu0 %v1134
    %v1162 = vpop.f32.mrf.mxu0
    %v1163 = vadd.f32 0.0, %v1162
    %1164 = vmatmul.f32.gmra.mxu0 %v1137
    %v1165 = vpop.f32.mrf.mxu0
    %v1166 = vadd.f32 0.0, %v1165
    %1167 = vdwg.mxu0
    %v1168 = vmul.f32 %v1163, 0.17677669
    %v1169 = vmul.f32 %v1166, 0.17677669
    %v1170 = vsel %vm354, %v1168, -inf
    %1171 = vmax.xlane.f32.xlu0 %v1170
    %v1172 = vpop.xlane.xlu0 %1171
    %v1173 = vsel %vm354, %v1169, -inf
    %1174 = vmax.xlane.f32.xlu0 %v1173
    %v1175 = vpop.xlane.xlu0 %1174
    %v1176 = vsub.f32 %v1168, %v1172
    %v1177 = vsub.f32 %v1169, %v1175
    %v1178 = vmul.f32 %v1176, 1.442695
    %v1179 = vpow.pop %v1178
    %v1180 = vmul.f32 %v1177, 1.442695
    %v1181 = vpow.pop %v1180
    %v1182 = vsel %vm354, %v1179, 0.0
    %1183 = vadd.xlane.f32.xlu0 %v1182
    %v1184 = vpop.xlane.xlu0 %1183
    %v1185 = vsel %vm354, %v1181, 0.0
    %1186 = vadd.xlane.f32.xlu0 %v1185
    %v1187 = vpop.xlane.xlu0 %1186
    %v1189 = vsel %vm354, %v1179, 0
    %v1192 = vsel %vm354, %v1181, 0
    %1194 = vmatpush.msra.mxu0 0.0
    %1195 = vmatpush.msra.mxu0 0.0
    %1196 = vmatpush.msra.mxu0 0.0
    %1197 = vmatpush.msra.mxu0 0.0
    %1198 = vmatpush.msra.mxu0 0.0
    %1199 = vmatpush.msra.mxu0 0.0
    %1200 = vmatpush.msra.mxu0 0.0
    %1201 = vmatpush.msra.mxu0 0.0
    %1202 = vmatpush.msra.mxu0 0.0
    %1203 = vmatpush.msra.mxu0 0.0
    %1204 = vmatpush.msra.mxu0 0.0
    %1205 = vmatpush.msra.mxu0 0.0
    %1206 = vmatpush.msra.mxu0 0.0
    %1207 = vmatpush.msra.mxu0 0.0
    %1208 = vmatpush.msra.mxu0 %v1043
    %1209 = vmatpush.msra.mxu0 %v1040
    %1210 = vmatmul.f32.gmra.mxu0 %v1189
    %v1211 = vpop.f32.mrf.mxu0
    %v1212 = vadd.f32 0.0, %v1211
    %1213 = vmatmul.f32.gmra.mxu0 %v1192
    %v1214 = vpop.f32.mrf.mxu0
    %v1215 = vadd.f32 0.0, %v1214
    %1216 = vdwg.mxu0
    %v1217 = vrcp.pop %v1184
    %v1218 = vrcp.pop %v1187
    %v1219 = vmul.f32 %v1212, %v1217
    %v1220 = vmul.f32 %v1215, %v1218
    %s1221 = scalar_lea.vmem %s5, 64
    %v1222 = vld [vmem:[%s1221] sm:$0xff]
    %v1223 = vld [vmem:[%s1221 + $0x8] sm:$0xff]
    %v1224 = vld [vmem:[%s1221 + $0x10] sm:$0xff]
    %v1225 = vld [vmem:[%s1221 + $0x18] sm:$0xff]
    %v1227 = vsel %vm316, %v1131, 0
    %v1230 = vsel %vm316, %v1132, 0
    %v1233 = vsel %vm316, %v1219, 0
    %v1236 = vsel %vm316, %v1220, 0
    %1238 = vmatpush.msra.mxu0 0.0
    %1239 = vmatpush.msra.mxu0 0.0
    %1240 = vmatpush.msra.mxu0 0.0
    %1241 = vmatpush.msra.mxu0 0.0
    %1242 = vmatpush.msra.mxu0 0.0
    %1243 = vmatpush.msra.mxu0 0.0
    %1244 = vmatpush.msra.mxu0 0.0
    %1245 = vmatpush.msra.mxu0 0.0
    %1246 = vmatpush.msra.mxu0 0.0
    %1247 = vmatpush.msra.mxu0 0.0
    %1248 = vmatpush.msra.mxu0 0.0
    %1249 = vmatpush.msra.mxu0 0.0
    %1250 = vmatpush.msra.mxu0 %v1225
    %1251 = vmatpush.msra.mxu0 %v1224
    %1252 = vmatpush.msra.mxu0 %v1223
    %1253 = vmatpush.msra.mxu0 %v1222
    %1254 = vmatmul.f32.gmra.mxu0 %v1227
    %v1255 = vpop.f32.mrf.mxu0
    %v1256 = vadd.f32 0.0, %v1255
    %1257 = vmatmul.f32.gmra.mxu0 %v1230
    %v1258 = vpop.f32.mrf.mxu0
    %v1259 = vadd.f32 0.0, %v1258
    %1260 = vmatmul.f32.gmra.mxu0 %v1233
    %v1261 = vpop.f32.mrf.mxu0
    %v1262 = vadd.f32 0.0, %v1261
    %1263 = vmatmul.f32.gmra.mxu0 %v1236
    %v1264 = vpop.f32.mrf.mxu0
    %v1265 = vadd.f32 0.0, %v1264
    %1266 = vdwg.mxu0
    %v1267 = vadd.f32 %v903, %v1256
    %v1268 = vadd.f32 %v904, %v1259
    %v1269 = vadd.f32 %v905, %v1262
    %v1270 = vadd.f32 %v906, %v1265
    %s1271 = scalar_lea.vmem %s2, 384
    %v1272 = vld [vmem:[%s1271] sm:$0xff]
    %v1273 = vld [vmem:[%s1271 + $0x8] sm:$0xff]
    %v1274 = vld [vmem:[%s1271 + $0x10] sm:$0xff]
    %v1275 = vld [vmem:[%s1271 + $0x18] sm:$0xff]
    %v1276 = vld [vmem:[%s1271 + $0x20] sm:$0xff]
    %v1277 = vld [vmem:[%s1271 + $0x28] sm:$0xff]
    %v1278 = vld [vmem:[%s1271 + $0x30] sm:$0xff]
    %v1279 = vld [vmem:[%s1271 + $0x38] sm:$0xff]
    %v1280 = vld [vmem:[%s1271 + $0x40] sm:$0xff]
    %v1281 = vld [vmem:[%s1271 + $0x48] sm:$0xff]
    %v1282 = vld [vmem:[%s1271 + $0x50] sm:$0xff]
    %v1283 = vld [vmem:[%s1271 + $0x58] sm:$0xff]
    %v1284 = vld [vmem:[%s1271 + $0x60] sm:$0xff]
    %v1285 = vld [vmem:[%s1271 + $0x68] sm:$0xff]
    %v1286 = vld [vmem:[%s1271 + $0x70] sm:$0xff]
    %v1287 = vld [vmem:[%s1271 + $0x78] sm:$0xff]
    %1288 = vmatpush.msra.mxu0 %v1287
    %1289 = vmatpush.msra.mxu0 %v1286
    %1290 = vmatpush.msra.mxu0 %v1285
    %1291 = vmatpush.msra.mxu0 %v1284
    %1292 = vmatpush.msra.mxu0 %v1283
    %1293 = vmatpush.msra.mxu0 %v1282
    %1294 = vmatpush.msra.mxu0 %v1281
    %1295 = vmatpush.msra.mxu0 %v1280
    %1296 = vmatpush.msra.mxu0 %v1279
    %1297 = vmatpush.msra.mxu0 %v1278
    %1298 = vmatpush.msra.mxu0 %v1277
    %1299 = vmatpush.msra.mxu0 %v1276
    %1300 = vmatpush.msra.mxu0 %v1275
    %1301 = vmatpush.msra.mxu0 %v1274
    %1302 = vmatpush.msra.mxu0 %v1273
    %1303 = vmatpush.msra.mxu0 %v1272
    %1304 = vmatmul.f32.gmra.mxu0 %v173
    %v1305 = vpop.f32.mrf.mxu0
    %v1306 = vadd.f32 0.0, %v1305
    %1307 = vmatmul.f32.gmra.mxu0 %v174
    %v1308 = vpop.f32.mrf.mxu0
    %v1309 = vadd.f32 0.0, %v1308
    %1310 = vmatmul.f32.gmra.mxu0 %v175
    %v1311 = vpop.f32.mrf.mxu0
    %v1312 = vadd.f32 0.0, %v1311
    %1313 = vmatmul.f32.gmra.mxu0 %v176
    %v1314 = vpop.f32.mrf.mxu0
    %v1315 = vadd.f32 0.0, %v1314
    %1316 = vdwg.mxu0
    %s1317 = scalar_lea.vmem %s3, 384
    %v1318 = vld [vmem:[%s1317] sm:$0xff]
    %v1319 = vld [vmem:[%s1317 + $0x8] sm:$0xff]
    %v1320 = vld [vmem:[%s1317 + $0x10] sm:$0xff]
    %v1321 = vld [vmem:[%s1317 + $0x18] sm:$0xff]
    %v1322 = vld [vmem:[%s1317 + $0x20] sm:$0xff]
    %v1323 = vld [vmem:[%s1317 + $0x28] sm:$0xff]
    %v1324 = vld [vmem:[%s1317 + $0x30] sm:$0xff]
    %v1325 = vld [vmem:[%s1317 + $0x38] sm:$0xff]
    %v1326 = vld [vmem:[%s1317 + $0x40] sm:$0xff]
    %v1327 = vld [vmem:[%s1317 + $0x48] sm:$0xff]
    %v1328 = vld [vmem:[%s1317 + $0x50] sm:$0xff]
    %v1329 = vld [vmem:[%s1317 + $0x58] sm:$0xff]
    %v1330 = vld [vmem:[%s1317 + $0x60] sm:$0xff]
    %v1331 = vld [vmem:[%s1317 + $0x68] sm:$0xff]
    %v1332 = vld [vmem:[%s1317 + $0x70] sm:$0xff]
    %v1333 = vld [vmem:[%s1317 + $0x78] sm:$0xff]
    %1334 = vmatpush.msra.mxu0 %v1333
    %1335 = vmatpush.msra.mxu0 %v1332
    %1336 = vmatpush.msra.mxu0 %v1331
    %1337 = vmatpush.msra.mxu0 %v1330
    %1338 = vmatpush.msra.mxu0 %v1329
    %1339 = vmatpush.msra.mxu0 %v1328
    %1340 = vmatpush.msra.mxu0 %v1327
    %1341 = vmatpush.msra.mxu0 %v1326
    %1342 = vmatpush.msra.mxu0 %v1325
    %1343 = vmatpush.msra.mxu0 %v1324
    %1344 = vmatpush.msra.mxu0 %v1323
    %1345 = vmatpush.msra.mxu0 %v1322
    %1346 = vmatpush.msra.mxu0 %v1321
    %1347 = vmatpush.msra.mxu0 %v1320
    %1348 = vmatpush.msra.mxu0 %v1319
    %1349 = vmatpush.msra.mxu0 %v1318
    %1350 = vmatmul.f32.gmra.mxu0 %v173
    %v1351 = vpop.f32.mrf.mxu0
    %v1352 = vadd.f32 0.0, %v1351
    %1353 = vmatmul.f32.gmra.mxu0 %v174
    %v1354 = vpop.f32.mrf.mxu0
    %v1355 = vadd.f32 0.0, %v1354
    %1356 = vmatmul.f32.gmra.mxu0 %v175
    %v1357 = vpop.f32.mrf.mxu0
    %v1358 = vadd.f32 0.0, %v1357
    %1359 = vmatmul.f32.gmra.mxu0 %v176
    %v1360 = vpop.f32.mrf.mxu0
    %v1361 = vadd.f32 0.0, %v1360
    %1362 = vdwg.mxu0
    %s1363 = scalar_lea.vmem %s4, 384
    %v1364 = vld [vmem:[%s1363] sm:$0xff]
    %v1365 = vld [vmem:[%s1363 + $0x8] sm:$0xff]
    %v1366 = vld [vmem:[%s1363 + $0x10] sm:$0xff]
    %v1367 = vld [vmem:[%s1363 + $0x18] sm:$0xff]
    %v1368 = vld [vmem:[%s1363 + $0x20] sm:$0xff]
    %v1369 = vld [vmem:[%s1363 + $0x28] sm:$0xff]
    %v1370 = vld [vmem:[%s1363 + $0x30] sm:$0xff]
    %v1371 = vld [vmem:[%s1363 + $0x38] sm:$0xff]
    %v1372 = vld [vmem:[%s1363 + $0x40] sm:$0xff]
    %v1373 = vld [vmem:[%s1363 + $0x48] sm:$0xff]
    %v1374 = vld [vmem:[%s1363 + $0x50] sm:$0xff]
    %v1375 = vld [vmem:[%s1363 + $0x58] sm:$0xff]
    %v1376 = vld [vmem:[%s1363 + $0x60] sm:$0xff]
    %v1377 = vld [vmem:[%s1363 + $0x68] sm:$0xff]
    %v1378 = vld [vmem:[%s1363 + $0x70] sm:$0xff]
    %v1379 = vld [vmem:[%s1363 + $0x78] sm:$0xff]
    %1380 = vmatpush.msra.mxu0 %v1379
    %1381 = vmatpush.msra.mxu0 %v1378
    %1382 = vmatpush.msra.mxu0 %v1377
    %1383 = vmatpush.msra.mxu0 %v1376
    %1384 = vmatpush.msra.mxu0 %v1375
    %1385 = vmatpush.msra.mxu0 %v1374
    %1386 = vmatpush.msra.mxu0 %v1373
    %1387 = vmatpush.msra.mxu0 %v1372
    %1388 = vmatpush.msra.mxu0 %v1371
    %1389 = vmatpush.msra.mxu0 %v1370
    %1390 = vmatpush.msra.mxu0 %v1369
    %1391 = vmatpush.msra.mxu0 %v1368
    %1392 = vmatpush.msra.mxu0 %v1367
    %1393 = vmatpush.msra.mxu0 %v1366
    %1394 = vmatpush.msra.mxu0 %v1365
    %1395 = vmatpush.msra.mxu0 %v1364
    %1396 = vmatmul.f32.gmra.mxu0 %v173
    %v1397 = vpop.f32.mrf.mxu0
    %v1398 = vadd.f32 0.0, %v1397
    %1399 = vmatmul.f32.gmra.mxu0 %v174
    %v1400 = vpop.f32.mrf.mxu0
    %v1401 = vadd.f32 0.0, %v1400
    %1402 = vmatmul.f32.gmra.mxu0 %v175
    %v1403 = vpop.f32.mrf.mxu0
    %v1404 = vadd.f32 0.0, %v1403
    %1405 = vmatmul.f32.gmra.mxu0 %v176
    %v1406 = vpop.f32.mrf.mxu0
    %v1407 = vadd.f32 0.0, %v1406
    %1408 = vdwg.mxu0
    %v1410 = vsel %vm316, %v1306, 0
    %v1413 = vsel %vm316, %v1309, 0
    %v1416 = vsel %vm316, %v1352, 0
    %v1419 = vsel %vm316, %v1355, 0
    %1421 = vmatpush.xpose.msra.mxu0 0.0
    %1422 = vmatpush.xpose.msra.mxu0 0.0
    %1423 = vmatpush.xpose.msra.mxu0 0.0
    %1424 = vmatpush.xpose.msra.mxu0 0.0
    %1425 = vmatpush.xpose.msra.mxu0 0.0
    %1426 = vmatpush.xpose.msra.mxu0 0.0
    %1427 = vmatpush.xpose.msra.mxu0 0.0
    %1428 = vmatpush.xpose.msra.mxu0 0.0
    %1429 = vmatpush.xpose.msra.mxu0 0.0
    %1430 = vmatpush.xpose.msra.mxu0 0.0
    %1431 = vmatpush.xpose.msra.mxu0 0.0
    %1432 = vmatpush.xpose.msra.mxu0 0.0
    %1433 = vmatpush.xpose.msra.mxu0 0.0
    %1434 = vmatpush.xpose.msra.mxu0 0.0
    %1435 = vmatpush.xpose.msra.mxu0 %v1419
    %1436 = vmatpush.xpose.msra.mxu0 %v1416
    %1437 = vmatmul.f32.gmra.mxu0 %v1410
    %v1438 = vpop.f32.mrf.mxu0
    %v1439 = vadd.f32 0.0, %v1438
    %1440 = vmatmul.f32.gmra.mxu0 %v1413
    %v1441 = vpop.f32.mrf.mxu0
    %v1442 = vadd.f32 0.0, %v1441
    %1443 = vdwg.mxu0
    %v1444 = vmul.f32 %v1439, 0.17677669
    %v1445 = vmul.f32 %v1442, 0.17677669
    %v1446 = vsel %vm354, %v1444, -inf
    %1447 = vmax.xlane.f32.xlu0 %v1446
    %v1448 = vpop.xlane.xlu0 %1447
    %v1449 = vsel %vm354, %v1445, -inf
    %1450 = vmax.xlane.f32.xlu0 %v1449
    %v1451 = vpop.xlane.xlu0 %1450
    %v1452 = vsub.f32 %v1444, %v1448
    %v1453 = vsub.f32 %v1445, %v1451
    %v1454 = vmul.f32 %v1452, 1.442695
    %v1455 = vpow.pop %v1454
    %v1456 = vmul.f32 %v1453, 1.442695
    %v1457 = vpow.pop %v1456
    %v1458 = vsel %vm354, %v1455, 0.0
    %1459 = vadd.xlane.f32.xlu0 %v1458
    %v1460 = vpop.xlane.xlu0 %1459
    %v1461 = vsel %vm354, %v1457, 0.0
    %1462 = vadd.xlane.f32.xlu0 %v1461
    %v1463 = vpop.xlane.xlu0 %1462
    %v1465 = vsel %vm354, %v1455, 0
    %v1468 = vsel %vm354, %v1457, 0
    %1470 = vmatpush.msra.mxu0 0.0
    %1471 = vmatpush.msra.mxu0 0.0
    %1472 = vmatpush.msra.mxu0 0.0
    %1473 = vmatpush.msra.mxu0 0.0
    %1474 = vmatpush.msra.mxu0 0.0
    %1475 = vmatpush.msra.mxu0 0.0
    %1476 = vmatpush.msra.mxu0 0.0
    %1477 = vmatpush.msra.mxu0 0.0
    %1478 = vmatpush.msra.mxu0 0.0
    %1479 = vmatpush.msra.mxu0 0.0
    %1480 = vmatpush.msra.mxu0 0.0
    %1481 = vmatpush.msra.mxu0 0.0
    %1482 = vmatpush.msra.mxu0 0.0
    %1483 = vmatpush.msra.mxu0 0.0
    %1484 = vmatpush.msra.mxu0 %v1401
    %1485 = vmatpush.msra.mxu0 %v1398
    %1486 = vmatmul.f32.gmra.mxu0 %v1465
    %v1487 = vpop.f32.mrf.mxu0
    %v1488 = vadd.f32 0.0, %v1487
    %1489 = vmatmul.f32.gmra.mxu0 %v1468
    %v1490 = vpop.f32.mrf.mxu0
    %v1491 = vadd.f32 0.0, %v1490
    %1492 = vdwg.mxu0
    %v1493 = vrcp.pop %v1460
    %v1494 = vrcp.pop %v1463
    %v1495 = vmul.f32 %v1488, %v1493
    %v1496 = vmul.f32 %v1491, %v1494
    %v1498 = vsel %vm316, %v1312, 0
    %v1501 = vsel %vm316, %v1315, 0
    %v1504 = vsel %vm316, %v1358, 0
    %v1507 = vsel %vm316, %v1361, 0
    %1509 = vmatpush.xpose.msra.mxu0 0.0
    %1510 = vmatpush.xpose.msra.mxu0 0.0
    %1511 = vmatpush.xpose.msra.mxu0 0.0
    %1512 = vmatpush.xpose.msra.mxu0 0.0
    %1513 = vmatpush.xpose.msra.mxu0 0.0
    %1514 = vmatpush.xpose.msra.mxu0 0.0
    %1515 = vmatpush.xpose.msra.mxu0 0.0
    %1516 = vmatpush.xpose.msra.mxu0 0.0
    %1517 = vmatpush.xpose.msra.mxu0 0.0
    %1518 = vmatpush.xpose.msra.mxu0 0.0
    %1519 = vmatpush.xpose.msra.mxu0 0.0
    %1520 = vmatpush.xpose.msra.mxu0 0.0
    %1521 = vmatpush.xpose.msra.mxu0 0.0
    %1522 = vmatpush.xpose.msra.mxu0 0.0
    %1523 = vmatpush.xpose.msra.mxu0 %v1507
    %1524 = vmatpush.xpose.msra.mxu0 %v1504
    %1525 = vmatmul.f32.gmra.mxu0 %v1498
    %v1526 = vpop.f32.mrf.mxu0
    %v1527 = vadd.f32 0.0, %v1526
    %1528 = vmatmul.f32.gmra.mxu0 %v1501
    %v1529 = vpop.f32.mrf.mxu0
    %v1530 = vadd.f32 0.0, %v1529
    %1531 = vdwg.mxu0
    %v1532 = vmul.f32 %v1527, 0.17677669
    %v1533 = vmul.f32 %v1530, 0.17677669
    %v1534 = vsel %vm354, %v1532, -inf
    %1535 = vmax.xlane.f32.xlu0 %v1534
    %v1536 = vpop.xlane.xlu0 %1535
    %v1537 = vsel %vm354, %v1533, -inf
    %1538 = vmax.xlane.f32.xlu0 %v1537
    %v1539 = vpop.xlane.xlu0 %1538
    %v1540 = vsub.f32 %v1532, %v1536
    %v1541 = vsub.f32 %v1533, %v1539
    %v1542 = vmul.f32 %v1540, 1.442695
    %v1543 = vpow.pop %v1542
    %v1544 = vmul.f32 %v1541, 1.442695
    %v1545 = vpow.pop %v1544
    %v1546 = vsel %vm354, %v1543, 0.0
    %1547 = vadd.xlane.f32.xlu0 %v1546
    %v1548 = vpop.xlane.xlu0 %1547
    %v1549 = vsel %vm354, %v1545, 0.0
    %1550 = vadd.xlane.f32.xlu0 %v1549
    %v1551 = vpop.xlane.xlu0 %1550
    %v1553 = vsel %vm354, %v1543, 0
    %v1556 = vsel %vm354, %v1545, 0
    %1558 = vmatpush.msra.mxu0 0.0
    %1559 = vmatpush.msra.mxu0 0.0
    %1560 = vmatpush.msra.mxu0 0.0
    %1561 = vmatpush.msra.mxu0 0.0
    %1562 = vmatpush.msra.mxu0 0.0
    %1563 = vmatpush.msra.mxu0 0.0
    %1564 = vmatpush.msra.mxu0 0.0
    %1565 = vmatpush.msra.mxu0 0.0
    %1566 = vmatpush.msra.mxu0 0.0
    %1567 = vmatpush.msra.mxu0 0.0
    %1568 = vmatpush.msra.mxu0 0.0
    %1569 = vmatpush.msra.mxu0 0.0
    %1570 = vmatpush.msra.mxu0 0.0
    %1571 = vmatpush.msra.mxu0 0.0
    %1572 = vmatpush.msra.mxu0 %v1407
    %1573 = vmatpush.msra.mxu0 %v1404
    %1574 = vmatmul.f32.gmra.mxu0 %v1553
    %v1575 = vpop.f32.mrf.mxu0
    %v1576 = vadd.f32 0.0, %v1575
    %1577 = vmatmul.f32.gmra.mxu0 %v1556
    %v1578 = vpop.f32.mrf.mxu0
    %v1579 = vadd.f32 0.0, %v1578
    %1580 = vdwg.mxu0
    %v1581 = vrcp.pop %v1548
    %v1582 = vrcp.pop %v1551
    %v1583 = vmul.f32 %v1576, %v1581
    %v1584 = vmul.f32 %v1579, %v1582
    %s1585 = scalar_lea.vmem %s5, 96
    %v1586 = vld [vmem:[%s1585] sm:$0xff]
    %v1587 = vld [vmem:[%s1585 + $0x8] sm:$0xff]
    %v1588 = vld [vmem:[%s1585 + $0x10] sm:$0xff]
    %v1589 = vld [vmem:[%s1585 + $0x18] sm:$0xff]
    %v1591 = vsel %vm316, %v1495, 0
    %v1594 = vsel %vm316, %v1496, 0
    %v1597 = vsel %vm316, %v1583, 0
    %v1600 = vsel %vm316, %v1584, 0
    %1602 = vmatpush.msra.mxu0 0.0
    %1603 = vmatpush.msra.mxu0 0.0
    %1604 = vmatpush.msra.mxu0 0.0
    %1605 = vmatpush.msra.mxu0 0.0
    %1606 = vmatpush.msra.mxu0 0.0
    %1607 = vmatpush.msra.mxu0 0.0
    %1608 = vmatpush.msra.mxu0 0.0
    %1609 = vmatpush.msra.mxu0 0.0
    %1610 = vmatpush.msra.mxu0 0.0
    %1611 = vmatpush.msra.mxu0 0.0
    %1612 = vmatpush.msra.mxu0 0.0
    %1613 = vmatpush.msra.mxu0 0.0
    %1614 = vmatpush.msra.mxu0 %v1589
    %1615 = vmatpush.msra.mxu0 %v1588
    %1616 = vmatpush.msra.mxu0 %v1587
    %1617 = vmatpush.msra.mxu0 %v1586
    %1618 = vmatmul.f32.gmra.mxu0 %v1591
    %v1619 = vpop.f32.mrf.mxu0
    %v1620 = vadd.f32 0.0, %v1619
    %1621 = vmatmul.f32.gmra.mxu0 %v1594
    %v1622 = vpop.f32.mrf.mxu0
    %v1623 = vadd.f32 0.0, %v1622
    %1624 = vmatmul.f32.gmra.mxu0 %v1597
    %v1625 = vpop.f32.mrf.mxu0
    %v1626 = vadd.f32 0.0, %v1625
    %1627 = vmatmul.f32.gmra.mxu0 %v1600
    %v1628 = vpop.f32.mrf.mxu0
    %v1629 = vadd.f32 0.0, %v1628
    %1630 = vdwg.mxu0
    %v1631 = vadd.f32 %v1267, %v1620
    %v1632 = vadd.f32 %v1268, %v1623
    %v1633 = vadd.f32 %v1269, %v1626
    %v1634 = vadd.f32 %v1270, %v1629
    %v1635 = vadd.f32 %v70, %v1631
    %v1636 = vadd.f32 %v71, %v1632
    %v1637 = vadd.f32 %v72, %v1633
    %v1638 = vadd.f32 %v73, %v1634
    %s1639 = sld [smem:[#allocation2 + $0x2]]
    %s1640 = sld [smem:[#allocation2 + $0x3]]
    %1641 = vadd.xlane.f32.xlu0 %v1635
    %v1642 = vpop.xlane.xlu0 %1641
    %1643 = vadd.xlane.f32.xlu0 %v1636
    %v1644 = vpop.xlane.xlu0 %1643
    %1645 = vadd.xlane.f32.xlu0 %v1637
    %v1646 = vpop.xlane.xlu0 %1645
    %1647 = vadd.xlane.f32.xlu0 %v1638
    %v1648 = vpop.xlane.xlu0 %1647
    %v1649 = vmul.f32 %v1642, %v94
    %v1650 = vmul.f32 %v1644, %v94
    %v1651 = vmul.f32 %v1646, %v94
    %v1652 = vmul.f32 %v1648, %v94
    %v1653 = vsub.f32 %v1635, %v1649
    %v1654 = vsub.f32 %v1636, %v1650
    %v1655 = vsub.f32 %v1637, %v1651
    %v1656 = vsub.f32 %v1638, %v1652
    %v1657 = vmul.f32 %v1653, %v1653
    %v1658 = vmul.f32 %v1654, %v1654
    %v1659 = vmul.f32 %v1655, %v1655
    %v1660 = vmul.f32 %v1656, %v1656
    %1661 = vadd.xlane.f32.xlu0 %v1657
    %v1662 = vpop.xlane.xlu0 %1661
    %1663 = vadd.xlane.f32.xlu0 %v1658
    %v1664 = vpop.xlane.xlu0 %1663
    %1665 = vadd.xlane.f32.xlu0 %v1659
    %v1666 = vpop.xlane.xlu0 %1665
    %1667 = vadd.xlane.f32.xlu0 %v1660
    %v1668 = vpop.xlane.xlu0 %1667
    %v1669 = vmul.f32 %v1662, 0.007874016
    %v1670 = vmul.f32 %v1664, 0.007874016
    %v1671 = vmul.f32 %v1666, 0.007874016
    %v1672 = vmul.f32 %v1668, 0.007874016
    %v1673 = vstv %s1639
    %v1674 = vmul.f32 %v1673, %v1653
    %v1675 = vmul.f32 %v1673, %v1654
    %v1676 = vmul.f32 %v1673, %v1655
    %v1677 = vmul.f32 %v1673, %v1656
    %v1678 = vadd.f32 %v1669, 1e-05
    %v1679 = vadd.f32 %v1670, 1e-05
    %v1680 = vadd.f32 %v1671, 1e-05
    %v1681 = vadd.f32 %v1672, 1e-05
    %v1682 = vrsqrt.pop %v1678
    %v1683 = vmul.f32 %v1682, %v1678
    %v1684 = vmul.f32 %v1683, %v1682
    %v1685 = vmul.f32 0.5, %v1684
    %v1686 = vsub.f32 1.5, %v1685
    %v1687 = vmul.f32 %v1682, %v1686
    %vm1688 = vweird.f32 %v1678
    %vm1689 = vweird.f32 %v1682
    %vm1690 = vmor %vm1688, %vm1689
    %v1691 = vsel %vm1690, %v1682, %v1687
    %v1692 = vrsqrt.pop %v1679
    %v1693 = vmul.f32 %v1692, %v1679
    %v1694 = vmul.f32 %v1693, %v1692
    %v1695 = vmul.f32 0.5, %v1694
    %v1696 = vsub.f32 1.5, %v1695
    %v1697 = vmul.f32 %v1692, %v1696
    %vm1698 = vweird.f32 %v1679
    %vm1699 = vweird.f32 %v1692
    %vm1700 = vmor %vm1698, %vm1699
    %v1701 = vsel %vm1700, %v1692, %v1697
    %v1702 = vrsqrt.pop %v1680
    %v1703 = vmul.f32 %v1702, %v1680
    %v1704 = vmul.f32 %v1703, %v1702
    %v1705 = vmul.f32 0.5, %v1704
    %v1706 = vsub.f32 1.5, %v1705
    %v1707 = vmul.f32 %v1702, %v1706
    %vm1708 = vweird.f32 %v1680
    %vm1709 = vweird.f32 %v1702
    %vm1710 = vmor %vm1708, %vm1709
    %v1711 = vsel %vm1710, %v1702, %v1707
    %v1712 = vrsqrt.pop %v1681
    %v1713 = vmul.f32 %v1712, %v1681
    %v1714 = vmul.f32 %v1713, %v1712
    %v1715 = vmul.f32 0.5, %v1714
    %v1716 = vsub.f32 1.5, %v1715
    %v1717 = vmul.f32 %v1712, %v1716
    %vm1718 = vweird.f32 %v1681
    %vm1719 = vweird.f32 %v1712
    %vm1720 = vmor %vm1718, %vm1719
    %v1721 = vsel %vm1720, %v1712, %v1717
    %v1722 = vmul.f32 %v1674, %v1691
    %v1723 = vmul.f32 %v1675, %v1701
    %v1724 = vmul.f32 %v1676, %v1711
    %v1725 = vmul.f32 %v1677, %v1721
    %v1726 = vstv %s1640
    %v1727 = vadd.f32 %v1722, %v1726
    %v1728 = vadd.f32 %v1723, %v1726
    %v1729 = vadd.f32 %v1724, %v1726
    %v1730 = vadd.f32 %v1725, %v1726
    %v1731 = vld [vmem:[%s11] sm:$0x1]
    %v1733 = vperm.slane %v1731, 0
    %v1735 = vld [vmem:[%s7] sm:$0xff]
    %v1736 = vld [vmem:[%s7 + $0x8] sm:$0xff]
    %v1737 = vld [vmem:[%s7 + $0x10] sm:$0xff]
    %v1738 = vld [vmem:[%s7 + $0x18] sm:$0xff]
    %v1739 = vld [vmem:[%s7 + $0x20] sm:$0xff]
    %v1740 = vld [vmem:[%s7 + $0x28] sm:$0xff]
    %v1741 = vld [vmem:[%s7 + $0x30] sm:$0xff]
    %v1742 = vld [vmem:[%s7 + $0x38] sm:$0xff]
    %v1743 = vld [vmem:[%s7 + $0x40] sm:$0xff]
    %v1744 = vld [vmem:[%s7 + $0x48] sm:$0xff]
    %v1745 = vld [vmem:[%s7 + $0x50] sm:$0xff]
    %v1746 = vld [vmem:[%s7 + $0x58] sm:$0xff]
    %v1747 = vld [vmem:[%s7 + $0x60] sm:$0xff]
    %v1748 = vld [vmem:[%s7 + $0x68] sm:$0xff]
    %v1749 = vld [vmem:[%s7 + $0x70] sm:$0xff]
    %v1750 = vld [vmem:[%s7 + $0x78] sm:$0xff]
    %1751 = vmatpush.msra.mxu0 %v1750
    %1752 = vmatpush.msra.mxu0 %v1749
    %1753 = vmatpush.msra.mxu0 %v1748
    %1754 = vmatpush.msra.mxu0 %v1747
    %1755 = vmatpush.msra.mxu0 %v1746
    %1756 = vmatpush.msra.mxu0 %v1745
    %1757 = vmatpush.msra.mxu0 %v1744
    %1758 = vmatpush.msra.mxu0 %v1743
    %1759 = vmatpush.msra.mxu0 %v1742
    %1760 = vmatpush.msra.mxu0 %v1741
    %1761 = vmatpush.msra.mxu0 %v1740
    %1762 = vmatpush.msra.mxu0 %v1739
    %1763 = vmatpush.msra.mxu0 %v1738
    %1764 = vmatpush.msra.mxu0 %v1737
    %1765 = vmatpush.msra.mxu0 %v1736
    %1766 = vmatpush.msra.mxu0 %v1735
    %1767 = vmatmul.f32.gmra.mxu0 %v1727
    %v1768 = vpop.f32.mrf.mxu0
    %v1769 = vadd.f32 0.0, %v1768
    %1770 = vmatmul.f32.gmra.mxu0 %v1728
    %v1771 = vpop.f32.mrf.mxu0
    %v1772 = vadd.f32 0.0, %v1771
    %1773 = vmatmul.f32.gmra.mxu0 %v1729
    %v1774 = vpop.f32.mrf.mxu0
    %v1775 = vadd.f32 0.0, %v1774
    %1776 = vmatmul.f32.gmra.mxu0 %v1730
    %v1777 = vpop.f32.mrf.mxu0
    %v1778 = vadd.f32 0.0, %v1777
    %1779 = vdwg.mxu0
    %v1780 = vld [vmem:[%s8] sm:$0xff]
    %v1781 = vld [vmem:[%s8 + $0x8] sm:$0xff]
    %v1782 = vld [vmem:[%s8 + $0x10] sm:$0xff]
    %v1783 = vld [vmem:[%s8 + $0x18] sm:$0xff]
    %v1784 = vld [vmem:[%s8 + $0x20] sm:$0xff]
    %v1785 = vld [vmem:[%s8 + $0x28] sm:$0xff]
    %v1786 = vld [vmem:[%s8 + $0x30] sm:$0xff]
    %v1787 = vld [vmem:[%s8 + $0x38] sm:$0xff]
    %v1788 = vld [vmem:[%s8 + $0x40] sm:$0xff]
    %v1789 = vld [vmem:[%s8 + $0x48] sm:$0xff]
    %v1790 = vld [vmem:[%s8 + $0x50] sm:$0xff]
    %v1791 = vld [vmem:[%s8 + $0x58] sm:$0xff]
    %v1792 = vld [vmem:[%s8 + $0x60] sm:$0xff]
    %v1793 = vld [vmem:[%s8 + $0x68] sm:$0xff]
    %v1794 = vld [vmem:[%s8 + $0x70] sm:$0xff]
    %v1795 = vld [vmem:[%s8 + $0x78] sm:$0xff]
    %1796 = vmatpush.msra.mxu0 %v1795
    %1797 = vmatpush.msra.mxu0 %v1794
    %1798 = vmatpush.msra.mxu0 %v1793
    %1799 = vmatpush.msra.mxu0 %v1792
    %1800 = vmatpush.msra.mxu0 %v1791
    %1801 = vmatpush.msra.mxu0 %v1790
    %1802 = vmatpush.msra.mxu0 %v1789
    %1803 = vmatpush.msra.mxu0 %v1788
    %1804 = vmatpush.msra.mxu0 %v1787
    %1805 = vmatpush.msra.mxu0 %v1786
    %1806 = vmatpush.msra.mxu0 %v1785
    %1807 = vmatpush.msra.mxu0 %v1784
    %1808 = vmatpush.msra.mxu0 %v1783
    %1809 = vmatpush.msra.mxu0 %v1782
    %1810 = vmatpush.msra.mxu0 %v1781
    %1811 = vmatpush.msra.mxu0 %v1780
    %1812 = vmatmul.f32.gmra.mxu0 %v74
    %v1813 = vpop.f32.mrf.mxu0
    %v1814 = vadd.f32 0.0, %v1813
    %1815 = vmatmul.f32.gmra.mxu0 %v75
    %v1816 = vpop.f32.mrf.mxu0
    %v1817 = vadd.f32 0.0, %v1816
    %1818 = vmatmul.f32.gmra.mxu0 %v76
    %v1819 = vpop.f32.mrf.mxu0
    %v1820 = vadd.f32 0.0, %v1819
    %1821 = vmatmul.f32.gmra.mxu0 %v77
    %v1822 = vpop.f32.mrf.mxu0
    %v1823 = vadd.f32 0.0, %v1822
    %1824 = vdwg.mxu0
    %v1825 = vld [vmem:[%s9] sm:$0xff]
    %v1826 = vld [vmem:[%s9 + $0x8] sm:$0xff]
    %v1827 = vld [vmem:[%s9 + $0x10] sm:$0xff]
    %v1828 = vld [vmem:[%s9 + $0x18] sm:$0xff]
    %v1829 = vld [vmem:[%s9 + $0x20] sm:$0xff]
    %v1830 = vld [vmem:[%s9 + $0x28] sm:$0xff]
    %v1831 = vld [vmem:[%s9 + $0x30] sm:$0xff]
    %v1832 = vld [vmem:[%s9 + $0x38] sm:$0xff]
    %v1833 = vld [vmem:[%s9 + $0x40] sm:$0xff]
    %v1834 = vld [vmem:[%s9 + $0x48] sm:$0xff]
    %v1835 = vld [vmem:[%s9 + $0x50] sm:$0xff]
    %v1836 = vld [vmem:[%s9 + $0x58] sm:$0xff]
    %v1837 = vld [vmem:[%s9 + $0x60] sm:$0xff]
    %v1838 = vld [vmem:[%s9 + $0x68] sm:$0xff]
    %v1839 = vld [vmem:[%s9 + $0x70] sm:$0xff]
    %v1840 = vld [vmem:[%s9 + $0x78] sm:$0xff]
    %1841 = vmatpush.msra.mxu0 %v1840
    %1842 = vmatpush.msra.mxu0 %v1839
    %1843 = vmatpush.msra.mxu0 %v1838
    %1844 = vmatpush.msra.mxu0 %v1837
    %1845 = vmatpush.msra.mxu0 %v1836
    %1846 = vmatpush.msra.mxu0 %v1835
    %1847 = vmatpush.msra.mxu0 %v1834
    %1848 = vmatpush.msra.mxu0 %v1833
    %1849 = vmatpush.msra.mxu0 %v1832
    %1850 = vmatpush.msra.mxu0 %v1831
    %1851 = vmatpush.msra.mxu0 %v1830
    %1852 = vmatpush.msra.mxu0 %v1829
    %1853 = vmatpush.msra.mxu0 %v1828
    %1854 = vmatpush.msra.mxu0 %v1827
    %1855 = vmatpush.msra.mxu0 %v1826
    %1856 = vmatpush.msra.mxu0 %v1825
    %1857 = vmatmul.f32.gmra.mxu0 %v74
    %v1858 = vpop.f32.mrf.mxu0
    %v1859 = vadd.f32 0.0, %v1858
    %1860 = vmatmul.f32.gmra.mxu0 %v75
    %v1861 = vpop.f32.mrf.mxu0
    %v1862 = vadd.f32 0.0, %v1861
    %1863 = vmatmul.f32.gmra.mxu0 %v76
    %v1864 = vpop.f32.mrf.mxu0
    %v1865 = vadd.f32 0.0, %v1864
    %1866 = vmatmul.f32.gmra.mxu0 %v77
    %v1867 = vpop.f32.mrf.mxu0
    %v1868 = vadd.f32 0.0, %v1867
    %1869 = vdwg.mxu0
    %v1871 = vsel %vm316, %v1769, 0
    %v1874 = vsel %vm316, %v1772, 0
    %v1877 = vsel %vm316, %v1814, 0
    %v1880 = vsel %vm316, %v1817, 0
    %1882 = vmatpush.xpose.msra.mxu0 0.0
    %1883 = vmatpush.xpose.msra.mxu0 0.0
    %1884 = vmatpush.xpose.msra.mxu0 0.0
    %1885 = vmatpush.xpose.msra.mxu0 0.0
    %1886 = vmatpush.xpose.msra.mxu0 0.0
    %1887 = vmatpush.xpose.msra.mxu0 0.0
    %1888 = vmatpush.xpose.msra.mxu0 0.0
    %1889 = vmatpush.xpose.msra.mxu0 0.0
    %1890 = vmatpush.xpose.msra.mxu0 0.0
    %1891 = vmatpush.xpose.msra.mxu0 0.0
    %1892 = vmatpush.xpose.msra.mxu0 0.0
    %1893 = vmatpush.xpose.msra.mxu0 0.0
    %1894 = vmatpush.xpose.msra.mxu0 0.0
    %1895 = vmatpush.xpose.msra.mxu0 0.0
    %1896 = vmatpush.xpose.msra.mxu0 %v1880
    %1897 = vmatpush.xpose.msra.mxu0 %v1877
    %1898 = vmatmul.f32.gmra.mxu0 %v1871
    %v1899 = vpop.f32.mrf.mxu0
    %v1900 = vadd.f32 0.0, %v1899
    %1901 = vmatmul.f32.gmra.mxu0 %v1874
    %v1902 = vpop.f32.mrf.mxu0
    %v1903 = vadd.f32 0.0, %v1902
    %1904 = vdwg.mxu0
    %v1905 = vmul.f32 %v1900, 0.17677669
    %v1906 = vmul.f32 %v1903, 0.17677669
    %v1907 = vsel %vm354, %v1905, -inf
    %1908 = vmax.xlane.f32.xlu0 %v1907
    %v1909 = vpop.xlane.xlu0 %1908
    %v1910 = vsel %vm354, %v1906, -inf
    %1911 = vmax.xlane.f32.xlu0 %v1910
    %v1912 = vpop.xlane.xlu0 %1911
    %v1913 = vsub.f32 %v1905, %v1909
    %v1914 = vsub.f32 %v1906, %v1912
    %v1915 = vmul.f32 %v1913, 1.442695
    %v1916 = vpow.pop %v1915
    %v1917 = vmul.f32 %v1914, 1.442695
    %v1918 = vpow.pop %v1917
    %v1919 = vsel %vm354, %v1916, 0.0
    %1920 = vadd.xlane.f32.xlu0 %v1919
    %v1921 = vpop.xlane.xlu0 %1920
    %v1922 = vsel %vm354, %v1918, 0.0
    %1923 = vadd.xlane.f32.xlu0 %v1922
    %v1924 = vpop.xlane.xlu0 %1923
    %v1926 = vsel %vm354, %v1916, 0
    %v1929 = vsel %vm354, %v1918, 0
    %1931 = vmatpush.msra.mxu0 0.0
    %1932 = vmatpush.msra.mxu0 0.0
    %1933 = vmatpush.msra.mxu0 0.0
    %1934 = vmatpush.msra.mxu0 0.0
    %1935 = vmatpush.msra.mxu0 0.0
    %1936 = vmatpush.msra.mxu0 0.0
    %1937 = vmatpush.msra.mxu0 0.0
    %1938 = vmatpush.msra.mxu0 0.0
    %1939 = vmatpush.msra.mxu0 0.0
    %1940 = vmatpush.msra.mxu0 0.0
    %1941 = vmatpush.msra.mxu0 0.0
    %1942 = vmatpush.msra.mxu0 0.0
    %1943 = vmatpush.msra.mxu0 0.0
    %1944 = vmatpush.msra.mxu0 0.0
    %1945 = vmatpush.msra.mxu0 %v1862
    %1946 = vmatpush.msra.mxu0 %v1859
    %1947 = vmatmul.f32.gmra.mxu0 %v1926
    %v1948 = vpop.f32.mrf.mxu0
    %v1949 = vadd.f32 0.0, %v1948
    %1950 = vmatmul.f32.gmra.mxu0 %v1929
    %v1951 = vpop.f32.mrf.mxu0
    %v1952 = vadd.f32 0.0, %v1951
    %1953 = vdwg.mxu0
    %v1954 = vrcp.pop %v1921
    %v1955 = vrcp.pop %v1924
    %v1956 = vmul.f32 %v1949, %v1954
    %v1957 = vmul.f32 %v1952, %v1955
    %v1959 = vsel %vm316, %v1775, 0
    %v1962 = vsel %vm316, %v1778, 0
    %v1965 = vsel %vm316, %v1820, 0
    %v1968 = vsel %vm316, %v1823, 0
    %1970 = vmatpush.xpose.msra.mxu0 0.0
    %1971 = vmatpush.xpose.msra.mxu0 0.0
    %1972 = vmatpush.xpose.msra.mxu0 0.0
    %1973 = vmatpush.xpose.msra.mxu0 0.0
    %1974 = vmatpush.xpose.msra.mxu0 0.0
    %1975 = vmatpush.xpose.msra.mxu0 0.0
    %1976 = vmatpush.xpose.msra.mxu0 0.0
    %1977 = vmatpush.xpose.msra.mxu0 0.0
    %1978 = vmatpush.xpose.msra.mxu0 0.0
    %1979 = vmatpush.xpose.msra.mxu0 0.0
    %1980 = vmatpush.xpose.msra.mxu0 0.0
    %1981 = vmatpush.xpose.msra.mxu0 0.0
    %1982 = vmatpush.xpose.msra.mxu0 0.0
    %1983 = vmatpush.xpose.msra.mxu0 0.0
    %1984 = vmatpush.xpose.msra.mxu0 %v1968
    %1985 = vmatpush.xpose.msra.mxu0 %v1965
    %1986 = vmatmul.f32.gmra.mxu0 %v1959
    %v1987 = vpop.f32.mrf.mxu0
    %v1988 = vadd.f32 0.0, %v1987
    %1989 = vmatmul.f32.gmra.mxu0 %v1962
    %v1990 = vpop.f32.mrf.mxu0
    %v1991 = vadd.f32 0.0, %v1990
    %1992 = vdwg.mxu0
    %v1993 = vmul.f32 %v1988, 0.17677669
    %v1994 = vmul.f32 %v1991, 0.17677669
    %v1995 = vsel %vm354, %v1993, -inf
    %1996 = vmax.xlane.f32.xlu0 %v1995
    %v1997 = vpop.xlane.xlu0 %1996
    %v1998 = vsel %vm354, %v1994, -inf
    %1999 = vmax.xlane.f32.xlu0 %v1998
    %v2000 = vpop.xlane.xlu0 %1999
    %v2001 = vsub.f32 %v1993, %v1997
    %v2002 = vsub.f32 %v1994, %v2000
    %v2003 = vmul.f32 %v2001, 1.442695
    %v2004 = vpow.pop %v2003
    %v2005 = vmul.f32 %v2002, 1.442695
    %v2006 = vpow.pop %v2005
    %v2007 = vsel %vm354, %v2004, 0.0
    %2008 = vadd.xlane.f32.xlu0 %v2007
    %v2009 = vpop.xlane.xlu0 %2008
    %v2010 = vsel %vm354, %v2006, 0.0
    %2011 = vadd.xlane.f32.xlu0 %v2010
    %v2012 = vpop.xlane.xlu0 %2011
    %v2014 = vsel %vm354, %v2004, 0
    %v2017 = vsel %vm354, %v2006, 0
    %2019 = vmatpush.msra.mxu0 0.0
    %2020 = vmatpush.msra.mxu0 0.0
    %2021 = vmatpush.msra.mxu0 0.0
    %2022 = vmatpush.msra.mxu0 0.0
    %2023 = vmatpush.msra.mxu0 0.0
    %2024 = vmatpush.msra.mxu0 0.0
    %2025 = vmatpush.msra.mxu0 0.0
    %2026 = vmatpush.msra.mxu0 0.0
    %2027 = vmatpush.msra.mxu0 0.0
    %2028 = vmatpush.msra.mxu0 0.0
    %2029 = vmatpush.msra.mxu0 0.0
    %2030 = vmatpush.msra.mxu0 0.0
    %2031 = vmatpush.msra.mxu0 0.0
    %2032 = vmatpush.msra.mxu0 0.0
    %2033 = vmatpush.msra.mxu0 %v1868
    %2034 = vmatpush.msra.mxu0 %v1865
    %2035 = vmatmul.f32.gmra.mxu0 %v2014
    %v2036 = vpop.f32.mrf.mxu0
    %v2037 = vadd.f32 0.0, %v2036
    %2038 = vmatmul.f32.gmra.mxu0 %v2017
    %v2039 = vpop.f32.mrf.mxu0
    %v2040 = vadd.f32 0.0, %v2039
    %2041 = vdwg.mxu0
    %v2042 = vrcp.pop %v2009
    %v2043 = vrcp.pop %v2012
    %v2044 = vmul.f32 %v2037, %v2042
    %v2045 = vmul.f32 %v2040, %v2043
    %v2046 = vld [vmem:[%s10] sm:$0xff]
    %v2047 = vld [vmem:[%s10 + $0x8] sm:$0xff]
    %v2048 = vld [vmem:[%s10 + $0x10] sm:$0xff]
    %v2049 = vld [vmem:[%s10 + $0x18] sm:$0xff]
    %v2051 = vsel %vm316, %v1956, 0
    %v2054 = vsel %vm316, %v1957, 0
    %v2057 = vsel %vm316, %v2044, 0
    %v2060 = vsel %vm316, %v2045, 0
    %2062 = vmatpush.msra.mxu0 0.0
    %2063 = vmatpush.msra.mxu0 0.0
    %2064 = vmatpush.msra.mxu0 0.0
    %2065 = vmatpush.msra.mxu0 0.0
    %2066 = vmatpush.msra.mxu0 0.0
    %2067 = vmatpush.msra.mxu0 0.0
    %2068 = vmatpush.msra.mxu0 0.0
    %2069 = vmatpush.msra.mxu0 0.0
    %2070 = vmatpush.msra.mxu0 0.0
    %2071 = vmatpush.msra.mxu0 0.0
    %2072 = vmatpush.msra.mxu0 0.0
    %2073 = vmatpush.msra.mxu0 0.0
    %2074 = vmatpush.msra.mxu0 %v2049
    %2075 = vmatpush.msra.mxu0 %v2048
    %2076 = vmatpush.msra.mxu0 %v2047
    %2077 = vmatpush.msra.mxu0 %v2046
    %2078 = vmatmul.f32.gmra.mxu0 %v2051
    %v2079 = vpop.f32.mrf.mxu0
    %v2080 = vadd.f32 0.0, %v2079
    %2081 = vmatmul.f32.gmra.mxu0 %v2054
    %v2082 = vpop.f32.mrf.mxu0
    %v2083 = vadd.f32 0.0, %v2082
    %2084 = vmatmul.f32.gmra.mxu0 %v2057
    %v2085 = vpop.f32.mrf.mxu0
    %v2086 = vadd.f32 0.0, %v2085
    %2087 = vmatmul.f32.gmra.mxu0 %v2060
    %v2088 = vpop.f32.mrf.mxu0
    %v2089 = vadd.f32 0.0, %v2088
    %2090 = vdwg.mxu0
    %v2091 = vadd.f32 %v1733, %v2080
    %v2092 = vadd.f32 %v1733, %v2083
    %v2093 = vadd.f32 %v1733, %v2086
    %v2094 = vadd.f32 %v1733, %v2089
    %s2095 = scalar_lea.vmem %s7, 128
    %v2096 = vld [vmem:[%s2095] sm:$0xff]
    %v2097 = vld [vmem:[%s2095 + $0x8] sm:$0xff]
    %v2098 = vld [vmem:[%s2095 + $0x10] sm:$0xff]
    %v2099 = vld [vmem:[%s2095 + $0x18] sm:$0xff]
    %v2100 = vld [vmem:[%s2095 + $0x20] sm:$0xff]
    %v2101 = vld [vmem:[%s2095 + $0x28] sm:$0xff]
    %v2102 = vld [vmem:[%s2095 + $0x30] sm:$0xff]
    %v2103 = vld [vmem:[%s2095 + $0x38] sm:$0xff]
    %v2104 = vld [vmem:[%s2095 + $0x40] sm:$0xff]
    %v2105 = vld [vmem:[%s2095 + $0x48] sm:$0xff]
    %v2106 = vld [vmem:[%s2095 + $0x50] sm:$0xff]
    %v2107 = vld [vmem:[%s2095 + $0x58] sm:$0xff]
    %v2108 = vld [vmem:[%s2095 + $0x60] sm:$0xff]
    %v2109 = vld [vmem:[%s2095 + $0x68] sm:$0xff]
    %v2110 = vld [vmem:[%s2095 + $0x70] sm:$0xff]
    %v2111 = vld [vmem:[%s2095 + $0x78] sm:$0xff]
    %2112 = vmatpush.msra.mxu0 %v2111
    %2113 = vmatpush.msra.mxu0 %v2110
    %2114 = vmatpush.msra.mxu0 %v2109
    %2115 = vmatpush.msra.mxu0 %v2108
    %2116 = vmatpush.msra.mxu0 %v2107
    %2117 = vmatpush.msra.mxu0 %v2106
    %2118 = vmatpush.msra.mxu0 %v2105
    %2119 = vmatpush.msra.mxu0 %v2104
    %2120 = vmatpush.msra.mxu0 %v2103
    %2121 = vmatpush.msra.mxu0 %v2102
    %2122 = vmatpush.msra.mxu0 %v2101
    %2123 = vmatpush.msra.mxu0 %v2100
    %2124 = vmatpush.msra.mxu0 %v2099
    %2125 = vmatpush.msra.mxu0 %v2098
    %2126 = vmatpush.msra.mxu0 %v2097
    %2127 = vmatpush.msra.mxu0 %v2096
    %2128 = vmatmul.f32.gmra.mxu0 %v1727
    %v2129 = vpop.f32.mrf.mxu0
    %v2130 = vadd.f32 0.0, %v2129
    %2131 = vmatmul.f32.gmra.mxu0 %v1728
    %v2132 = vpop.f32.mrf.mxu0
    %v2133 = vadd.f32 0.0, %v2132
    %2134 = vmatmul.f32.gmra.mxu0 %v1729
    %v2135 = vpop.f32.mrf.mxu0
    %v2136 = vadd.f32 0.0, %v2135
    %2137 = vmatmul.f32.gmra.mxu0 %v1730
    %v2138 = vpop.f32.mrf.mxu0
    %v2139 = vadd.f32 0.0, %v2138
    %2140 = vdwg.mxu0
    %s2141 = scalar_lea.vmem %s8, 128
    %v2142 = vld [vmem:[%s2141] sm:$0xff]
    %v2143 = vld [vmem:[%s2141 + $0x8] sm:$0xff]
    %v2144 = vld [vmem:[%s2141 + $0x10] sm:$0xff]
    %v2145 = vld [vmem:[%s2141 + $0x18] sm:$0xff]
    %v2146 = vld [vmem:[%s2141 + $0x20] sm:$0xff]
    %v2147 = vld [vmem:[%s2141 + $0x28] sm:$0xff]
    %v2148 = vld [vmem:[%s2141 + $0x30] sm:$0xff]
    %v2149 = vld [vmem:[%s2141 + $0x38] sm:$0xff]
    %v2150 = vld [vmem:[%s2141 + $0x40] sm:$0xff]
    %v2151 = vld [vmem:[%s2141 + $0x48] sm:$0xff]
    %v2152 = vld [vmem:[%s2141 + $0x50] sm:$0xff]
    %v2153 = vld [vmem:[%s2141 + $0x58] sm:$0xff]
    %v2154 = vld [vmem:[%s2141 + $0x60] sm:$0xff]
    %v2155 = vld [vmem:[%s2141 + $0x68] sm:$0xff]
    %v2156 = vld [vmem:[%s2141 + $0x70] sm:$0xff]
    %v2157 = vld [vmem:[%s2141 + $0x78] sm:$0xff]
    %2158 = vmatpush.msra.mxu0 %v2157
    %2159 = vmatpush.msra.mxu0 %v2156
    %2160 = vmatpush.msra.mxu0 %v2155
    %2161 = vmatpush.msra.mxu0 %v2154
    %2162 = vmatpush.msra.mxu0 %v2153
    %2163 = vmatpush.msra.mxu0 %v2152
    %2164 = vmatpush.msra.mxu0 %v2151
    %2165 = vmatpush.msra.mxu0 %v2150
    %2166 = vmatpush.msra.mxu0 %v2149
    %2167 = vmatpush.msra.mxu0 %v2148
    %2168 = vmatpush.msra.mxu0 %v2147
    %2169 = vmatpush.msra.mxu0 %v2146
    %2170 = vmatpush.msra.mxu0 %v2145
    %2171 = vmatpush.msra.mxu0 %v2144
    %2172 = vmatpush.msra.mxu0 %v2143
    %2173 = vmatpush.msra.mxu0 %v2142
    %2174 = vmatmul.f32.gmra.mxu0 %v74
    %v2175 = vpop.f32.mrf.mxu0
    %v2176 = vadd.f32 0.0, %v2175
    %2177 = vmatmul.f32.gmra.mxu0 %v75
    %v2178 = vpop.f32.mrf.mxu0
    %v2179 = vadd.f32 0.0, %v2178
    %2180 = vmatmul.f32.gmra.mxu0 %v76
    %v2181 = vpop.f32.mrf.mxu0
    %v2182 = vadd.f32 0.0, %v2181
    %2183 = vmatmul.f32.gmra.mxu0 %v77
    %v2184 = vpop.f32.mrf.mxu0
    %v2185 = vadd.f32 0.0, %v2184
    %2186 = vdwg.mxu0
    %s2187 = scalar_lea.vmem %s9, 128
    %v2188 = vld [vmem:[%s2187] sm:$0xff]
    %v2189 = vld [vmem:[%s2187 + $0x8] sm:$0xff]
    %v2190 = vld [vmem:[%s2187 + $0x10] sm:$0xff]
    %v2191 = vld [vmem:[%s2187 + $0x18] sm:$0xff]
    %v2192 = vld [vmem:[%s2187 + $0x20] sm:$0xff]
    %v2193 = vld [vmem:[%s2187 + $0x28] sm:$0xff]
    %v2194 = vld [vmem:[%s2187 + $0x30] sm:$0xff]
    %v2195 = vld [vmem:[%s2187 + $0x38] sm:$0xff]
    %v2196 = vld [vmem:[%s2187 + $0x40] sm:$0xff]
    %v2197 = vld [vmem:[%s2187 + $0x48] sm:$0xff]
    %v2198 = vld [vmem:[%s2187 + $0x50] sm:$0xff]
    %v2199 = vld [vmem:[%s2187 + $0x58] sm:$0xff]
    %v2200 = vld [vmem:[%s2187 + $0x60] sm:$0xff]
    %v2201 = vld [vmem:[%s2187 + $0x68] sm:$0xff]
    %v2202 = vld [vmem:[%s2187 + $0x70] sm:$0xff]
    %v2203 = vld [vmem:[%s2187 + $0x78] sm:$0xff]
    %2204 = vmatpush.msra.mxu0 %v2203
    %2205 = vmatpush.msra.mxu0 %v2202
    %2206 = vmatpush.msra.mxu0 %v2201
    %2207 = vmatpush.msra.mxu0 %v2200
    %2208 = vmatpush.msra.mxu0 %v2199
    %2209 = vmatpush.msra.mxu0 %v2198
    %2210 = vmatpush.msra.mxu0 %v2197
    %2211 = vmatpush.msra.mxu0 %v2196
    %2212 = vmatpush.msra.mxu0 %v2195
    %2213 = vmatpush.msra.mxu0 %v2194
    %2214 = vmatpush.msra.mxu0 %v2193
    %2215 = vmatpush.msra.mxu0 %v2192
    %2216 = vmatpush.msra.mxu0 %v2191
    %2217 = vmatpush.msra.mxu0 %v2190
    %2218 = vmatpush.msra.mxu0 %v2189
    %2219 = vmatpush.msra.mxu0 %v2188
    %2220 = vmatmul.f32.gmra.mxu0 %v74
    %v2221 = vpop.f32.mrf.mxu0
    %v2222 = vadd.f32 0.0, %v2221
    %2223 = vmatmul.f32.gmra.mxu0 %v75
    %v2224 = vpop.f32.mrf.mxu0
    %v2225 = vadd.f32 0.0, %v2224
    %2226 = vmatmul.f32.gmra.mxu0 %v76
    %v2227 = vpop.f32.mrf.mxu0
    %v2228 = vadd.f32 0.0, %v2227
    %2229 = vmatmul.f32.gmra.mxu0 %v77
    %v2230 = vpop.f32.mrf.mxu0
    %v2231 = vadd.f32 0.0, %v2230
    %2232 = vdwg.mxu0
    %v2234 = vsel %vm316, %v2130, 0
    %v2237 = vsel %vm316, %v2133, 0
    %v2240 = vsel %vm316, %v2176, 0
    %v2243 = vsel %vm316, %v2179, 0
    %2245 = vmatpush.xpose.msra.mxu0 0.0
    %2246 = vmatpush.xpose.msra.mxu0 0.0
    %2247 = vmatpush.xpose.msra.mxu0 0.0
    %2248 = vmatpush.xpose.msra.mxu0 0.0
    %2249 = vmatpush.xpose.msra.mxu0 0.0
    %2250 = vmatpush.xpose.msra.mxu0 0.0
    %2251 = vmatpush.xpose.msra.mxu0 0.0
    %2252 = vmatpush.xpose.msra.mxu0 0.0
    %2253 = vmatpush.xpose.msra.mxu0 0.0
    %2254 = vmatpush.xpose.msra.mxu0 0.0
    %2255 = vmatpush.xpose.msra.mxu0 0.0
    %2256 = vmatpush.xpose.msra.mxu0 0.0
    %2257 = vmatpush.xpose.msra.mxu0 0.0
    %2258 = vmatpush.xpose.msra.mxu0 0.0
    %2259 = vmatpush.xpose.msra.mxu0 %v2243
    %2260 = vmatpush.xpose.msra.mxu0 %v2240
    %2261 = vmatmul.f32.gmra.mxu0 %v2234
    %v2262 = vpop.f32.mrf.mxu0
    %v2263 = vadd.f32 0.0, %v2262
    %2264 = vmatmul.f32.gmra.mxu0 %v2237
    %v2265 = vpop.f32.mrf.mxu0
    %v2266 = vadd.f32 0.0, %v2265
    %2267 = vdwg.mxu0
    %v2268 = vmul.f32 %v2263, 0.17677669
    %v2269 = vmul.f32 %v2266, 0.17677669
    %v2270 = vsel %vm354, %v2268, -inf
    %2271 = vmax.xlane.f32.xlu0 %v2270
    %v2272 = vpop.xlane.xlu0 %2271
    %v2273 = vsel %vm354, %v2269, -inf
    %2274 = vmax.xlane.f32.xlu0 %v2273
    %v2275 = vpop.xlane.xlu0 %2274
    %v2276 = vsub.f32 %v2268, %v2272
    %v2277 = vsub.f32 %v2269, %v2275
    %v2278 = vmul.f32 %v2276, 1.442695
    %v2279 = vpow.pop %v2278
    %v2280 = vmul.f32 %v2277, 1.442695
    %v2281 = vpow.pop %v2280
    %v2282 = vsel %vm354, %v2279, 0.0
    %2283 = vadd.xlane.f32.xlu0 %v2282
    %v2284 = vpop.xlane.xlu0 %2283
    %v2285 = vsel %vm354, %v2281, 0.0
    %2286 = vadd.xlane.f32.xlu0 %v2285
    %v2287 = vpop.xlane.xlu0 %2286
    %v2289 = vsel %vm354, %v2279, 0
    %v2292 = vsel %vm354, %v2281, 0
    %2294 = vmatpush.msra.mxu0 0.0
    %2295 = vmatpush.msra.mxu0 0.0
    %2296 = vmatpush.msra.mxu0 0.0
    %2297 = vmatpush.msra.mxu0 0.0
    %2298 = vmatpush.msra.mxu0 0.0
    %2299 = vmatpush.msra.mxu0 0.0
    %2300 = vmatpush.msra.mxu0 0.0
    %2301 = vmatpush.msra.mxu0 0.0
    %2302 = vmatpush.msra.mxu0 0.0
    %2303 = vmatpush.msra.mxu0 0.0
    %2304 = vmatpush.msra.mxu0 0.0
    %2305 = vmatpush.msra.mxu0 0.0
    %2306 = vmatpush.msra.mxu0 0.0
    %2307 = vmatpush.msra.mxu0 0.0
    %2308 = vmatpush.msra.mxu0 %v2225
    %2309 = vmatpush.msra.mxu0 %v2222
    %2310 = vmatmul.f32.gmra.mxu0 %v2289
    %v2311 = vpop.f32.mrf.mxu0
    %v2312 = vadd.f32 0.0, %v2311
    %2313 = vmatmul.f32.gmra.mxu0 %v2292
    %v2314 = vpop.f32.mrf.mxu0
    %v2315 = vadd.f32 0.0, %v2314
    %2316 = vdwg.mxu0
    %v2317 = vrcp.pop %v2284
    %v2318 = vrcp.pop %v2287
    %v2319 = vmul.f32 %v2312, %v2317
    %v2320 = vmul.f32 %v2315, %v2318
    %v2322 = vsel %vm316, %v2136, 0
    %v2325 = vsel %vm316, %v2139, 0
    %v2328 = vsel %vm316, %v2182, 0
    %v2331 = vsel %vm316, %v2185, 0
    %2333 = vmatpush.xpose.msra.mxu0 0.0
    %2334 = vmatpush.xpose.msra.mxu0 0.0
    %2335 = vmatpush.xpose.msra.mxu0 0.0
    %2336 = vmatpush.xpose.msra.mxu0 0.0
    %2337 = vmatpush.xpose.msra.mxu0 0.0
    %2338 = vmatpush.xpose.msra.mxu0 0.0
    %2339 = vmatpush.xpose.msra.mxu0 0.0
    %2340 = vmatpush.xpose.msra.mxu0 0.0
    %2341 = vmatpush.xpose.msra.mxu0 0.0
    %2342 = vmatpush.xpose.msra.mxu0 0.0
    %2343 = vmatpush.xpose.msra.mxu0 0.0
    %2344 = vmatpush.xpose.msra.mxu0 0.0
    %2345 = vmatpush.xpose.msra.mxu0 0.0
    %2346 = vmatpush.xpose.msra.mxu0 0.0
    %2347 = vmatpush.xpose.msra.mxu0 %v2331
    %2348 = vmatpush.xpose.msra.mxu0 %v2328
    %2349 = vmatmul.f32.gmra.mxu0 %v2322
    %v2350 = vpop.f32.mrf.mxu0
    %v2351 = vadd.f32 0.0, %v2350
    %2352 = vmatmul.f32.gmra.mxu0 %v2325
    %v2353 = vpop.f32.mrf.mxu0
    %v2354 = vadd.f32 0.0, %v2353
    %2355 = vdwg.mxu0
    %v2356 = vmul.f32 %v2351, 0.17677669
    %v2357 = vmul.f32 %v2354, 0.17677669
    %v2358 = vsel %vm354, %v2356, -inf
    %2359 = vmax.xlane.f32.xlu0 %v2358
    %v2360 = vpop.xlane.xlu0 %2359
    %v2361 = vsel %vm354, %v2357, -inf
    %2362 = vmax.xlane.f32.xlu0 %v2361
    %v2363 = vpop.xlane.xlu0 %2362
    %v2364 = vsub.f32 %v2356, %v2360
    %v2365 = vsub.f32 %v2357, %v2363
    %v2366 = vmul.f32 %v2364, 1.442695
    %v2367 = vpow.pop %v2366
    %v2368 = vmul.f32 %v2365, 1.442695
    %v2369 = vpow.pop %v2368
    %v2370 = vsel %vm354, %v2367, 0.0
    %2371 = vadd.xlane.f32.xlu0 %v2370
    %v2372 = vpop.xlane.xlu0 %2371
    %v2373 = vsel %vm354, %v2369, 0.0
    %2374 = vadd.xlane.f32.xlu0 %v2373
    %v2375 = vpop.xlane.xlu0 %2374
    %v2377 = vsel %vm354, %v2367, 0
    %v2380 = vsel %vm354, %v2369, 0
    %2382 = vmatpush.msra.mxu0 0.0
    %2383 = vmatpush.msra.mxu0 0.0
    %2384 = vmatpush.msra.mxu0 0.0
    %2385 = vmatpush.msra.mxu0 0.0
    %2386 = vmatpush.msra.mxu0 0.0
    %2387 = vmatpush.msra.mxu0 0.0
    %2388 = vmatpush.msra.mxu0 0.0
    %2389 = vmatpush.msra.mxu0 0.0
    %2390 = vmatpush.msra.mxu0 0.0
    %2391 = vmatpush.msra.mxu0 0.0
    %2392 = vmatpush.msra.mxu0 0.0
    %2393 = vmatpush.msra.mxu0 0.0
    %2394 = vmatpush.msra.mxu0 0.0
    %2395 = vmatpush.msra.mxu0 0.0
    %2396 = vmatpush.msra.mxu0 %v2231
    %2397 = vmatpush.msra.mxu0 %v2228
    %2398 = vmatmul.f32.gmra.mxu0 %v2377
    %v2399 = vpop.f32.mrf.mxu0
    %v2400 = vadd.f32 0.0, %v2399
    %2401 = vmatmul.f32.gmra.mxu0 %v2380
    %v2402 = vpop.f32.mrf.mxu0
    %v2403 = vadd.f32 0.0, %v2402
    %2404 = vdwg.mxu0
    %v2405 = vrcp.pop %v2372
    %v2406 = vrcp.pop %v2375
    %v2407 = vmul.f32 %v2400, %v2405
    %v2408 = vmul.f32 %v2403, %v2406
    %s2409 = scalar_lea.vmem %s10, 32
    %v2410 = vld [vmem:[%s2409] sm:$0xff]
    %v2411 = vld [vmem:[%s2409 + $0x8] sm:$0xff]
    %v2412 = vld [vmem:[%s2409 + $0x10] sm:$0xff]
    %v2413 = vld [vmem:[%s2409 + $0x18] sm:$0xff]
    %v2415 = vsel %vm316, %v2319, 0
    %v2418 = vsel %vm316, %v2320, 0
    %v2421 = vsel %vm316, %v2407, 0
    %v2424 = vsel %vm316, %v2408, 0
    %2426 = vmatpush.msra.mxu0 0.0
    %2427 = vmatpush.msra.mxu0 0.0
    %2428 = vmatpush.msra.mxu0 0.0
    %2429 = vmatpush.msra.mxu0 0.0
    %2430 = vmatpush.msra.mxu0 0.0
    %2431 = vmatpush.msra.mxu0 0.0
    %2432 = vmatpush.msra.mxu0 0.0
    %2433 = vmatpush.msra.mxu0 0.0
    %2434 = vmatpush.msra.mxu0 0.0
    %2435 = vmatpush.msra.mxu0 0.0
    %2436 = vmatpush.msra.mxu0 0.0
    %2437 = vmatpush.msra.mxu0 0.0
    %2438 = vmatpush.msra.mxu0 %v2413
    %2439 = vmatpush.msra.mxu0 %v2412
    %2440 = vmatpush.msra.mxu0 %v2411
    %2441 = vmatpush.msra.mxu0 %v2410
    %2442 = vmatmul.f32.gmra.mxu0 %v2415
    %v2443 = vpop.f32.mrf.mxu0
    %v2444 = vadd.f32 0.0, %v2443
    %2445 = vmatmul.f32.gmra.mxu0 %v2418
    %v2446 = vpop.f32.mrf.mxu0
    %v2447 = vadd.f32 0.0, %v2446
    %2448 = vmatmul.f32.gmra.mxu0 %v2421
    %v2449 = vpop.f32.mrf.mxu0
    %v2450 = vadd.f32 0.0, %v2449
    %2451 = vmatmul.f32.gmra.mxu0 %v2424
    %v2452 = vpop.f32.mrf.mxu0
    %v2453 = vadd.f32 0.0, %v2452
    %2454 = vdwg.mxu0
    %v2455 = vadd.f32 %v2091, %v2444
    %v2456 = vadd.f32 %v2092, %v2447
    %v2457 = vadd.f32 %v2093, %v2450
    %v2458 = vadd.f32 %v2094, %v2453
    %s2459 = scalar_lea.vmem %s7, 256
    %v2460 = vld [vmem:[%s2459] sm:$0xff]
    %v2461 = vld [vmem:[%s2459 + $0x8] sm:$0xff]
    %v2462 = vld [vmem:[%s2459 + $0x10] sm:$0xff]
    %v2463 = vld [vmem:[%s2459 + $0x18] sm:$0xff]
    %v2464 = vld [vmem:[%s2459 + $0x20] sm:$0xff]
    %v2465 = vld [vmem:[%s2459 + $0x28] sm:$0xff]
    %v2466 = vld [vmem:[%s2459 + $0x30] sm:$0xff]
    %v2467 = vld [vmem:[%s2459 + $0x38] sm:$0xff]
    %v2468 = vld [vmem:[%s2459 + $0x40] sm:$0xff]
    %v2469 = vld [vmem:[%s2459 + $0x48] sm:$0xff]
    %v2470 = vld [vmem:[%s2459 + $0x50] sm:$0xff]
    %v2471 = vld [vmem:[%s2459 + $0x58] sm:$0xff]
    %v2472 = vld [vmem:[%s2459 + $0x60] sm:$0xff]
    %v2473 = vld [vmem:[%s2459 + $0x68] sm:$0xff]
    %v2474 = vld [vmem:[%s2459 + $0x70] sm:$0xff]
    %v2475 = vld [vmem:[%s2459 + $0x78] sm:$0xff]
    %2476 = vmatpush.msra.mxu0 %v2475
    %2477 = vmatpush.msra.mxu0 %v2474
    %2478 = vmatpush.msra.mxu0 %v2473
    %2479 = vmatpush.msra.mxu0 %v2472
    %2480 = vmatpush.msra.mxu0 %v2471
    %2481 = vmatpush.msra.mxu0 %v2470
    %2482 = vmatpush.msra.mxu0 %v2469
    %2483 = vmatpush.msra.mxu0 %v2468
    %2484 = vmatpush.msra.mxu0 %v2467
    %2485 = vmatpush.msra.mxu0 %v2466
    %2486 = vmatpush.msra.mxu0 %v2465
    %2487 = vmatpush.msra.mxu0 %v2464
    %2488 = vmatpush.msra.mxu0 %v2463
    %2489 = vmatpush.msra.mxu0 %v2462
    %2490 = vmatpush.msra.mxu0 %v2461
    %2491 = vmatpush.msra.mxu0 %v2460
    %2492 = vmatmul.f32.gmra.mxu0 %v1727
    %v2493 = vpop.f32.mrf.mxu0
    %v2494 = vadd.f32 0.0, %v2493
    %2495 = vmatmul.f32.gmra.mxu0 %v1728
    %v2496 = vpop.f32.mrf.mxu0
    %v2497 = vadd.f32 0.0, %v2496
    %2498 = vmatmul.f32.gmra.mxu0 %v1729
    %v2499 = vpop.f32.mrf.mxu0
    %v2500 = vadd.f32 0.0, %v2499
    %2501 = vmatmul.f32.gmra.mxu0 %v1730
    %v2502 = vpop.f32.mrf.mxu0
    %v2503 = vadd.f32 0.0, %v2502
    %2504 = vdwg.mxu0
    %s2505 = scalar_lea.vmem %s8, 256
    %v2506 = vld [vmem:[%s2505] sm:$0xff]
    %v2507 = vld [vmem:[%s2505 + $0x8] sm:$0xff]
    %v2508 = vld [vmem:[%s2505 + $0x10] sm:$0xff]
    %v2509 = vld [vmem:[%s2505 + $0x18] sm:$0xff]
    %v2510 = vld [vmem:[%s2505 + $0x20] sm:$0xff]
    %v2511 = vld [vmem:[%s2505 + $0x28] sm:$0xff]
    %v2512 = vld [vmem:[%s2505 + $0x30] sm:$0xff]
    %v2513 = vld [vmem:[%s2505 + $0x38] sm:$0xff]
    %v2514 = vld [vmem:[%s2505 + $0x40] sm:$0xff]
    %v2515 = vld [vmem:[%s2505 + $0x48] sm:$0xff]
    %v2516 = vld [vmem:[%s2505 + $0x50] sm:$0xff]
    %v2517 = vld [vmem:[%s2505 + $0x58] sm:$0xff]
    %v2518 = vld [vmem:[%s2505 + $0x60] sm:$0xff]
    %v2519 = vld [vmem:[%s2505 + $0x68] sm:$0xff]
    %v2520 = vld [vmem:[%s2505 + $0x70] sm:$0xff]
    %v2521 = vld [vmem:[%s2505 + $0x78] sm:$0xff]
    %2522 = vmatpush.msra.mxu0 %v2521
    %2523 = vmatpush.msra.mxu0 %v2520
    %2524 = vmatpush.msra.mxu0 %v2519
    %2525 = vmatpush.msra.mxu0 %v2518
    %2526 = vmatpush.msra.mxu0 %v2517
    %2527 = vmatpush.msra.mxu0 %v2516
    %2528 = vmatpush.msra.mxu0 %v2515
    %2529 = vmatpush.msra.mxu0 %v2514
    %2530 = vmatpush.msra.mxu0 %v2513
    %2531 = vmatpush.msra.mxu0 %v2512
    %2532 = vmatpush.msra.mxu0 %v2511
    %2533 = vmatpush.msra.mxu0 %v2510
    %2534 = vmatpush.msra.mxu0 %v2509
    %2535 = vmatpush.msra.mxu0 %v2508
    %2536 = vmatpush.msra.mxu0 %v2507
    %2537 = vmatpush.msra.mxu0 %v2506
    %2538 = vmatmul.f32.gmra.mxu0 %v74
    %v2539 = vpop.f32.mrf.mxu0
    %v2540 = vadd.f32 0.0, %v2539
    %2541 = vmatmul.f32.gmra.mxu0 %v75
    %v2542 = vpop.f32.mrf.mxu0
    %v2543 = vadd.f32 0.0, %v2542
    %2544 = vmatmul.f32.gmra.mxu0 %v76
    %v2545 = vpop.f32.mrf.mxu0
    %v2546 = vadd.f32 0.0, %v2545
    %2547 = vmatmul.f32.gmra.mxu0 %v77
    %v2548 = vpop.f32.mrf.mxu0
    %v2549 = vadd.f32 0.0, %v2548
    %2550 = vdwg.mxu0
    %s2551 = scalar_lea.vmem %s9, 256
    %v2552 = vld [vmem:[%s2551] sm:$0xff]
    %v2553 = vld [vmem:[%s2551 + $0x8] sm:$0xff]
    %v2554 = vld [vmem:[%s2551 + $0x10] sm:$0xff]
    %v2555 = vld [vmem:[%s2551 + $0x18] sm:$0xff]
    %v2556 = vld [vmem:[%s2551 + $0x20] sm:$0xff]
    %v2557 = vld [vmem:[%s2551 + $0x28] sm:$0xff]
    %v2558 = vld [vmem:[%s2551 + $0x30] sm:$0xff]
    %v2559 = vld [vmem:[%s2551 + $0x38] sm:$0xff]
    %v2560 = vld [vmem:[%s2551 + $0x40] sm:$0xff]
    %v2561 = vld [vmem:[%s2551 + $0x48] sm:$0xff]
    %v2562 = vld [vmem:[%s2551 + $0x50] sm:$0xff]
    %v2563 = vld [vmem:[%s2551 + $0x58] sm:$0xff]
    %v2564 = vld [vmem:[%s2551 + $0x60] sm:$0xff]
    %v2565 = vld [vmem:[%s2551 + $0x68] sm:$0xff]
    %v2566 = vld [vmem:[%s2551 + $0x70] sm:$0xff]
    %v2567 = vld [vmem:[%s2551 + $0x78] sm:$0xff]
    %2568 = vmatpush.msra.mxu0 %v2567
    %2569 = vmatpush.msra.mxu0 %v2566
    %2570 = vmatpush.msra.mxu0 %v2565
    %2571 = vmatpush.msra.mxu0 %v2564
    %2572 = vmatpush.msra.mxu0 %v2563
    %2573 = vmatpush.msra.mxu0 %v2562
    %2574 = vmatpush.msra.mxu0 %v2561
    %2575 = vmatpush.msra.mxu0 %v2560
    %2576 = vmatpush.msra.mxu0 %v2559
    %2577 = vmatpush.msra.mxu0 %v2558
    %2578 = vmatpush.msra.mxu0 %v2557
    %2579 = vmatpush.msra.mxu0 %v2556
    %2580 = vmatpush.msra.mxu0 %v2555
    %2581 = vmatpush.msra.mxu0 %v2554
    %2582 = vmatpush.msra.mxu0 %v2553
    %2583 = vmatpush.msra.mxu0 %v2552
    %2584 = vmatmul.f32.gmra.mxu0 %v74
    %v2585 = vpop.f32.mrf.mxu0
    %v2586 = vadd.f32 0.0, %v2585
    %2587 = vmatmul.f32.gmra.mxu0 %v75
    %v2588 = vpop.f32.mrf.mxu0
    %v2589 = vadd.f32 0.0, %v2588
    %2590 = vmatmul.f32.gmra.mxu0 %v76
    %v2591 = vpop.f32.mrf.mxu0
    %v2592 = vadd.f32 0.0, %v2591
    %2593 = vmatmul.f32.gmra.mxu0 %v77
    %v2594 = vpop.f32.mrf.mxu0
    %v2595 = vadd.f32 0.0, %v2594
    %2596 = vdwg.mxu0
    %v2598 = vsel %vm316, %v2494, 0
    %v2601 = vsel %vm316, %v2497, 0
    %v2604 = vsel %vm316, %v2540, 0
    %v2607 = vsel %vm316, %v2543, 0
    %2609 = vmatpush.xpose.msra.mxu0 0.0
    %2610 = vmatpush.xpose.msra.mxu0 0.0
    %2611 = vmatpush.xpose.msra.mxu0 0.0
    %2612 = vmatpush.xpose.msra.mxu0 0.0
    %2613 = vmatpush.xpose.msra.mxu0 0.0
    %2614 = vmatpush.xpose.msra.mxu0 0.0
    %2615 = vmatpush.xpose.msra.mxu0 0.0
    %2616 = vmatpush.xpose.msra.mxu0 0.0
    %2617 = vmatpush.xpose.msra.mxu0 0.0
    %2618 = vmatpush.xpose.msra.mxu0 0.0
    %2619 = vmatpush.xpose.msra.mxu0 0.0
    %2620 = vmatpush.xpose.msra.mxu0 0.0
    %2621 = vmatpush.xpose.msra.mxu0 0.0
    %2622 = vmatpush.xpose.msra.mxu0 0.0
    %2623 = vmatpush.xpose.msra.mxu0 %v2607
    %2624 = vmatpush.xpose.msra.mxu0 %v2604
    %2625 = vmatmul.f32.gmra.mxu0 %v2598
    %v2626 = vpop.f32.mrf.mxu0
    %v2627 = vadd.f32 0.0, %v2626
    %2628 = vmatmul.f32.gmra.mxu0 %v2601
    %v2629 = vpop.f32.mrf.mxu0
    %v2630 = vadd.f32 0.0, %v2629
    %2631 = vdwg.mxu0
    %v2632 = vmul.f32 %v2627, 0.17677669
    %v2633 = vmul.f32 %v2630, 0.17677669
    %v2634 = vsel %vm354, %v2632, -inf
    %2635 = vmax.xlane.f32.xlu0 %v2634
    %v2636 = vpop.xlane.xlu0 %2635
    %v2637 = vsel %vm354, %v2633, -inf
    %2638 = vmax.xlane.f32.xlu0 %v2637
    %v2639 = vpop.xlane.xlu0 %2638
    %v2640 = vsub.f32 %v2632, %v2636
    %v2641 = vsub.f32 %v2633, %v2639
    %v2642 = vmul.f32 %v2640, 1.442695
    %v2643 = vpow.pop %v2642
    %v2644 = vmul.f32 %v2641, 1.442695
    %v2645 = vpow.pop %v2644
    %v2646 = vsel %vm354, %v2643, 0.0
    %2647 = vadd.xlane.f32.xlu0 %v2646
    %v2648 = vpop.xlane.xlu0 %2647
    %v2649 = vsel %vm354, %v2645, 0.0
    %2650 = vadd.xlane.f32.xlu0 %v2649
    %v2651 = vpop.xlane.xlu0 %2650
    %v2653 = vsel %vm354, %v2643, 0
    %v2656 = vsel %vm354, %v2645, 0
    %2658 = vmatpush.msra.mxu0 0.0
    %2659 = vmatpush.msra.mxu0 0.0
    %2660 = vmatpush.msra.mxu0 0.0
    %2661 = vmatpush.msra.mxu0 0.0
    %2662 = vmatpush.msra.mxu0 0.0
    %2663 = vmatpush.msra.mxu0 0.0
    %2664 = vmatpush.msra.mxu0 0.0
    %2665 = vmatpush.msra.mxu0 0.0
    %2666 = vmatpush.msra.mxu0 0.0
    %2667 = vmatpush.msra.mxu0 0.0
    %2668 = vmatpush.msra.mxu0 0.0
    %2669 = vmatpush.msra.mxu0 0.0
    %2670 = vmatpush.msra.mxu0 0.0
    %2671 = vmatpush.msra.mxu0 0.0
    %2672 = vmatpush.msra.mxu0 %v2589
    %2673 = vmatpush.msra.mxu0 %v2586
    %2674 = vmatmul.f32.gmra.mxu0 %v2653
    %v2675 = vpop.f32.mrf.mxu0
    %v2676 = vadd.f32 0.0, %v2675
    %2677 = vmatmul.f32.gmra.mxu0 %v2656
    %v2678 = vpop.f32.mrf.mxu0
    %v2679 = vadd.f32 0.0, %v2678
    %2680 = vdwg.mxu0
    %v2681 = vrcp.pop %v2648
    %v2682 = vrcp.pop %v2651
    %v2683 = vmul.f32 %v2676, %v2681
    %v2684 = vmul.f32 %v2679, %v2682
    %v2686 = vsel %vm316, %v2500, 0
    %v2689 = vsel %vm316, %v2503, 0
    %v2692 = vsel %vm316, %v2546, 0
    %v2695 = vsel %vm316, %v2549, 0
    %2697 = vmatpush.xpose.msra.mxu0 0.0
    %2698 = vmatpush.xpose.msra.mxu0 0.0
    %2699 = vmatpush.xpose.msra.mxu0 0.0
    %2700 = vmatpush.xpose.msra.mxu0 0.0
    %2701 = vmatpush.xpose.msra.mxu0 0.0
    %2702 = vmatpush.xpose.msra.mxu0 0.0
    %2703 = vmatpush.xpose.msra.mxu0 0.0
    %2704 = vmatpush.xpose.msra.mxu0 0.0
    %2705 = vmatpush.xpose.msra.mxu0 0.0
    %2706 = vmatpush.xpose.msra.mxu0 0.0
    %2707 = vmatpush.xpose.msra.mxu0 0.0
    %2708 = vmatpush.xpose.msra.mxu0 0.0
    %2709 = vmatpush.xpose.msra.mxu0 0.0
    %2710 = vmatpush.xpose.msra.mxu0 0.0
    %2711 = vmatpush.xpose.msra.mxu0 %v2695
    %2712 = vmatpush.xpose.msra.mxu0 %v2692
    %2713 = vmatmul.f32.gmra.mxu0 %v2686
    %v2714 = vpop.f32.mrf.mxu0
    %v2715 = vadd.f32 0.0, %v2714
    %2716 = vmatmul.f32.gmra.mxu0 %v2689
    %v2717 = vpop.f32.mrf.mxu0
    %v2718 = vadd.f32 0.0, %v2717
    %2719 = vdwg.mxu0
    %v2720 = vmul.f32 %v2715, 0.17677669
    %v2721 = vmul.f32 %v2718, 0.17677669
    %v2722 = vsel %vm354, %v2720, -inf
    %2723 = vmax.xlane.f32.xlu0 %v2722
    %v2724 = vpop.xlane.xlu0 %2723
    %v2725 = vsel %vm354, %v2721, -inf
    %2726 = vmax.xlane.f32.xlu0 %v2725
    %v2727 = vpop.xlane.xlu0 %2726
    %v2728 = vsub.f32 %v2720, %v2724
    %v2729 = vsub.f32 %v2721, %v2727
    %v2730 = vmul.f32 %v2728, 1.442695
    %v2731 = vpow.pop %v2730
    %v2732 = vmul.f32 %v2729, 1.442695
    %v2733 = vpow.pop %v2732
    %v2734 = vsel %vm354, %v2731, 0.0
    %2735 = vadd.xlane.f32.xlu0 %v2734
    %v2736 = vpop.xlane.xlu0 %2735
    %v2737 = vsel %vm354, %v2733, 0.0
    %2738 = vadd.xlane.f32.xlu0 %v2737
    %v2739 = vpop.xlane.xlu0 %2738
    %v2741 = vsel %vm354, %v2731, 0
    %v2744 = vsel %vm354, %v2733, 0
    %2746 = vmatpush.msra.mxu0 0.0
    %2747 = vmatpush.msra.mxu0 0.0
    %2748 = vmatpush.msra.mxu0 0.0
    %2749 = vmatpush.msra.mxu0 0.0
    %2750 = vmatpush.msra.mxu0 0.0
    %2751 = vmatpush.msra.mxu0 0.0
    %2752 = vmatpush.msra.mxu0 0.0
    %2753 = vmatpush.msra.mxu0 0.0
    %2754 = vmatpush.msra.mxu0 0.0
    %2755 = vmatpush.msra.mxu0 0.0
    %2756 = vmatpush.msra.mxu0 0.0
    %2757 = vmatpush.msra.mxu0 0.0
    %2758 = vmatpush.msra.mxu0 0.0
    %2759 = vmatpush.msra.mxu0 0.0
    %2760 = vmatpush.msra.mxu0 %v2595
    %2761 = vmatpush.msra.mxu0 %v2592
    %2762 = vmatmul.f32.gmra.mxu0 %v2741
    %v2763 = vpop.f32.mrf.mxu0
    %v2764 = vadd.f32 0.0, %v2763
    %2765 = vmatmul.f32.gmra.mxu0 %v2744
    %v2766 = vpop.f32.mrf.mxu0
    %v2767 = vadd.f32 0.0, %v2766
    %2768 = vdwg.mxu0
    %v2769 = vrcp.pop %v2736
    %v2770 = vrcp.pop %v2739
    %v2771 = vmul.f32 %v2764, %v2769
    %v2772 = vmul.f32 %v2767, %v2770
    %s2773 = scalar_lea.vmem %s10, 64
    %v2774 = vld [vmem:[%s2773] sm:$0xff]
    %v2775 = vld [vmem:[%s2773 + $0x8] sm:$0xff]
    %v2776 = vld [vmem:[%s2773 + $0x10] sm:$0xff]
    %v2777 = vld [vmem:[%s2773 + $0x18] sm:$0xff]
    %v2779 = vsel %vm316, %v2683, 0
    %v2782 = vsel %vm316, %v2684, 0
    %v2785 = vsel %vm316, %v2771, 0
    %v2788 = vsel %vm316, %v2772, 0
    %2790 = vmatpush.msra.mxu0 0.0
    %2791 = vmatpush.msra.mxu0 0.0
    %2792 = vmatpush.msra.mxu0 0.0
    %2793 = vmatpush.msra.mxu0 0.0
    %2794 = vmatpush.msra.mxu0 0.0
    %2795 = vmatpush.msra.mxu0 0.0
    %2796 = vmatpush.msra.mxu0 0.0
    %2797 = vmatpush.msra.mxu0 0.0
    %2798 = vmatpush.msra.mxu0 0.0
    %2799 = vmatpush.msra.mxu0 0.0
    %2800 = vmatpush.msra.mxu0 0.0
    %2801 = vmatpush.msra.mxu0 0.0
    %2802 = vmatpush.msra.mxu0 %v2777
    %2803 = vmatpush.msra.mxu0 %v2776
    %2804 = vmatpush.msra.mxu0 %v2775
    %2805 = vmatpush.msra.mxu0 %v2774
    %2806 = vmatmul.f32.gmra.mxu0 %v2779
    %v2807 = vpop.f32.mrf.mxu0
    %v2808 = vadd.f32 0.0, %v2807
    %2809 = vmatmul.f32.gmra.mxu0 %v2782
    %v2810 = vpop.f32.mrf.mxu0
    %v2811 = vadd.f32 0.0, %v2810
    %2812 = vmatmul.f32.gmra.mxu0 %v2785
    %v2813 = vpop.f32.mrf.mxu0
    %v2814 = vadd.f32 0.0, %v2813
    %2815 = vmatmul.f32.gmra.mxu0 %v2788
    %v2816 = vpop.f32.mrf.mxu0
    %v2817 = vadd.f32 0.0, %v2816
    %2818 = vdwg.mxu0
    %v2819 = vadd.f32 %v2455, %v2808
    %v2820 = vadd.f32 %v2456, %v2811
    %v2821 = vadd.f32 %v2457, %v2814
    %v2822 = vadd.f32 %v2458, %v2817
    %s2823 = scalar_lea.vmem %s7, 384
    %v2824 = vld [vmem:[%s2823] sm:$0xff]
    %v2825 = vld [vmem:[%s2823 + $0x8] sm:$0xff]
    %v2826 = vld [vmem:[%s2823 + $0x10] sm:$0xff]
    %v2827 = vld [vmem:[%s2823 + $0x18] sm:$0xff]
    %v2828 = vld [vmem:[%s2823 + $0x20] sm:$0xff]
    %v2829 = vld [vmem:[%s2823 + $0x28] sm:$0xff]
    %v2830 = vld [vmem:[%s2823 + $0x30] sm:$0xff]
    %v2831 = vld [vmem:[%s2823 + $0x38] sm:$0xff]
    %v2832 = vld [vmem:[%s2823 + $0x40] sm:$0xff]
    %v2833 = vld [vmem:[%s2823 + $0x48] sm:$0xff]
    %v2834 = vld [vmem:[%s2823 + $0x50] sm:$0xff]
    %v2835 = vld [vmem:[%s2823 + $0x58] sm:$0xff]
    %v2836 = vld [vmem:[%s2823 + $0x60] sm:$0xff]
    %v2837 = vld [vmem:[%s2823 + $0x68] sm:$0xff]
    %v2838 = vld [vmem:[%s2823 + $0x70] sm:$0xff]
    %v2839 = vld [vmem:[%s2823 + $0x78] sm:$0xff]
    %2840 = vmatpush.msra.mxu0 %v2839
    %2841 = vmatpush.msra.mxu0 %v2838
    %2842 = vmatpush.msra.mxu0 %v2837
    %2843 = vmatpush.msra.mxu0 %v2836
    %2844 = vmatpush.msra.mxu0 %v2835
    %2845 = vmatpush.msra.mxu0 %v2834
    %2846 = vmatpush.msra.mxu0 %v2833
    %2847 = vmatpush.msra.mxu0 %v2832
    %2848 = vmatpush.msra.mxu0 %v2831
    %2849 = vmatpush.msra.mxu0 %v2830
    %2850 = vmatpush.msra.mxu0 %v2829
    %2851 = vmatpush.msra.mxu0 %v2828
    %2852 = vmatpush.msra.mxu0 %v2827
    %2853 = vmatpush.msra.mxu0 %v2826
    %2854 = vmatpush.msra.mxu0 %v2825
    %2855 = vmatpush.msra.mxu0 %v2824
    %2856 = vmatmul.f32.gmra.mxu0 %v1727
    %v2857 = vpop.f32.mrf.mxu0
    %v2858 = vadd.f32 0.0, %v2857
    %2859 = vmatmul.f32.gmra.mxu0 %v1728
    %v2860 = vpop.f32.mrf.mxu0
    %v2861 = vadd.f32 0.0, %v2860
    %2862 = vmatmul.f32.gmra.mxu0 %v1729
    %v2863 = vpop.f32.mrf.mxu0
    %v2864 = vadd.f32 0.0, %v2863
    %2865 = vmatmul.f32.gmra.mxu0 %v1730
    %v2866 = vpop.f32.mrf.mxu0
    %v2867 = vadd.f32 0.0, %v2866
    %2868 = vdwg.mxu0
    %s2869 = scalar_lea.vmem %s8, 384
    %v2870 = vld [vmem:[%s2869] sm:$0xff]
    %v2871 = vld [vmem:[%s2869 + $0x8] sm:$0xff]
    %v2872 = vld [vmem:[%s2869 + $0x10] sm:$0xff]
    %v2873 = vld [vmem:[%s2869 + $0x18] sm:$0xff]
    %v2874 = vld [vmem:[%s2869 + $0x20] sm:$0xff]
    %v2875 = vld [vmem:[%s2869 + $0x28] sm:$0xff]
    %v2876 = vld [vmem:[%s2869 + $0x30] sm:$0xff]
    %v2877 = vld [vmem:[%s2869 + $0x38] sm:$0xff]
    %v2878 = vld [vmem:[%s2869 + $0x40] sm:$0xff]
    %v2879 = vld [vmem:[%s2869 + $0x48] sm:$0xff]
    %v2880 = vld [vmem:[%s2869 + $0x50] sm:$0xff]
    %v2881 = vld [vmem:[%s2869 + $0x58] sm:$0xff]
    %v2882 = vld [vmem:[%s2869 + $0x60] sm:$0xff]
    %v2883 = vld [vmem:[%s2869 + $0x68] sm:$0xff]
    %v2884 = vld [vmem:[%s2869 + $0x70] sm:$0xff]
    %v2885 = vld [vmem:[%s2869 + $0x78] sm:$0xff]
    %2886 = vmatpush.msra.mxu0 %v2885
    %2887 = vmatpush.msra.mxu0 %v2884
    %2888 = vmatpush.msra.mxu0 %v2883
    %2889 = vmatpush.msra.mxu0 %v2882
    %2890 = vmatpush.msra.mxu0 %v2881
    %2891 = vmatpush.msra.mxu0 %v2880
    %2892 = vmatpush.msra.mxu0 %v2879
    %2893 = vmatpush.msra.mxu0 %v2878
    %2894 = vmatpush.msra.mxu0 %v2877
    %2895 = vmatpush.msra.mxu0 %v2876
    %2896 = vmatpush.msra.mxu0 %v2875
    %2897 = vmatpush.msra.mxu0 %v2874
    %2898 = vmatpush.msra.mxu0 %v2873
    %2899 = vmatpush.msra.mxu0 %v2872
    %2900 = vmatpush.msra.mxu0 %v2871
    %2901 = vmatpush.msra.mxu0 %v2870
    %2902 = vmatmul.f32.gmra.mxu0 %v74
    %v2903 = vpop.f32.mrf.mxu0
    %v2904 = vadd.f32 0.0, %v2903
    %2905 = vmatmul.f32.gmra.mxu0 %v75
    %v2906 = vpop.f32.mrf.mxu0
    %v2907 = vadd.f32 0.0, %v2906
    %2908 = vmatmul.f32.gmra.mxu0 %v76
    %v2909 = vpop.f32.mrf.mxu0
    %v2910 = vadd.f32 0.0, %v2909
    %2911 = vmatmul.f32.gmra.mxu0 %v77
    %v2912 = vpop.f32.mrf.mxu0
    %v2913 = vadd.f32 0.0, %v2912
    %2914 = vdwg.mxu0
    %s2915 = scalar_lea.vmem %s9, 384
    %v2916 = vld [vmem:[%s2915] sm:$0xff]
    %v2917 = vld [vmem:[%s2915 + $0x8] sm:$0xff]
    %v2918 = vld [vmem:[%s2915 + $0x10] sm:$0xff]
    %v2919 = vld [vmem:[%s2915 + $0x18] sm:$0xff]
    %v2920 = vld [vmem:[%s2915 + $0x20] sm:$0xff]
    %v2921 = vld [vmem:[%s2915 + $0x28] sm:$0xff]
    %v2922 = vld [vmem:[%s2915 + $0x30] sm:$0xff]
    %v2923 = vld [vmem:[%s2915 + $0x38] sm:$0xff]
    %v2924 = vld [vmem:[%s2915 + $0x40] sm:$0xff]
    %v2925 = vld [vmem:[%s2915 + $0x48] sm:$0xff]
    %v2926 = vld [vmem:[%s2915 + $0x50] sm:$0xff]
    %v2927 = vld [vmem:[%s2915 + $0x58] sm:$0xff]
    %v2928 = vld [vmem:[%s2915 + $0x60] sm:$0xff]
    %v2929 = vld [vmem:[%s2915 + $0x68] sm:$0xff]
    %v2930 = vld [vmem:[%s2915 + $0x70] sm:$0xff]
    %v2931 = vld [vmem:[%s2915 + $0x78] sm:$0xff]
    %2932 = vmatpush.msra.mxu0 %v2931
    %2933 = vmatpush.msra.mxu0 %v2930
    %2934 = vmatpush.msra.mxu0 %v2929
    %2935 = vmatpush.msra.mxu0 %v2928
    %2936 = vmatpush.msra.mxu0 %v2927
    %2937 = vmatpush.msra.mxu0 %v2926
    %2938 = vmatpush.msra.mxu0 %v2925
    %2939 = vmatpush.msra.mxu0 %v2924
    %2940 = vmatpush.msra.mxu0 %v2923
    %2941 = vmatpush.msra.mxu0 %v2922
    %2942 = vmatpush.msra.mxu0 %v2921
    %2943 = vmatpush.msra.mxu0 %v2920
    %2944 = vmatpush.msra.mxu0 %v2919
    %2945 = vmatpush.msra.mxu0 %v2918
    %2946 = vmatpush.msra.mxu0 %v2917
    %2947 = vmatpush.msra.mxu0 %v2916
    %2948 = vmatmul.f32.gmra.mxu0 %v74
    %v2949 = vpop.f32.mrf.mxu0
    %v2950 = vadd.f32 0.0, %v2949
    %2951 = vmatmul.f32.gmra.mxu0 %v75
    %v2952 = vpop.f32.mrf.mxu0
    %v2953 = vadd.f32 0.0, %v2952
    %2954 = vmatmul.f32.gmra.mxu0 %v76
    %v2955 = vpop.f32.mrf.mxu0
    %v2956 = vadd.f32 0.0, %v2955
    %2957 = vmatmul.f32.gmra.mxu0 %v77
    %v2958 = vpop.f32.mrf.mxu0
    %v2959 = vadd.f32 0.0, %v2958
    %2960 = vdwg.mxu0
    %v2962 = vsel %vm316, %v2858, 0
    %v2965 = vsel %vm316, %v2861, 0
    %v2968 = vsel %vm316, %v2904, 0
    %v2971 = vsel %vm316, %v2907, 0
    %2973 = vmatpush.xpose.msra.mxu0 0.0
    %2974 = vmatpush.xpose.msra.mxu0 0.0
    %2975 = vmatpush.xpose.msra.mxu0 0.0
    %2976 = vmatpush.xpose.msra.mxu0 0.0
    %2977 = vmatpush.xpose.msra.mxu0 0.0
    %2978 = vmatpush.xpose.msra.mxu0 0.0
    %2979 = vmatpush.xpose.msra.mxu0 0.0
    %2980 = vmatpush.xpose.msra.mxu0 0.0
    %2981 = vmatpush.xpose.msra.mxu0 0.0
    %2982 = vmatpush.xpose.msra.mxu0 0.0
    %2983 = vmatpush.xpose.msra.mxu0 0.0
    %2984 = vmatpush.xpose.msra.mxu0 0.0
    %2985 = vmatpush.xpose.msra.mxu0 0.0
    %2986 = vmatpush.xpose.msra.mxu0 0.0
    %2987 = vmatpush.xpose.msra.mxu0 %v2971
    %2988 = vmatpush.xpose.msra.mxu0 %v2968
    %2989 = vmatmul.f32.gmra.mxu0 %v2962
    %v2990 = vpop.f32.mrf.mxu0
    %v2991 = vadd.f32 0.0, %v2990
    %2992 = vmatmul.f32.gmra.mxu0 %v2965
    %v2993 = vpop.f32.mrf.mxu0
    %v2994 = vadd.f32 0.0, %v2993
    %2995 = vdwg.mxu0
    %v2996 = vmul.f32 %v2991, 0.17677669
    %v2997 = vmul.f32 %v2994, 0.17677669
    %v2998 = vsel %vm354, %v2996, -inf
    %2999 = vmax.xlane.f32.xlu0 %v2998
    %v3000 = vpop.xlane.xlu0 %2999
    %v3001 = vsel %vm354, %v2997, -inf
    %3002 = vmax.xlane.f32.xlu0 %v3001
    %v3003 = vpop.xlane.xlu0 %3002
    %v3004 = vsub.f32 %v2996, %v3000
    %v3005 = vsub.f32 %v2997, %v3003
    %v3006 = vmul.f32 %v3004, 1.442695
    %v3007 = vpow.pop %v3006
    %v3008 = vmul.f32 %v3005, 1.442695
    %v3009 = vpow.pop %v3008
    %v3010 = vsel %vm354, %v3007, 0.0
    %3011 = vadd.xlane.f32.xlu0 %v3010
    %v3012 = vpop.xlane.xlu0 %3011
    %v3013 = vsel %vm354, %v3009, 0.0
    %3014 = vadd.xlane.f32.xlu0 %v3013
    %v3015 = vpop.xlane.xlu0 %3014
    %v3017 = vsel %vm354, %v3007, 0
    %v3020 = vsel %vm354, %v3009, 0
    %3022 = vmatpush.msra.mxu0 0.0
    %3023 = vmatpush.msra.mxu0 0.0
    %3024 = vmatpush.msra.mxu0 0.0
    %3025 = vmatpush.msra.mxu0 0.0
    %3026 = vmatpush.msra.mxu0 0.0
    %3027 = vmatpush.msra.mxu0 0.0
    %3028 = vmatpush.msra.mxu0 0.0
    %3029 = vmatpush.msra.mxu0 0.0
    %3030 = vmatpush.msra.mxu0 0.0
    %3031 = vmatpush.msra.mxu0 0.0
    %3032 = vmatpush.msra.mxu0 0.0
    %3033 = vmatpush.msra.mxu0 0.0
    %3034 = vmatpush.msra.mxu0 0.0
    %3035 = vmatpush.msra.mxu0 0.0
    %3036 = vmatpush.msra.mxu0 %v2953
    %3037 = vmatpush.msra.mxu0 %v2950
    %3038 = vmatmul.f32.gmra.mxu0 %v3017
    %v3039 = vpop.f32.mrf.mxu0
    %v3040 = vadd.f32 0.0, %v3039
    %3041 = vmatmul.f32.gmra.mxu0 %v3020
    %v3042 = vpop.f32.mrf.mxu0
    %v3043 = vadd.f32 0.0, %v3042
    %3044 = vdwg.mxu0
    %v3045 = vrcp.pop %v3012
    %v3046 = vrcp.pop %v3015
    %v3047 = vmul.f32 %v3040, %v3045
    %v3048 = vmul.f32 %v3043, %v3046
    %v3050 = vsel %vm316, %v2864, 0
    %v3053 = vsel %vm316, %v2867, 0
    %v3056 = vsel %vm316, %v2910, 0
    %v3059 = vsel %vm316, %v2913, 0
    %3061 = vmatpush.xpose.msra.mxu0 0.0
    %3062 = vmatpush.xpose.msra.mxu0 0.0
    %3063 = vmatpush.xpose.msra.mxu0 0.0
    %3064 = vmatpush.xpose.msra.mxu0 0.0
    %3065 = vmatpush.xpose.msra.mxu0 0.0
    %3066 = vmatpush.xpose.msra.mxu0 0.0
    %3067 = vmatpush.xpose.msra.mxu0 0.0
    %3068 = vmatpush.xpose.msra.mxu0 0.0
    %3069 = vmatpush.xpose.msra.mxu0 0.0
    %3070 = vmatpush.xpose.msra.mxu0 0.0
    %3071 = vmatpush.xpose.msra.mxu0 0.0
    %3072 = vmatpush.xpose.msra.mxu0 0.0
    %3073 = vmatpush.xpose.msra.mxu0 0.0
    %3074 = vmatpush.xpose.msra.mxu0 0.0
    %3075 = vmatpush.xpose.msra.mxu0 %v3059
    %3076 = vmatpush.xpose.msra.mxu0 %v3056
    %3077 = vmatmul.f32.gmra.mxu0 %v3050
    %v3078 = vpop.f32.mrf.mxu0
    %v3079 = vadd.f32 0.0, %v3078
    %3080 = vmatmul.f32.gmra.mxu0 %v3053
    %v3081 = vpop.f32.mrf.mxu0
    %v3082 = vadd.f32 0.0, %v3081
    %3083 = vdwg.mxu0
    %v3084 = vmul.f32 %v3079, 0.17677669
    %v3085 = vmul.f32 %v3082, 0.17677669
    %v3086 = vsel %vm354, %v3084, -inf
    %3087 = vmax.xlane.f32.xlu0 %v3086
    %v3088 = vpop.xlane.xlu0 %3087
    %v3089 = vsel %vm354, %v3085, -inf
    %3090 = vmax.xlane.f32.xlu0 %v3089
    %v3091 = vpop.xlane.xlu0 %3090
    %v3092 = vsub.f32 %v3084, %v3088
    %v3093 = vsub.f32 %v3085, %v3091
    %v3094 = vmul.f32 %v3092, 1.442695
    %v3095 = vpow.pop %v3094
    %v3096 = vmul.f32 %v3093, 1.442695
    %v3097 = vpow.pop %v3096
    %v3098 = vsel %vm354, %v3095, 0.0
    %3099 = vadd.xlane.f32.xlu0 %v3098
    %v3100 = vpop.xlane.xlu0 %3099
    %v3101 = vsel %vm354, %v3097, 0.0
    %3102 = vadd.xlane.f32.xlu0 %v3101
    %v3103 = vpop.xlane.xlu0 %3102
    %v3105 = vsel %vm354, %v3095, 0
    %v3108 = vsel %vm354, %v3097, 0
    %3110 = vmatpush.msra.mxu0 0.0
    %3111 = vmatpush.msra.mxu0 0.0
    %3112 = vmatpush.msra.mxu0 0.0
    %3113 = vmatpush.msra.mxu0 0.0
    %3114 = vmatpush.msra.mxu0 0.0
    %3115 = vmatpush.msra.mxu0 0.0
    %3116 = vmatpush.msra.mxu0 0.0
    %3117 = vmatpush.msra.mxu0 0.0
    %3118 = vmatpush.msra.mxu0 0.0
    %3119 = vmatpush.msra.mxu0 0.0
    %3120 = vmatpush.msra.mxu0 0.0
    %3121 = vmatpush.msra.mxu0 0.0
    %3122 = vmatpush.msra.mxu0 0.0
    %3123 = vmatpush.msra.mxu0 0.0
    %3124 = vmatpush.msra.mxu0 %v2959
    %3125 = vmatpush.msra.mxu0 %v2956
    %3126 = vmatmul.f32.gmra.mxu0 %v3105
    %v3127 = vpop.f32.mrf.mxu0
    %v3128 = vadd.f32 0.0, %v3127
    %3129 = vmatmul.f32.gmra.mxu0 %v3108
    %v3130 = vpop.f32.mrf.mxu0
    %v3131 = vadd.f32 0.0, %v3130
    %3132 = vdwg.mxu0
    %v3133 = vrcp.pop %v3100
    %v3134 = vrcp.pop %v3103
    %v3135 = vmul.f32 %v3128, %v3133
    %v3136 = vmul.f32 %v3131, %v3134
    %s3137 = scalar_lea.vmem %s10, 96
    %v3138 = vld [vmem:[%s3137] sm:$0xff]
    %v3139 = vld [vmem:[%s3137 + $0x8] sm:$0xff]
    %v3140 = vld [vmem:[%s3137 + $0x10] sm:$0xff]
    %v3141 = vld [vmem:[%s3137 + $0x18] sm:$0xff]
    %v3143 = vsel %vm316, %v3047, 0
    %v3146 = vsel %vm316, %v3048, 0
    %v3149 = vsel %vm316, %v3135, 0
    %v3152 = vsel %vm316, %v3136, 0
    %3154 = vmatpush.msra.mxu0 0.0
    %3155 = vmatpush.msra.mxu0 0.0
    %3156 = vmatpush.msra.mxu0 0.0
    %3157 = vmatpush.msra.mxu0 0.0
    %3158 = vmatpush.msra.mxu0 0.0
    %3159 = vmatpush.msra.mxu0 0.0
    %3160 = vmatpush.msra.mxu0 0.0
    %3161 = vmatpush.msra.mxu0 0.0
    %3162 = vmatpush.msra.mxu0 0.0
    %3163 = vmatpush.msra.mxu0 0.0
    %3164 = vmatpush.msra.mxu0 0.0
    %3165 = vmatpush.msra.mxu0 0.0
    %3166 = vmatpush.msra.mxu0 %v3141
    %3167 = vmatpush.msra.mxu0 %v3140
    %3168 = vmatpush.msra.mxu0 %v3139
    %3169 = vmatpush.msra.mxu0 %v3138
    %3170 = vmatmul.f32.gmra.mxu0 %v3143
    %v3171 = vpop.f32.mrf.mxu0
    %v3172 = vadd.f32 0.0, %v3171
    %3173 = vmatmul.f32.gmra.mxu0 %v3146
    %v3174 = vpop.f32.mrf.mxu0
    %v3175 = vadd.f32 0.0, %v3174
    %3176 = vmatmul.f32.gmra.mxu0 %v3149
    %v3177 = vpop.f32.mrf.mxu0
    %v3178 = vadd.f32 0.0, %v3177
    %3179 = vmatmul.f32.gmra.mxu0 %v3152
    %v3180 = vpop.f32.mrf.mxu0
    %v3181 = vadd.f32 0.0, %v3180
    %3182 = vdwg.mxu0
    %v3183 = vadd.f32 %v2819, %v3172
    %v3184 = vadd.f32 %v2820, %v3175
    %v3185 = vadd.f32 %v2821, %v3178
    %v3186 = vadd.f32 %v2822, %v3181
    %v3187 = vadd.f32 %v1635, %v3183
    %v3188 = vadd.f32 %v1636, %v3184
    %v3189 = vadd.f32 %v1637, %v3185
    %v3190 = vadd.f32 %v1638, %v3186
    %s3191 = sld [smem:[#allocation2 + $0x4]]
    %s3192 = sld [smem:[#allocation2 + $0x5]]
    %3193 = vadd.xlane.f32.xlu0 %v3187
    %v3194 = vpop.xlane.xlu0 %3193
    %3195 = vadd.xlane.f32.xlu0 %v3188
    %v3196 = vpop.xlane.xlu0 %3195
    %3197 = vadd.xlane.f32.xlu0 %v3189
    %v3198 = vpop.xlane.xlu0 %3197
    %3199 = vadd.xlane.f32.xlu0 %v3190
    %v3200 = vpop.xlane.xlu0 %3199
    %v3201 = vmul.f32 %v3194, %v94
    %v3202 = vmul.f32 %v3196, %v94
    %v3203 = vmul.f32 %v3198, %v94
    %v3204 = vmul.f32 %v3200, %v94
    %v3205 = vsub.f32 %v3187, %v3201
    %v3206 = vsub.f32 %v3188, %v3202
    %v3207 = vsub.f32 %v3189, %v3203
    %v3208 = vsub.f32 %v3190, %v3204
    %v3209 = vmul.f32 %v3205, %v3205
    %v3210 = vmul.f32 %v3206, %v3206
    %v3211 = vmul.f32 %v3207, %v3207
    %v3212 = vmul.f32 %v3208, %v3208
    %3213 = vadd.xlane.f32.xlu0 %v3209
    %v3214 = vpop.xlane.xlu0 %3213
    %3215 = vadd.xlane.f32.xlu0 %v3210
    %v3216 = vpop.xlane.xlu0 %3215
    %3217 = vadd.xlane.f32.xlu0 %v3211
    %v3218 = vpop.xlane.xlu0 %3217
    %3219 = vadd.xlane.f32.xlu0 %v3212
    %v3220 = vpop.xlane.xlu0 %3219
    %v3221 = vmul.f32 %v3214, 0.007874016
    %v3222 = vmul.f32 %v3216, 0.007874016
    %v3223 = vmul.f32 %v3218, 0.007874016
    %v3224 = vmul.f32 %v3220, 0.007874016
    %v3225 = vstv %s3191
    %v3226 = vmul.f32 %v3225, %v3205
    %v3227 = vmul.f32 %v3225, %v3206
    %v3228 = vmul.f32 %v3225, %v3207
    %v3229 = vmul.f32 %v3225, %v3208
    %v3230 = vadd.f32 %v3221, 1e-05
    %v3231 = vadd.f32 %v3222, 1e-05
    %v3232 = vadd.f32 %v3223, 1e-05
    %v3233 = vadd.f32 %v3224, 1e-05
    %v3234 = vrsqrt.pop %v3230
    %v3235 = vmul.f32 %v3234, %v3230
    %v3236 = vmul.f32 %v3235, %v3234
    %v3237 = vmul.f32 0.5, %v3236
    %v3238 = vsub.f32 1.5, %v3237
    %v3239 = vmul.f32 %v3234, %v3238
    %vm3240 = vweird.f32 %v3230
    %vm3241 = vweird.f32 %v3234
    %vm3242 = vmor %vm3240, %vm3241
    %v3243 = vsel %vm3242, %v3234, %v3239
    %v3244 = vrsqrt.pop %v3231
    %v3245 = vmul.f32 %v3244, %v3231
    %v3246 = vmul.f32 %v3245, %v3244
    %v3247 = vmul.f32 0.5, %v3246
    %v3248 = vsub.f32 1.5, %v3247
    %v3249 = vmul.f32 %v3244, %v3248
    %vm3250 = vweird.f32 %v3231
    %vm3251 = vweird.f32 %v3244
    %vm3252 = vmor %vm3250, %vm3251
    %v3253 = vsel %vm3252, %v3244, %v3249
    %v3254 = vrsqrt.pop %v3232
    %v3255 = vmul.f32 %v3254, %v3232
    %v3256 = vmul.f32 %v3255, %v3254
    %v3257 = vmul.f32 0.5, %v3256
    %v3258 = vsub.f32 1.5, %v3257
    %v3259 = vmul.f32 %v3254, %v3258
    %vm3260 = vweird.f32 %v3232
    %vm3261 = vweird.f32 %v3254
    %vm3262 = vmor %vm3260, %vm3261
    %v3263 = vsel %vm3262, %v3254, %v3259
    %v3264 = vrsqrt.pop %v3233
    %v3265 = vmul.f32 %v3264, %v3233
    %v3266 = vmul.f32 %v3265, %v3264
    %v3267 = vmul.f32 0.5, %v3266
    %v3268 = vsub.f32 1.5, %v3267
    %v3269 = vmul.f32 %v3264, %v3268
    %vm3270 = vweird.f32 %v3233
    %vm3271 = vweird.f32 %v3264
    %vm3272 = vmor %vm3270, %vm3271
    %v3273 = vsel %vm3272, %v3264, %v3269
    %v3274 = vmul.f32 %v3226, %v3243
    %v3275 = vmul.f32 %v3227, %v3253
    %v3276 = vmul.f32 %v3228, %v3263
    %v3277 = vmul.f32 %v3229, %v3273
    %v3278 = vstv %s3192
    %v3279 = vadd.f32 %v3274, %v3278
    %v3280 = vadd.f32 %v3275, %v3278
    %v3281 = vadd.f32 %v3276, %v3278
    %v3282 = vadd.f32 %v3277, %v3278
    %v3283 = vld [vmem:[%s12] sm:$0xff]
    %v3284 = vld [vmem:[%s12 + $0x8] sm:$0xff]
    %v3285 = vld [vmem:[%s12 + $0x10] sm:$0xff]
    %v3286 = vld [vmem:[%s12 + $0x18] sm:$0xff]
    %v3287 = vld [vmem:[%s12 + $0x20] sm:$0xff]
    %v3288 = vld [vmem:[%s12 + $0x28] sm:$0xff]
    %v3289 = vld [vmem:[%s12 + $0x30] sm:$0xff]
    %v3290 = vld [vmem:[%s12 + $0x38] sm:$0xff]
    %v3291 = vld [vmem:[%s12 + $0x40] sm:$0xff]
    %v3292 = vld [vmem:[%s12 + $0x48] sm:$0xff]
    %v3293 = vld [vmem:[%s12 + $0x50] sm:$0xff]
    %v3294 = vld [vmem:[%s12 + $0x58] sm:$0xff]
    %v3295 = vld [vmem:[%s12 + $0x60] sm:$0xff]
    %v3296 = vld [vmem:[%s12 + $0x68] sm:$0xff]
    %v3297 = vld [vmem:[%s12 + $0x70] sm:$0xff]
    %v3298 = vld [vmem:[%s12 + $0x78] sm:$0xff]
    %v3299 = vld [vmem:[%s12 + $0x80] sm:$0xff]
    %v3300 = vld [vmem:[%s12 + $0x88] sm:$0xff]
    %v3301 = vld [vmem:[%s12 + $0x90] sm:$0xff]
    %v3302 = vld [vmem:[%s12 + $0x98] sm:$0xff]
    %v3303 = vld [vmem:[%s12 + $0xa0] sm:$0xff]
    %v3304 = vld [vmem:[%s12 + $0xa8] sm:$0xff]
    %v3305 = vld [vmem:[%s12 + $0xb0] sm:$0xff]
    %v3306 = vld [vmem:[%s12 + $0xb8] sm:$0xff]
    %v3307 = vld [vmem:[%s12 + $0xc0] sm:$0xff]
    %v3308 = vld [vmem:[%s12 + $0xc8] sm:$0xff]
    %v3309 = vld [vmem:[%s12 + $0xd0] sm:$0xff]
    %v3310 = vld [vmem:[%s12 + $0xd8] sm:$0xff]
    %v3311 = vld [vmem:[%s12 + $0xe0] sm:$0xff]
    %v3312 = vld [vmem:[%s12 + $0xe8] sm:$0xff]
    %v3313 = vld [vmem:[%s12 + $0xf0] sm:$0xff]
    %v3314 = vld [vmem:[%s12 + $0xf8] sm:$0xff]
    %v3315 = vld [vmem:[%s13] sm:$0x3]
    %v3317 = vperm.slane %v3315, 0
    %v3318 = vperm.slane %v3315, 1
    %3321 = vmatpush.msra.mxu0 %v3313
    %3322 = vmatpush.msra.mxu0 %v3311
    %3323 = vmatpush.msra.mxu0 %v3309
    %3324 = vmatpush.msra.mxu0 %v3307
    %3325 = vmatpush.msra.mxu0 %v3305
    %3326 = vmatpush.msra.mxu0 %v3303
    %3327 = vmatpush.msra.mxu0 %v3301
    %3328 = vmatpush.msra.mxu0 %v3299
    %3329 = vmatpush.msra.mxu0 %v3297
    %3330 = vmatpush.msra.mxu0 %v3295
    %3331 = vmatpush.msra.mxu0 %v3293
    %3332 = vmatpush.msra.mxu0 %v3291
    %3333 = vmatpush.msra.mxu0 %v3289
    %3334 = vmatpush.msra.mxu0 %v3287
    %3335 = vmatpush.msra.mxu0 %v3285
    %3336 = vmatpush.msra.mxu0 %v3283
    %3337 = vmatmul.f32.gmra.mxu0 %v3279
    %v3338 = vpop.f32.mrf.mxu0
    %v3339 = vadd.f32 %v3317, %v3338
    %3340 = vmatmul.f32.gmra.mxu0 %v3280
    %v3341 = vpop.f32.mrf.mxu0
    %v3342 = vadd.f32 %v3317, %v3341
    %3343 = vmatmul.f32.gmra.mxu0 %v3281
    %v3344 = vpop.f32.mrf.mxu0
    %v3345 = vadd.f32 %v3317, %v3344
    %3346 = vmatmul.f32.gmra.mxu0 %v3282
    %v3347 = vpop.f32.mrf.mxu0
    %v3348 = vadd.f32 %v3317, %v3347
    %3349 = vdwg.mxu0
    %3350 = vmatpush.msra.mxu0 %v3314
    %3351 = vmatpush.msra.mxu0 %v3312
    %3352 = vmatpush.msra.mxu0 %v3310
    %3353 = vmatpush.msra.mxu0 %v3308
    %3354 = vmatpush.msra.mxu0 %v3306
    %3355 = vmatpush.msra.mxu0 %v3304
    %3356 = vmatpush.msra.mxu0 %v3302
    %3357 = vmatpush.msra.mxu0 %v3300
    %3358 = vmatpush.msra.mxu0 %v3298
    %3359 = vmatpush.msra.mxu0 %v3296
    %3360 = vmatpush.msra.mxu0 %v3294
    %3361 = vmatpush.msra.mxu0 %v3292
    %3362 = vmatpush.msra.mxu0 %v3290
    %3363 = vmatpush.msra.mxu0 %v3288
    %3364 = vmatpush.msra.mxu0 %v3286
    %3365 = vmatpush.msra.mxu0 %v3284
    %3366 = vmatmul.f32.gmra.mxu0 %v3279
    %v3367 = vpop.f32.mrf.mxu0
    %v3368 = vadd.f32 %v3318, %v3367
    %3369 = vmatmul.f32.gmra.mxu0 %v3280
    %v3370 = vpop.f32.mrf.mxu0
    %v3371 = vadd.f32 %v3318, %v3370
    %3372 = vmatmul.f32.gmra.mxu0 %v3281
    %v3373 = vpop.f32.mrf.mxu0
    %v3374 = vadd.f32 %v3318, %v3373
    %3375 = vmatmul.f32.gmra.mxu0 %v3282
    %v3376 = vpop.f32.mrf.mxu0
    %v3377 = vadd.f32 %v3318, %v3376
    %3378 = vdwg.mxu0
    %v3379 = vmax.f32 %v3339, 0.0
    %v3380 = vmax.f32 %v3368, 0.0
    %v3381 = vmax.f32 %v3342, 0.0
    %v3382 = vmax.f32 %v3371, 0.0
    %v3383 = vmax.f32 %v3345, 0.0
    %v3384 = vmax.f32 %v3374, 0.0
    %v3385 = vmax.f32 %v3348, 0.0
    %v3386 = vmax.f32 %v3377, 0.0
    %v3387 = vld [vmem:[%s14] sm:$0xff]
    %v3388 = vld [vmem:[%s14 + $0x8] sm:$0xff]
    %v3389 = vld [vmem:[%s14 + $0x10] sm:$0xff]
    %v3390 = vld [vmem:[%s14 + $0x18] sm:$0xff]
    %v3391 = vld [vmem:[%s14 + $0x20] sm:$0xff]
    %v3392 = vld [vmem:[%s14 + $0x28] sm:$0xff]
    %v3393 = vld [vmem:[%s14 + $0x30] sm:$0xff]
    %v3394 = vld [vmem:[%s14 + $0x38] sm:$0xff]
    %v3395 = vld [vmem:[%s14 + $0x40] sm:$0xff]
    %v3396 = vld [vmem:[%s14 + $0x48] sm:$0xff]
    %v3397 = vld [vmem:[%s14 + $0x50] sm:$0xff]
    %v3398 = vld [vmem:[%s14 + $0x58] sm:$0xff]
    %v3399 = vld [vmem:[%s14 + $0x60] sm:$0xff]
    %v3400 = vld [vmem:[%s14 + $0x68] sm:$0xff]
    %v3401 = vld [vmem:[%s14 + $0x70] sm:$0xff]
    %v3402 = vld [vmem:[%s14 + $0x78] sm:$0xff]
    %v3403 = vld [vmem:[%s14 + $0x80] sm:$0xff]
    %v3404 = vld [vmem:[%s14 + $0x88] sm:$0xff]
    %v3405 = vld [vmem:[%s14 + $0x90] sm:$0xff]
    %v3406 = vld [vmem:[%s14 + $0x98] sm:$0xff]
    %v3407 = vld [vmem:[%s14 + $0xa0] sm:$0xff]
    %v3408 = vld [vmem:[%s14 + $0xa8] sm:$0xff]
    %v3409 = vld [vmem:[%s14 + $0xb0] sm:$0xff]
    %v3410 = vld [vmem:[%s14 + $0xb8] sm:$0xff]
    %v3411 = vld [vmem:[%s14 + $0xc0] sm:$0xff]
    %v3412 = vld [vmem:[%s14 + $0xc8] sm:$0xff]
    %v3413 = vld [vmem:[%s14 + $0xd0] sm:$0xff]
    %v3414 = vld [vmem:[%s14 + $0xd8] sm:$0xff]
    %v3415 = vld [vmem:[%s14 + $0xe0] sm:$0xff]
    %v3416 = vld [vmem:[%s14 + $0xe8] sm:$0xff]
    %v3417 = vld [vmem:[%s14 + $0xf0] sm:$0xff]
    %v3418 = vld [vmem:[%s14 + $0xf8] sm:$0xff]
    %3419 = vmatpush.msra.mxu0 %v3402
    %3420 = vmatpush.msra.mxu0 %v3401
    %3421 = vmatpush.msra.mxu0 %v3400
    %3422 = vmatpush.msra.mxu0 %v3399
    %3423 = vmatpush.msra.mxu0 %v3398
    %3424 = vmatpush.msra.mxu0 %v3397
    %3425 = vmatpush.msra.mxu0 %v3396
    %3426 = vmatpush.msra.mxu0 %v3395
    %3427 = vmatpush.msra.mxu0 %v3394
    %3428 = vmatpush.msra.mxu0 %v3393
    %3429 = vmatpush.msra.mxu0 %v3392
    %3430 = vmatpush.msra.mxu0 %v3391
    %3431 = vmatpush.msra.mxu0 %v3390
    %3432 = vmatpush.msra.mxu0 %v3389
    %3433 = vmatpush.msra.mxu0 %v3388
    %3434 = vmatpush.msra.mxu0 %v3387
    %3435 = vmatmul.f32.gmra.mxu0 %v3379
    %v3436 = vpop.f32.mrf.mxu0
    %v3437 = vadd.f32 0.0, %v3436
    %3438 = vmatmul.f32.gmra.mxu0 %v3381
    %v3439 = vpop.f32.mrf.mxu0
    %v3440 = vadd.f32 0.0, %v3439
    %3441 = vmatmul.f32.gmra.mxu0 %v3383
    %v3442 = vpop.f32.mrf.mxu0
    %v3443 = vadd.f32 0.0, %v3442
    %3444 = vmatmul.f32.gmra.mxu0 %v3385
    %v3445 = vpop.f32.mrf.mxu0
    %v3446 = vadd.f32 0.0, %v3445
    %3447 = vdwg.mxu0
    %3448 = vmatpush.msra.mxu0 %v3418
    %3449 = vmatpush.msra.mxu0 %v3417
    %3450 = vmatpush.msra.mxu0 %v3416
    %3451 = vmatpush.msra.mxu0 %v3415
    %3452 = vmatpush.msra.mxu0 %v3414
    %3453 = vmatpush.msra.mxu0 %v3413
    %3454 = vmatpush.msra.mxu0 %v3412
    %3455 = vmatpush.msra.mxu0 %v3411
    %3456 = vmatpush.msra.mxu0 %v3410
    %3457 = vmatpush.msra.mxu0 %v3409
    %3458 = vmatpush.msra.mxu0 %v3408
    %3459 = vmatpush.msra.mxu0 %v3407
    %3460 = vmatpush.msra.mxu0 %v3406
    %3461 = vmatpush.msra.mxu0 %v3405
    %3462 = vmatpush.msra.mxu0 %v3404
    %3463 = vmatpush.msra.mxu0 %v3403
    %3464 = vmatmul.f32.gmra.mxu0 %v3380
    %v3465 = vpop.f32.mrf.mxu0
    %v3466 = vadd.f32 %v3437, %v3465
    %3467 = vmatmul.f32.gmra.mxu0 %v3382
    %v3468 = vpop.f32.mrf.mxu0
    %v3469 = vadd.f32 %v3440, %v3468
    %3470 = vmatmul.f32.gmra.mxu0 %v3384
    %v3471 = vpop.f32.mrf.mxu0
    %v3472 = vadd.f32 %v3443, %v3471
    %3473 = vmatmul.f32.gmra.mxu0 %v3386
    %v3474 = vpop.f32.mrf.mxu0
    %v3475 = vadd.f32 %v3446, %v3474
    %3476 = vdwg.mxu0
    %v3477 = vadd.f32 %v3187, %v3466
    %v3478 = vadd.f32 %v3188, %v3469
    %v3479 = vadd.f32 %v3189, %v3472
    %v3480 = vadd.f32 %v3190, %v3475
    %v3481 = vld [vmem:[%s15] sm:$0x1]
    %v3483 = vperm.slane %v3481, 0
    %v3485 = vadd.f32 %v3477, %v3483
    %v3486 = vadd.f32 %v3478, %v3483
    %v3487 = vadd.f32 %v3479, %v3483
    %v3488 = vadd.f32 %v3480, %v3483
    %3489 = vst [vmem:[#allocation5] sm:$0xff] %v3485
    %3490 = vst [vmem:[#allocation5 + $0x8] sm:$0xff] %v3486
    %3491 = vst [vmem:[#allocation5 + $0x10] sm:$0xff] %v3487
    %3492 = vst [vmem:[#allocation5 + $0x18] sm:$0xff] %v3488
    // Predicated region
    $region74: #{tpu_custom_call.1} parent=1 // pred_check
      _
    $region75: #{tpu_custom_call.1} parent=1 // pred_check_branch
      %3494 = sbr.rel (0) target = $region77
    $region76: #{tpu_custom_call.1} parent=1 // pred_region
      %3496 = vsyncadd [#allocation3], 0
      %s3497 = sshll.u32 [#allocation5], 4
      %s3498 = int_to_ptr.vmem [resolvable:$true] %s3497
      %s3499 = sshll.u32 %s17, 4
      %s3500 = int_to_ptr.hbm [resolvable:$true] %s3499
      %3505 = dma.vmem_to_hbm [thread:$0]  %s3498, 512, %s3500, [#allocation3], 128, 128, 8
    $region77: #{tpu_custom_call.1} parent=1 // pred_fallthru
      _
    // Predicated region
    $region78: #{tpu_custom_call.1} parent=1 // pred_check
      _
    $region79: #{tpu_custom_call.1} parent=1 // pred_check_branch
      %3507 = sbr.rel (0) target = $region81
    $region80: #{tpu_custom_call.1} parent=1 // pred_region
      %3509 = dma.done [#allocation3], 512
    $region81: #{tpu_custom_call.1} parent=1 // pred_fallthru
      _
    %3510 = vsyncpa [#allocation3], 1
    %3511 = vsyncpa [#allocation4], 1

</llo_original>
